<compile_context>
chip_gen: v7x
topology: tpu7x:2x2x1
jax: 0.10.0
libtpu: 0.0.40
codegen_flags: <defaults>
</compile_context>

<pallas_src>
import jax
import jax.numpy as jnp
from jax.experimental import pallas as pl
from jax.experimental.pallas import tpu as pltpu

EPS = 1e-5
NEG_SLOPE = 0.2                      # LeakyReLU(0.2)
MXU_DTYPE = jnp.bfloat16             # feed-forward MXU operand dtype (f32 accumulate)


def _leaky(x):
    # max(x, 0.2*x) == LeakyReLU(0.2) for slope < 1
    return jnp.maximum(x, NEG_SLOPE * x)


def _bn_cols(y, sel_ref, selT_ref, g_ref, be_ref, cnt):
    """Training-mode BatchNorm over rows + column-groups, two-pass variance.

    y        : (N, W) activations
    sel      : (W, G) 0/1 column->group selector, selT = sel.T
    g/be     : (1, W) gamma/beta already broadcast per column
    cnt      : number of elements per group (python scalar)
    """
    inv = 1.0 / cnt
    s1 = jnp.sum(y, axis=0, keepdims=True)                                     # (1, W)
    mean_g = jnp.dot(s1, sel_ref[...], preferred_element_type=jnp.float32) * inv
    mean = jnp.dot(mean_g, selT_ref[...], preferred_element_type=jnp.float32)  # (1, W)
    d = y - mean
    var_g = jnp.dot(jnp.sum(d * d, axis=0, keepdims=True), sel_ref[...],
                    preferred_element_type=jnp.float32) * inv                  # (1, G)
    scale_g = jax.lax.rsqrt(var_g + EPS)
    scale = jnp.dot(scale_g, selT_ref[...], preferred_element_type=jnp.float32)
    return d * (g_ref[...] * scale) + be_ref[...]


# ---------------------------------------------------------------------------
# Fused kernel: conv1+BN+act -> conv2+BN+act -> Linear+BN+act -> GRU -> decide
# ---------------------------------------------------------------------------
def eeg3_kernel(x_ref, pbs_ref,
                wc1_ref, sel1_ref, sel1T_ref, g1_ref, be1_ref,
                wc2_ref, sel2_ref, sel2T_ref, g2_ref, be2_ref,
                wbig_ref, bl_ref, sel3_ref, sel3T_ref, g3_ref, be3_ref,
                wih_ref, bih_ref, whh_ref, bhh_ref,
                wdec_ref, bdec_ref,
                y_ref, h_ref):
    N = x_ref.shape[0]
    C2 = sel2_ref.shape[1]
    L = sel2_ref.shape[0] // C2
    J = sel3_ref.shape[0] // C2
    H = whh_ref.shape[0]
    T, O, S = y_ref.shape            # T = secondDim, S = firstDim (GRU batch)

    cnt_conv = float(N * L)          # BN over (images, positions) per conv channel
    cnt_lin = float(N * J)           # BN over (images, comprInputs) per channel

    # --- fcChannels1 / fcChannels2: Conv1d(k=3, same) + BN + LeakyReLU.
    # Each conv is one banded (L*Cin, L*Cout) matmul on lane-dense (N, L*C) rows.
    x = x_ref[...]
    w1 = wc1_ref[...]
    a1 = jnp.dot(x.astype(w1.dtype), w1, preferred_element_type=jnp.float32)
    y1 = _leaky(_bn_cols(a1, sel1_ref, sel1T_ref, g1_ref, be1_ref, cnt_conv))   # (N, L*C1)

    w2 = wc2_ref[...]
    a2 = jnp.dot(y1.astype(w2.dtype), w2, preferred_element_type=jnp.float32)
    y2 = _leaky(_bn_cols(a2, sel2_ref, sel2T_ref, g2_ref, be2_ref, cnt_conv))   # (N, L*C2)

    # --- fcChannels4: Linear(L->J) per channel as one block-diagonal matmul.
    # Output columns are already in torch flatten order f = c*J + j.
    wb = wbig_ref[...]
    a3 = jnp.dot(y2.astype(wb.dtype), wb, preferred_element_type=jnp.float32) + bl_ref[...]
    y3 = _leaky(_bn_cols(a3, sel3_ref, sel3T_ref, g3_ref, be3_ref, cnt_lin))    # (N, C2*J)

    # --- PyTorch's permute/view/reshape chain reduces to a row permutation
    # (s-major -> time-major); do it on the MXU with a one-hot matmul.
    y3t = jnp.dot(pbs_ref[...], y3, preferred_element_type=jnp.float32)         # (N, C2*J)

    # --- GRU input projection hoisted out of the recurrence: one K=C2*J matmul.
    wih = wih_ref[...]
    gi = jnp.dot(y3t.astype(wih.dtype), wih,
                 preferred_element_type=jnp.float32) + bih_ref[...]             # (N, 3H)

    whh = whh_ref[...]
    bhh = bhh_ref[...]
    h = jnp.zeros((S, H), jnp.float32)
    hs = []
    # GRU recurrence (torch gate order r, z, n); T is small so fully unrolled.
    # TODO(synk): switch to lax.fori_loop with ref-sliced writes for large secondDim.
    for t in range(T):
        gi_t = gi[t * S:(t + 1) * S, :]                     # contiguous time slab
        gh = jnp.dot(h, whh, preferred_element_type=jnp.float32) + bhh
        r = jax.nn.sigmoid(gi_t[:, 0:H] + gh[:, 0:H])
        z = jax.nn.sigmoid(gi_t[:, H:2 * H] + gh[:, H:2 * H])
        n = jnp.tanh(gi_t[:, 2 * H:3 * H] + r * gh[:, 2 * H:3 * H])
        h = (1.0 - z) * n + z * h
        hs.append(h)

    # --- decide: one matmul over all (time, batch) rows, then one small transpose.
    hcat = jnp.concatenate(hs, axis=0)                                          # (T*S, H)
    dec = jnp.dot(hcat, wdec_ref[...], preferred_element_type=jnp.float32) + bdec_ref[...]
    decT = dec.T                                                                # (O, T*S)
    for t in range(T):
        y_ref[t] = decT[:, t * S:(t + 1) * S]
    h_ref[0] = h


# ---------------------------------------------------------------------------
# Wrapper
# ---------------------------------------------------------------------------
_VMEM = pl.BlockSpec(memory_space=pltpu.MemorySpace.VMEM)
_CPARAMS = pltpu.CompilerParams(vmem_limit_bytes=32 * 1024 * 1024)


def eeg_model_3_forward(x, p):
    """x: (firstDim, secondDim, inputs, fftChannels) = (S, B, L, C1)."""
    S, B, L, C1 = x.shape
    N = S * B
    H = p["whh"].shape[0]
    O = p["wdec"].shape[1]

    # Metadata-only row-major reflatten: row n = s*B + b, column g = l*C1 + ci.
    x2d = x.reshape(N, L * C1)

    # Row permutation b*S+s <- s*B+b as a one-hot matrix (trace-time constant).
    m = jnp.arange(N, dtype=jnp.int32)
    pbs = jax.nn.one_hot((m % S) * B + (m // S), N, dtype=jnp.float32)

    args = (x2d, pbs,
            p["wc1"], p["sel1"], p["sel1T"], p["g1"], p["be1"],
            p["wc2"], p["sel2"], p["sel2T"], p["g2"], p["be2"],
            p["wbig"], p["bl"], p["sel3"], p["sel3T"], p["g3"], p["be3"],
            p["wih"], p["bih"], p["whh"], p["bhh"], p["wdec"], p["bdec"])

    y, h = pl.pallas_call(
        eeg3_kernel,
        out_shape=(jax.ShapeDtypeStruct((B, O, S), jnp.float32),   # (secondDim, outSize, firstDim)
                   jax.ShapeDtypeStruct((1, S, H), jnp.float32)),  # (1, firstDim, gruSize)
        in_specs=[_VMEM] * len(args),
        out_specs=(_VMEM, _VMEM),
        compiler_params=_CPARAMS,
    )(*args)
    return y, h


# ---------------------------------------------------------------------------
# Parameter construction / packing (torch layouts -> kernel layouts, done once)
# ---------------------------------------------------------------------------
def _banded_conv_weight(w, L, dtype):
    """w: (Cout, Cin, 3) torch Conv1d weight -> (L*Cin, L*Cout) banded matrix
    encoding Conv1d(kernel=3, stride=1, padding=1) as one matmul on (N, L*Cin) rows."""
    Cout, Cin, K = w.shape
    lp = jnp.arange(L)[:, None, None]
    lo = jnp.arange(L)[None, :, None]
    kk = jnp.arange(K)[None, None, :]
    band = (lp == lo + kk - (K // 2)).astype(jnp.float32)        # (Lin, Lout, K)
    big = jnp.einsum('plk,oik->piol', band, w)                   # (Lin, Cin, Lout, Cout)
    return big.reshape(L * Cin, L * Cout).astype(dtype)


def _block_linear_weight(wl, C2, dtype):
    """wl: (J, L) torch Linear weight -> (L*C2, C2*J) block-diagonal-over-channels
    matrix; output columns are in torch flatten order f = c*J + j."""
    J, L = wl.shape
    big = jnp.einsum('jl,cd->lcdj', wl, jnp.eye(C2, dtype=wl.dtype))
    return big.reshape(L * C2, C2 * J).astype(dtype)


def init_params(key, L, C1, C2, J, H, O, mxu_dtype=MXU_DTYPE):
    ks = jax.random.split(key, 16)
    s = 0.1
    nrm = lambda k, shape: s * jax.random.normal(k, shape, jnp.float32)

    # torch-layout tensors
    w1 = nrm(ks[0], (C1, C1, 3))            # Conv1d(C1->C1, k=3) weight
    w2 = nrm(ks[1], (C2, C1, 3))            # Conv1d(C1->C2, k=3) weight
    wl = nrm(ks[2], (J, L))                 # Linear(L->J) weight
    bl = nrm(ks[3], (J,))
    g1, be1 = 1.0 + nrm(ks[4], (C1,)), nrm(ks[5], (C1,))
    g2, be2 = 1.0 + nrm(ks[6], (C2,)), nrm(ks[7], (C2,))
    g3, be3 = 1.0 + nrm(ks[8], (C2,)), nrm(ks[9], (C2,))
    wih = nrm(ks[10], (3 * H, C2 * J))      # GRU weight_ih_l0 (gate order r,z,n)
    whh = nrm(ks[11], (3 * H, H))           # GRU weight_hh_l0
    bih, bhh = nrm(ks[12], (3 * H,)), nrm(ks[13], (3 * H,))
    wd, bd = nrm(ks[14], (O, H)), nrm(ks[15], (O,))
    # Conv1d biases omitted: exactly canceled by the training-mode BatchNorm that follows.

    eyeC1 = jnp.eye(C1, dtype=jnp.float32)
    eyeC2 = jnp.eye(C2, dtype=jnp.float32)
    sel1 = jnp.tile(eyeC1, (L, 1))          # column l*C1+co -> channel co
    sel2 = jnp.tile(eyeC2, (L, 1))          # column l*C2+c  -> channel c
    sel3 = jnp.repeat(eyeC2, J, axis=0)     # column c*J+j   -> channel c

    return {
        "wc1": _banded_conv_weight(w1, L, mxu_dtype),
        "sel1": sel1, "sel1T": sel1.T,
        "g1": jnp.tile(g1, L)[None, :], "be1": jnp.tile(be1, L)[None, :],
        "wc2": _banded_conv_weight(w2, L, mxu_dtype),
        "sel2": sel2, "sel2T": sel2.T,
        "g2": jnp.tile(g2, L)[None, :], "be2": jnp.tile(be2, L)[None, :],
        "wbig": _block_linear_weight(wl, C2, mxu_dtype),
        "bl": jnp.tile(bl, C2)[None, :],
        "sel3": sel3, "sel3T": sel3.T,
        "g3": jnp.repeat(g3, J)[None, :], "be3": jnp.repeat(be3, J)[None, :],
        "wih": wih.T.astype(mxu_dtype),     # (C2*J, 3H), rows f = c*J + j
        "bih": bih[None, :],
        "whh": whh.T,                       # (H, 3H), recurrence kept in f32
        "bhh": bhh[None, :],
        "wdec": wd.T,                       # (H, O)
        "bdec": bd[None, :],
    }


if __name__ == "__main__":
    # Small shapes consistent with EEG_Model_3 (scaled down from the defaults).
    S, B = 8, 4          # firstDim (GRU batch), secondDim (GRU time)
    L = 32               # inputs
    C1 = 16              # fftChannels
    C2 = 8               # comprFftChannels
    J = 16               # comprInputs
    H = 128              # gruSize
    O = 9                # outSize

    key = jax.random.PRNGKey(0)
    kx, kp = jax.random.split(key)
    x = jax.random.normal(kx, (S, B, L, C1), jnp.float32)
    params = init_params(kp, L, C1, C2, J, H, O)

    fwd = jax.jit(eeg_model_3_forward)
    x_out, h_new = fwd(x, params)
    jax.block_until_ready((x_out, h_new))

    assert x_out.shape == (B, O, S), x_out.shape
    assert h_new.shape == (1, S, H), h_new.shape
    assert bool(jnp.all(jnp.isfinite(x_out))) and bool(jnp.all(jnp.isfinite(h_new)))
    print("KERNEL_OK")
</pallas_src>

<mosaic_0001>
module attributes {stable_mosaic.version = 11 : i64} {
  func.func @eeg3_kernel(%arg0: memref<32x512xf32, #tpu.memory_space<vmem>>, %arg1: memref<32x32xf32, #tpu.memory_space<vmem>>, %arg2: memref<512x512xbf16, #tpu.memory_space<vmem>>, %arg3: memref<512x16xf32, #tpu.memory_space<vmem>>, %arg4: memref<16x512xf32, #tpu.memory_space<vmem>>, %arg5: memref<1x512xf32, #tpu.memory_space<vmem>>, %arg6: memref<1x512xf32, #tpu.memory_space<vmem>>, %arg7: memref<512x256xbf16, #tpu.memory_space<vmem>>, %arg8: memref<256x8xf32, #tpu.memory_space<vmem>>, %arg9: memref<8x256xf32, #tpu.memory_space<vmem>>, %arg10: memref<1x256xf32, #tpu.memory_space<vmem>>, %arg11: memref<1x256xf32, #tpu.memory_space<vmem>>, %arg12: memref<256x128xbf16, #tpu.memory_space<vmem>>, %arg13: memref<1x128xf32, #tpu.memory_space<vmem>>, %arg14: memref<128x8xf32, #tpu.memory_space<vmem>>, %arg15: memref<8x128xf32, #tpu.memory_space<vmem>>, %arg16: memref<1x128xf32, #tpu.memory_space<vmem>>, %arg17: memref<1x128xf32, #tpu.memory_space<vmem>>, %arg18: memref<128x384xbf16, #tpu.memory_space<vmem>>, %arg19: memref<1x384xf32, #tpu.memory_space<vmem>>, %arg20: memref<128x384xf32, #tpu.memory_space<vmem>>, %arg21: memref<1x384xf32, #tpu.memory_space<vmem>>, %arg22: memref<128x9xf32, #tpu.memory_space<vmem>>, %arg23: memref<1x9xf32, #tpu.memory_space<vmem>>, %arg24: memref<4x9x8xf32, #tpu.memory_space<vmem>>, %arg25: memref<1x8x128xf32, #tpu.memory_space<vmem>>) attributes {dimension_semantics = [], scalar_prefetch = 0 : i64, scratch_operands = 0 : i64, tpu.core_type = #tpu.core_type<tc>} {
    %c0 = arith.constant 0 : index
    %c0_0 = arith.constant 0 : index
    %0 = vector.load %arg0[%c0, %c0_0] : memref<32x512xf32, #tpu.memory_space<vmem>>, vector<32x512xf32>
    %c0_1 = arith.constant 0 : index
    %c0_2 = arith.constant 0 : index
    %1 = vector.load %arg2[%c0_1, %c0_2] : memref<512x512xbf16, #tpu.memory_space<vmem>>, vector<512x512xbf16>
    %2 = arith.truncf %0 : vector<32x512xf32> to vector<32x512xbf16>
    %cst = arith.constant dense<0.000000e+00> : vector<32x512xf32>
    %3 = tpu.matmul %2, %1, %cst {dimension_numbers = #tpu.dot_dimension_numbers<[1], [0], [0], [1], [0, 0, 1, 1], [], []>} : vector<32x512xbf16>, vector<512x512xbf16>, vector<32x512xf32> -> vector<32x512xf32>
    %cst_3 = arith.constant dense<0.000000e+00> : vector<512xf32>
    %4 = vector.multi_reduction <add>, %3, %cst_3 [0] : vector<32x512xf32> to vector<512xf32>
    %5 = vector.shape_cast %4 : vector<512xf32> to vector<1x512xf32>
    %c0_4 = arith.constant 0 : index
    %c0_5 = arith.constant 0 : index
    %6 = vector.load %arg3[%c0_4, %c0_5] : memref<512x16xf32, #tpu.memory_space<vmem>>, vector<512x16xf32>
    %cst_6 = arith.constant dense<0.000000e+00> : vector<1x16xf32>
    %7 = tpu.matmul %5, %6, %cst_6 {dimension_numbers = #tpu.dot_dimension_numbers<[1], [0], [0], [1], [0, 0, 1, 1], [], []>} : vector<1x512xf32>, vector<512x16xf32>, vector<1x16xf32> -> vector<1x16xf32>
    %cst_7 = arith.constant 9.765625E-4 : f32
    %8 = vector.broadcast %cst_7 : f32 to vector<1x16xf32>
    %9 = arith.mulf %7, %8 : vector<1x16xf32>
    %c0_8 = arith.constant 0 : index
    %c0_9 = arith.constant 0 : index
    %10 = vector.load %arg4[%c0_8, %c0_9] : memref<16x512xf32, #tpu.memory_space<vmem>>, vector<16x512xf32>
    %cst_10 = arith.constant dense<0.000000e+00> : vector<1x512xf32>
    %11 = tpu.matmul %9, %10, %cst_10 {dimension_numbers = #tpu.dot_dimension_numbers<[1], [0], [0], [1], [0, 0, 1, 1], [], []>} : vector<1x16xf32>, vector<16x512xf32>, vector<1x512xf32> -> vector<1x512xf32>
    %12 = vector.broadcast %11 : vector<1x512xf32> to vector<32x512xf32>
    %13 = arith.subf %3, %12 : vector<32x512xf32>
    %14 = arith.mulf %13, %13 : vector<32x512xf32>
    %cst_11 = arith.constant dense<0.000000e+00> : vector<512xf32>
    %15 = vector.multi_reduction <add>, %14, %cst_11 [0] : vector<32x512xf32> to vector<512xf32>
    %16 = vector.shape_cast %15 : vector<512xf32> to vector<1x512xf32>
    %c0_12 = arith.constant 0 : index
    %c0_13 = arith.constant 0 : index
    %17 = vector.load %arg3[%c0_12, %c0_13] : memref<512x16xf32, #tpu.memory_space<vmem>>, vector<512x16xf32>
    %cst_14 = arith.constant dense<0.000000e+00> : vector<1x16xf32>
    %18 = tpu.matmul %16, %17, %cst_14 {dimension_numbers = #tpu.dot_dimension_numbers<[1], [0], [0], [1], [0, 0, 1, 1], [], []>} : vector<1x512xf32>, vector<512x16xf32>, vector<1x16xf32> -> vector<1x16xf32>
    %cst_15 = arith.constant 9.765625E-4 : f32
    %19 = vector.broadcast %cst_15 : f32 to vector<1x16xf32>
    %20 = arith.mulf %18, %19 : vector<1x16xf32>
    %cst_16 = arith.constant 9.99999974E-6 : f32
    %21 = vector.broadcast %cst_16 : f32 to vector<1x16xf32>
    %22 = arith.addf %20, %21 : vector<1x16xf32>
    %23 = math.rsqrt %22 : vector<1x16xf32>
    %c0_17 = arith.constant 0 : index
    %c0_18 = arith.constant 0 : index
    %24 = vector.load %arg4[%c0_17, %c0_18] : memref<16x512xf32, #tpu.memory_space<vmem>>, vector<16x512xf32>
    %cst_19 = arith.constant dense<0.000000e+00> : vector<1x512xf32>
    %25 = tpu.matmul %23, %24, %cst_19 {dimension_numbers = #tpu.dot_dimension_numbers<[1], [0], [0], [1], [0, 0, 1, 1], [], []>} : vector<1x16xf32>, vector<16x512xf32>, vector<1x512xf32> -> vector<1x512xf32>
    %c0_20 = arith.constant 0 : index
    %c0_21 = arith.constant 0 : index
    %26 = vector.load %arg5[%c0_20, %c0_21] : memref<1x512xf32, #tpu.memory_space<vmem>>, vector<1x512xf32>
    %27 = arith.mulf %26, %25 : vector<1x512xf32>
    %28 = vector.broadcast %27 : vector<1x512xf32> to vector<32x512xf32>
    %29 = arith.mulf %13, %28 : vector<32x512xf32>
    %c0_22 = arith.constant 0 : index
    %c0_23 = arith.constant 0 : index
    %30 = vector.load %arg6[%c0_22, %c0_23] : memref<1x512xf32, #tpu.memory_space<vmem>>, vector<1x512xf32>
    %31 = vector.broadcast %30 : vector<1x512xf32> to vector<32x512xf32>
    %32 = arith.addf %29, %31 : vector<32x512xf32>
    %cst_24 = arith.constant 2.000000e-01 : f32
    %33 = vector.broadcast %cst_24 : f32 to vector<32x512xf32>
    %34 = arith.mulf %33, %32 : vector<32x512xf32>
    %35 = arith.maximumf %32, %34 : vector<32x512xf32>
    %c0_25 = arith.constant 0 : index
    %c0_26 = arith.constant 0 : index
    %36 = vector.load %arg7[%c0_25, %c0_26] : memref<512x256xbf16, #tpu.memory_space<vmem>>, vector<512x256xbf16>
    %37 = arith.truncf %35 : vector<32x512xf32> to vector<32x512xbf16>
    %cst_27 = arith.constant dense<0.000000e+00> : vector<32x256xf32>
    %38 = tpu.matmul %37, %36, %cst_27 {dimension_numbers = #tpu.dot_dimension_numbers<[1], [0], [0], [1], [0, 0, 1, 1], [], []>} : vector<32x512xbf16>, vector<512x256xbf16>, vector<32x256xf32> -> vector<32x256xf32>
    %cst_28 = arith.constant dense<0.000000e+00> : vector<256xf32>
    %39 = vector.multi_reduction <add>, %38, %cst_28 [0] : vector<32x256xf32> to vector<256xf32>
    %40 = vector.shape_cast %39 : vector<256xf32> to vector<1x256xf32>
    %c0_29 = arith.constant 0 : index
    %c0_30 = arith.constant 0 : index
    %41 = vector.load %arg8[%c0_29, %c0_30] : memref<256x8xf32, #tpu.memory_space<vmem>>, vector<256x8xf32>
    %cst_31 = arith.constant dense<0.000000e+00> : vector<1x8xf32>
    %42 = tpu.matmul %40, %41, %cst_31 {dimension_numbers = #tpu.dot_dimension_numbers<[1], [0], [0], [1], [0, 0, 1, 1], [], []>} : vector<1x256xf32>, vector<256x8xf32>, vector<1x8xf32> -> vector<1x8xf32>
    %cst_32 = arith.constant 9.765625E-4 : f32
    %43 = vector.broadcast %cst_32 : f32 to vector<1x8xf32>
    %44 = arith.mulf %42, %43 : vector<1x8xf32>
    %c0_33 = arith.constant 0 : index
    %c0_34 = arith.constant 0 : index
    %45 = vector.load %arg9[%c0_33, %c0_34] : memref<8x256xf32, #tpu.memory_space<vmem>>, vector<8x256xf32>
    %cst_35 = arith.constant dense<0.000000e+00> : vector<1x256xf32>
    %46 = tpu.matmul %44, %45, %cst_35 {dimension_numbers = #tpu.dot_dimension_numbers<[1], [0], [0], [1], [0, 0, 1, 1], [], []>} : vector<1x8xf32>, vector<8x256xf32>, vector<1x256xf32> -> vector<1x256xf32>
    %47 = vector.broadcast %46 : vector<1x256xf32> to vector<32x256xf32>
    %48 = arith.subf %38, %47 : vector<32x256xf32>
    %49 = arith.mulf %48, %48 : vector<32x256xf32>
    %cst_36 = arith.constant dense<0.000000e+00> : vector<256xf32>
    %50 = vector.multi_reduction <add>, %49, %cst_36 [0] : vector<32x256xf32> to vector<256xf32>
    %51 = vector.shape_cast %50 : vector<256xf32> to vector<1x256xf32>
    %c0_37 = arith.constant 0 : index
    %c0_38 = arith.constant 0 : index
    %52 = vector.load %arg8[%c0_37, %c0_38] : memref<256x8xf32, #tpu.memory_space<vmem>>, vector<256x8xf32>
    %cst_39 = arith.constant dense<0.000000e+00> : vector<1x8xf32>
    %53 = tpu.matmul %51, %52, %cst_39 {dimension_numbers = #tpu.dot_dimension_numbers<[1], [0], [0], [1], [0, 0, 1, 1], [], []>} : vector<1x256xf32>, vector<256x8xf32>, vector<1x8xf32> -> vector<1x8xf32>
    %cst_40 = arith.constant 9.765625E-4 : f32
    %54 = vector.broadcast %cst_40 : f32 to vector<1x8xf32>
    %55 = arith.mulf %53, %54 : vector<1x8xf32>
    %cst_41 = arith.constant 9.99999974E-6 : f32
    %56 = vector.broadcast %cst_41 : f32 to vector<1x8xf32>
    %57 = arith.addf %55, %56 : vector<1x8xf32>
    %58 = math.rsqrt %57 : vector<1x8xf32>
    %c0_42 = arith.constant 0 : index
    %c0_43 = arith.constant 0 : index
    %59 = vector.load %arg9[%c0_42, %c0_43] : memref<8x256xf32, #tpu.memory_space<vmem>>, vector<8x256xf32>
    %cst_44 = arith.constant dense<0.000000e+00> : vector<1x256xf32>
    %60 = tpu.matmul %58, %59, %cst_44 {dimension_numbers = #tpu.dot_dimension_numbers<[1], [0], [0], [1], [0, 0, 1, 1], [], []>} : vector<1x8xf32>, vector<8x256xf32>, vector<1x256xf32> -> vector<1x256xf32>
    %c0_45 = arith.constant 0 : index
    %c0_46 = arith.constant 0 : index
    %61 = vector.load %arg10[%c0_45, %c0_46] : memref<1x256xf32, #tpu.memory_space<vmem>>, vector<1x256xf32>
    %62 = arith.mulf %61, %60 : vector<1x256xf32>
    %63 = vector.broadcast %62 : vector<1x256xf32> to vector<32x256xf32>
    %64 = arith.mulf %48, %63 : vector<32x256xf32>
    %c0_47 = arith.constant 0 : index
    %c0_48 = arith.constant 0 : index
    %65 = vector.load %arg11[%c0_47, %c0_48] : memref<1x256xf32, #tpu.memory_space<vmem>>, vector<1x256xf32>
    %66 = vector.broadcast %65 : vector<1x256xf32> to vector<32x256xf32>
    %67 = arith.addf %64, %66 : vector<32x256xf32>
    %cst_49 = arith.constant 2.000000e-01 : f32
    %68 = vector.broadcast %cst_49 : f32 to vector<32x256xf32>
    %69 = arith.mulf %68, %67 : vector<32x256xf32>
    %70 = arith.maximumf %67, %69 : vector<32x256xf32>
    %c0_50 = arith.constant 0 : index
    %c0_51 = arith.constant 0 : index
    %71 = vector.load %arg12[%c0_50, %c0_51] : memref<256x128xbf16, #tpu.memory_space<vmem>>, vector<256x128xbf16>
    %72 = arith.truncf %70 : vector<32x256xf32> to vector<32x256xbf16>
    %cst_52 = arith.constant dense<0.000000e+00> : vector<32x128xf32>
    %73 = tpu.matmul %72, %71, %cst_52 {dimension_numbers = #tpu.dot_dimension_numbers<[1], [0], [0], [1], [0, 0, 1, 1], [], []>} : vector<32x256xbf16>, vector<256x128xbf16>, vector<32x128xf32> -> vector<32x128xf32>
    %c0_53 = arith.constant 0 : index
    %c0_54 = arith.constant 0 : index
    %74 = vector.load %arg13[%c0_53, %c0_54] : memref<1x128xf32, #tpu.memory_space<vmem>>, vector<1x128xf32>
    %75 = vector.broadcast %74 : vector<1x128xf32> to vector<32x128xf32>
    %76 = arith.addf %73, %75 : vector<32x128xf32>
    %cst_55 = arith.constant dense<0.000000e+00> : vector<128xf32>
    %77 = vector.multi_reduction <add>, %76, %cst_55 [0] : vector<32x128xf32> to vector<128xf32>
    %78 = vector.shape_cast %77 : vector<128xf32> to vector<1x128xf32>
    %c0_56 = arith.constant 0 : index
    %c0_57 = arith.constant 0 : index
    %79 = vector.load %arg14[%c0_56, %c0_57] : memref<128x8xf32, #tpu.memory_space<vmem>>, vector<128x8xf32>
    %cst_58 = arith.constant dense<0.000000e+00> : vector<1x8xf32>
    %80 = tpu.matmul %78, %79, %cst_58 {dimension_numbers = #tpu.dot_dimension_numbers<[1], [0], [0], [1], [0, 0, 1, 1], [], []>} : vector<1x128xf32>, vector<128x8xf32>, vector<1x8xf32> -> vector<1x8xf32>
    %cst_59 = arith.constant 0.001953125 : f32
    %81 = vector.broadcast %cst_59 : f32 to vector<1x8xf32>
    %82 = arith.mulf %80, %81 : vector<1x8xf32>
    %c0_60 = arith.constant 0 : index
    %c0_61 = arith.constant 0 : index
    %83 = vector.load %arg15[%c0_60, %c0_61] : memref<8x128xf32, #tpu.memory_space<vmem>>, vector<8x128xf32>
    %cst_62 = arith.constant dense<0.000000e+00> : vector<1x128xf32>
    %84 = tpu.matmul %82, %83, %cst_62 {dimension_numbers = #tpu.dot_dimension_numbers<[1], [0], [0], [1], [0, 0, 1, 1], [], []>} : vector<1x8xf32>, vector<8x128xf32>, vector<1x128xf32> -> vector<1x128xf32>
    %85 = vector.broadcast %84 : vector<1x128xf32> to vector<32x128xf32>
    %86 = arith.subf %76, %85 : vector<32x128xf32>
    %87 = arith.mulf %86, %86 : vector<32x128xf32>
    %cst_63 = arith.constant dense<0.000000e+00> : vector<128xf32>
    %88 = vector.multi_reduction <add>, %87, %cst_63 [0] : vector<32x128xf32> to vector<128xf32>
    %89 = vector.shape_cast %88 : vector<128xf32> to vector<1x128xf32>
    %c0_64 = arith.constant 0 : index
    %c0_65 = arith.constant 0 : index
    %90 = vector.load %arg14[%c0_64, %c0_65] : memref<128x8xf32, #tpu.memory_space<vmem>>, vector<128x8xf32>
    %cst_66 = arith.constant dense<0.000000e+00> : vector<1x8xf32>
    %91 = tpu.matmul %89, %90, %cst_66 {dimension_numbers = #tpu.dot_dimension_numbers<[1], [0], [0], [1], [0, 0, 1, 1], [], []>} : vector<1x128xf32>, vector<128x8xf32>, vector<1x8xf32> -> vector<1x8xf32>
    %cst_67 = arith.constant 0.001953125 : f32
    %92 = vector.broadcast %cst_67 : f32 to vector<1x8xf32>
    %93 = arith.mulf %91, %92 : vector<1x8xf32>
    %cst_68 = arith.constant 9.99999974E-6 : f32
    %94 = vector.broadcast %cst_68 : f32 to vector<1x8xf32>
    %95 = arith.addf %93, %94 : vector<1x8xf32>
    %96 = math.rsqrt %95 : vector<1x8xf32>
    %c0_69 = arith.constant 0 : index
    %c0_70 = arith.constant 0 : index
    %97 = vector.load %arg15[%c0_69, %c0_70] : memref<8x128xf32, #tpu.memory_space<vmem>>, vector<8x128xf32>
    %cst_71 = arith.constant dense<0.000000e+00> : vector<1x128xf32>
    %98 = tpu.matmul %96, %97, %cst_71 {dimension_numbers = #tpu.dot_dimension_numbers<[1], [0], [0], [1], [0, 0, 1, 1], [], []>} : vector<1x8xf32>, vector<8x128xf32>, vector<1x128xf32> -> vector<1x128xf32>
    %c0_72 = arith.constant 0 : index
    %c0_73 = arith.constant 0 : index
    %99 = vector.load %arg16[%c0_72, %c0_73] : memref<1x128xf32, #tpu.memory_space<vmem>>, vector<1x128xf32>
    %100 = arith.mulf %99, %98 : vector<1x128xf32>
    %101 = vector.broadcast %100 : vector<1x128xf32> to vector<32x128xf32>
    %102 = arith.mulf %86, %101 : vector<32x128xf32>
    %c0_74 = arith.constant 0 : index
    %c0_75 = arith.constant 0 : index
    %103 = vector.load %arg17[%c0_74, %c0_75] : memref<1x128xf32, #tpu.memory_space<vmem>>, vector<1x128xf32>
    %104 = vector.broadcast %103 : vector<1x128xf32> to vector<32x128xf32>
    %105 = arith.addf %102, %104 : vector<32x128xf32>
    %cst_76 = arith.constant 2.000000e-01 : f32
    %106 = vector.broadcast %cst_76 : f32 to vector<32x128xf32>
    %107 = arith.mulf %106, %105 : vector<32x128xf32>
    %108 = arith.maximumf %105, %107 : vector<32x128xf32>
    %c0_77 = arith.constant 0 : index
    %c0_78 = arith.constant 0 : index
    %109 = vector.load %arg1[%c0_77, %c0_78] : memref<32x32xf32, #tpu.memory_space<vmem>>, vector<32x32xf32>
    %cst_79 = arith.constant dense<0.000000e+00> : vector<32x128xf32>
    %110 = tpu.matmul %109, %108, %cst_79 {dimension_numbers = #tpu.dot_dimension_numbers<[1], [0], [0], [1], [0, 0, 1, 1], [], []>} : vector<32x32xf32>, vector<32x128xf32>, vector<32x128xf32> -> vector<32x128xf32>
    %c0_80 = arith.constant 0 : index
    %c0_81 = arith.constant 0 : index
    %111 = vector.load %arg18[%c0_80, %c0_81] : memref<128x384xbf16, #tpu.memory_space<vmem>>, vector<128x384xbf16>
    %112 = arith.truncf %110 : vector<32x128xf32> to vector<32x128xbf16>
    %cst_82 = arith.constant dense<0.000000e+00> : vector<32x384xf32>
    %113 = tpu.matmul %112, %111, %cst_82 {dimension_numbers = #tpu.dot_dimension_numbers<[1], [0], [0], [1], [0, 0, 1, 1], [], []>} : vector<32x128xbf16>, vector<128x384xbf16>, vector<32x384xf32> -> vector<32x384xf32>
    %c0_83 = arith.constant 0 : index
    %c0_84 = arith.constant 0 : index
    %114 = vector.load %arg19[%c0_83, %c0_84] : memref<1x384xf32, #tpu.memory_space<vmem>>, vector<1x384xf32>
    %115 = vector.broadcast %114 : vector<1x384xf32> to vector<32x384xf32>
    %116 = arith.addf %113, %115 : vector<32x384xf32>
    %c0_85 = arith.constant 0 : index
    %c0_86 = arith.constant 0 : index
    %117 = vector.load %arg20[%c0_85, %c0_86] : memref<128x384xf32, #tpu.memory_space<vmem>>, vector<128x384xf32>
    %c0_87 = arith.constant 0 : index
    %c0_88 = arith.constant 0 : index
    %118 = vector.load %arg21[%c0_87, %c0_88] : memref<1x384xf32, #tpu.memory_space<vmem>>, vector<1x384xf32>
    %cst_89 = arith.constant 0.000000e+00 : f32
    %119 = vector.broadcast %cst_89 : f32 to vector<8x128xf32>
    %120 = vector.extract_strided_slice %116 {offsets = [0, 0], sizes = [8, 384], strides = [1, 1]} : vector<32x384xf32> to vector<8x384xf32>
    %cst_90 = arith.constant dense<0.000000e+00> : vector<8x384xf32>
    %121 = tpu.matmul %119, %117, %cst_90 {dimension_numbers = #tpu.dot_dimension_numbers<[1], [0], [0], [1], [0, 0, 1, 1], [], []>} : vector<8x128xf32>, vector<128x384xf32>, vector<8x384xf32> -> vector<8x384xf32>
    %122 = vector.broadcast %118 : vector<1x384xf32> to vector<8x384xf32>
    %123 = arith.addf %121, %122 : vector<8x384xf32>
    %124 = vector.extract_strided_slice %120 {offsets = [0, 0], sizes = [8, 128], strides = [1, 1]} : vector<8x384xf32> to vector<8x128xf32>
    %125 = vector.extract_strided_slice %123 {offsets = [0, 0], sizes = [8, 128], strides = [1, 1]} : vector<8x384xf32> to vector<8x128xf32>
    %126 = arith.addf %124, %125 : vector<8x128xf32>
    %127 = arith.negf %126 : vector<8x128xf32>
    %128 = math.exp %127 : vector<8x128xf32>
    %cst_91 = arith.constant 1.000000e+00 : f32
    %129 = vector.broadcast %cst_91 : f32 to vector<8x128xf32>
    %130 = arith.addf %129, %128 : vector<8x128xf32>
    %131 = arith.divf %129, %130 : vector<8x128xf32>
    %132 = vector.extract_strided_slice %120 {offsets = [0, 128], sizes = [8, 128], strides = [1, 1]} : vector<8x384xf32> to vector<8x128xf32>
    %133 = vector.extract_strided_slice %123 {offsets = [0, 128], sizes = [8, 128], strides = [1, 1]} : vector<8x384xf32> to vector<8x128xf32>
    %134 = arith.addf %132, %133 : vector<8x128xf32>
    %135 = arith.negf %134 : vector<8x128xf32>
    %136 = math.exp %135 : vector<8x128xf32>
    %cst_92 = arith.constant 1.000000e+00 : f32
    %137 = vector.broadcast %cst_92 : f32 to vector<8x128xf32>
    %138 = arith.addf %137, %136 : vector<8x128xf32>
    %139 = arith.divf %137, %138 : vector<8x128xf32>
    %140 = vector.extract_strided_slice %120 {offsets = [0, 256], sizes = [8, 128], strides = [1, 1]} : vector<8x384xf32> to vector<8x128xf32>
    %141 = vector.extract_strided_slice %123 {offsets = [0, 256], sizes = [8, 128], strides = [1, 1]} : vector<8x384xf32> to vector<8x128xf32>
    %142 = arith.mulf %131, %141 : vector<8x128xf32>
    %143 = arith.addf %140, %142 : vector<8x128xf32>
    %144 = math.tanh %143 : vector<8x128xf32>
    %cst_93 = arith.constant 1.000000e+00 : f32
    %145 = vector.broadcast %cst_93 : f32 to vector<8x128xf32>
    %146 = arith.subf %145, %139 : vector<8x128xf32>
    %147 = arith.mulf %146, %144 : vector<8x128xf32>
    %148 = arith.mulf %139, %119 : vector<8x128xf32>
    %149 = arith.addf %147, %148 : vector<8x128xf32>
    %150 = vector.extract_strided_slice %116 {offsets = [8, 0], sizes = [8, 384], strides = [1, 1]} : vector<32x384xf32> to vector<8x384xf32>
    %cst_94 = arith.constant dense<0.000000e+00> : vector<8x384xf32>
    %151 = tpu.matmul %149, %117, %cst_94 {dimension_numbers = #tpu.dot_dimension_numbers<[1], [0], [0], [1], [0, 0, 1, 1], [], []>} : vector<8x128xf32>, vector<128x384xf32>, vector<8x384xf32> -> vector<8x384xf32>
    %152 = vector.broadcast %118 : vector<1x384xf32> to vector<8x384xf32>
    %153 = arith.addf %151, %152 : vector<8x384xf32>
    %154 = vector.extract_strided_slice %150 {offsets = [0, 0], sizes = [8, 128], strides = [1, 1]} : vector<8x384xf32> to vector<8x128xf32>
    %155 = vector.extract_strided_slice %153 {offsets = [0, 0], sizes = [8, 128], strides = [1, 1]} : vector<8x384xf32> to vector<8x128xf32>
    %156 = arith.addf %154, %155 : vector<8x128xf32>
    %157 = arith.negf %156 : vector<8x128xf32>
    %158 = math.exp %157 : vector<8x128xf32>
    %cst_95 = arith.constant 1.000000e+00 : f32
    %159 = vector.broadcast %cst_95 : f32 to vector<8x128xf32>
    %160 = arith.addf %159, %158 : vector<8x128xf32>
    %161 = arith.divf %159, %160 : vector<8x128xf32>
    %162 = vector.extract_strided_slice %150 {offsets = [0, 128], sizes = [8, 128], strides = [1, 1]} : vector<8x384xf32> to vector<8x128xf32>
    %163 = vector.extract_strided_slice %153 {offsets = [0, 128], sizes = [8, 128], strides = [1, 1]} : vector<8x384xf32> to vector<8x128xf32>
    %164 = arith.addf %162, %163 : vector<8x128xf32>
    %165 = arith.negf %164 : vector<8x128xf32>
    %166 = math.exp %165 : vector<8x128xf32>
    %cst_96 = arith.constant 1.000000e+00 : f32
    %167 = vector.broadcast %cst_96 : f32 to vector<8x128xf32>
    %168 = arith.addf %167, %166 : vector<8x128xf32>
    %169 = arith.divf %167, %168 : vector<8x128xf32>
    %170 = vector.extract_strided_slice %150 {offsets = [0, 256], sizes = [8, 128], strides = [1, 1]} : vector<8x384xf32> to vector<8x128xf32>
    %171 = vector.extract_strided_slice %153 {offsets = [0, 256], sizes = [8, 128], strides = [1, 1]} : vector<8x384xf32> to vector<8x128xf32>
    %172 = arith.mulf %161, %171 : vector<8x128xf32>
    %173 = arith.addf %170, %172 : vector<8x128xf32>
    %174 = math.tanh %173 : vector<8x128xf32>
    %cst_97 = arith.constant 1.000000e+00 : f32
    %175 = vector.broadcast %cst_97 : f32 to vector<8x128xf32>
    %176 = arith.subf %175, %169 : vector<8x128xf32>
    %177 = arith.mulf %176, %174 : vector<8x128xf32>
    %178 = arith.mulf %169, %149 : vector<8x128xf32>
    %179 = arith.addf %177, %178 : vector<8x128xf32>
    %180 = vector.extract_strided_slice %116 {offsets = [16, 0], sizes = [8, 384], strides = [1, 1]} : vector<32x384xf32> to vector<8x384xf32>
    %cst_98 = arith.constant dense<0.000000e+00> : vector<8x384xf32>
    %181 = tpu.matmul %179, %117, %cst_98 {dimension_numbers = #tpu.dot_dimension_numbers<[1], [0], [0], [1], [0, 0, 1, 1], [], []>} : vector<8x128xf32>, vector<128x384xf32>, vector<8x384xf32> -> vector<8x384xf32>
    %182 = vector.broadcast %118 : vector<1x384xf32> to vector<8x384xf32>
    %183 = arith.addf %181, %182 : vector<8x384xf32>
    %184 = vector.extract_strided_slice %180 {offsets = [0, 0], sizes = [8, 128], strides = [1, 1]} : vector<8x384xf32> to vector<8x128xf32>
    %185 = vector.extract_strided_slice %183 {offsets = [0, 0], sizes = [8, 128], strides = [1, 1]} : vector<8x384xf32> to vector<8x128xf32>
    %186 = arith.addf %184, %185 : vector<8x128xf32>
    %187 = arith.negf %186 : vector<8x128xf32>
    %188 = math.exp %187 : vector<8x128xf32>
    %cst_99 = arith.constant 1.000000e+00 : f32
    %189 = vector.broadcast %cst_99 : f32 to vector<8x128xf32>
    %190 = arith.addf %189, %188 : vector<8x128xf32>
    %191 = arith.divf %189, %190 : vector<8x128xf32>
    %192 = vector.extract_strided_slice %180 {offsets = [0, 128], sizes = [8, 128], strides = [1, 1]} : vector<8x384xf32> to vector<8x128xf32>
    %193 = vector.extract_strided_slice %183 {offsets = [0, 128], sizes = [8, 128], strides = [1, 1]} : vector<8x384xf32> to vector<8x128xf32>
    %194 = arith.addf %192, %193 : vector<8x128xf32>
    %195 = arith.negf %194 : vector<8x128xf32>
    %196 = math.exp %195 : vector<8x128xf32>
    %cst_100 = arith.constant 1.000000e+00 : f32
    %197 = vector.broadcast %cst_100 : f32 to vector<8x128xf32>
    %198 = arith.addf %197, %196 : vector<8x128xf32>
    %199 = arith.divf %197, %198 : vector<8x128xf32>
    %200 = vector.extract_strided_slice %180 {offsets = [0, 256], sizes = [8, 128], strides = [1, 1]} : vector<8x384xf32> to vector<8x128xf32>
    %201 = vector.extract_strided_slice %183 {offsets = [0, 256], sizes = [8, 128], strides = [1, 1]} : vector<8x384xf32> to vector<8x128xf32>
    %202 = arith.mulf %191, %201 : vector<8x128xf32>
    %203 = arith.addf %200, %202 : vector<8x128xf32>
    %204 = math.tanh %203 : vector<8x128xf32>
    %cst_101 = arith.constant 1.000000e+00 : f32
    %205 = vector.broadcast %cst_101 : f32 to vector<8x128xf32>
    %206 = arith.subf %205, %199 : vector<8x128xf32>
    %207 = arith.mulf %206, %204 : vector<8x128xf32>
    %208 = arith.mulf %199, %179 : vector<8x128xf32>
    %209 = arith.addf %207, %208 : vector<8x128xf32>
    %210 = vector.extract_strided_slice %116 {offsets = [24, 0], sizes = [8, 384], strides = [1, 1]} : vector<32x384xf32> to vector<8x384xf32>
    %cst_102 = arith.constant dense<0.000000e+00> : vector<8x384xf32>
    %211 = tpu.matmul %209, %117, %cst_102 {dimension_numbers = #tpu.dot_dimension_numbers<[1], [0], [0], [1], [0, 0, 1, 1], [], []>} : vector<8x128xf32>, vector<128x384xf32>, vector<8x384xf32> -> vector<8x384xf32>
    %212 = vector.broadcast %118 : vector<1x384xf32> to vector<8x384xf32>
    %213 = arith.addf %211, %212 : vector<8x384xf32>
    %214 = vector.extract_strided_slice %210 {offsets = [0, 0], sizes = [8, 128], strides = [1, 1]} : vector<8x384xf32> to vector<8x128xf32>
    %215 = vector.extract_strided_slice %213 {offsets = [0, 0], sizes = [8, 128], strides = [1, 1]} : vector<8x384xf32> to vector<8x128xf32>
    %216 = arith.addf %214, %215 : vector<8x128xf32>
    %217 = arith.negf %216 : vector<8x128xf32>
    %218 = math.exp %217 : vector<8x128xf32>
    %cst_103 = arith.constant 1.000000e+00 : f32
    %219 = vector.broadcast %cst_103 : f32 to vector<8x128xf32>
    %220 = arith.addf %219, %218 : vector<8x128xf32>
    %221 = arith.divf %219, %220 : vector<8x128xf32>
    %222 = vector.extract_strided_slice %210 {offsets = [0, 128], sizes = [8, 128], strides = [1, 1]} : vector<8x384xf32> to vector<8x128xf32>
    %223 = vector.extract_strided_slice %213 {offsets = [0, 128], sizes = [8, 128], strides = [1, 1]} : vector<8x384xf32> to vector<8x128xf32>
    %224 = arith.addf %222, %223 : vector<8x128xf32>
    %225 = arith.negf %224 : vector<8x128xf32>
    %226 = math.exp %225 : vector<8x128xf32>
    %cst_104 = arith.constant 1.000000e+00 : f32
    %227 = vector.broadcast %cst_104 : f32 to vector<8x128xf32>
    %228 = arith.addf %227, %226 : vector<8x128xf32>
    %229 = arith.divf %227, %228 : vector<8x128xf32>
    %230 = vector.extract_strided_slice %210 {offsets = [0, 256], sizes = [8, 128], strides = [1, 1]} : vector<8x384xf32> to vector<8x128xf32>
    %231 = vector.extract_strided_slice %213 {offsets = [0, 256], sizes = [8, 128], strides = [1, 1]} : vector<8x384xf32> to vector<8x128xf32>
    %232 = arith.mulf %221, %231 : vector<8x128xf32>
    %233 = arith.addf %230, %232 : vector<8x128xf32>
    %234 = math.tanh %233 : vector<8x128xf32>
    %cst_105 = arith.constant 1.000000e+00 : f32
    %235 = vector.broadcast %cst_105 : f32 to vector<8x128xf32>
    %236 = arith.subf %235, %229 : vector<8x128xf32>
    %237 = arith.mulf %236, %234 : vector<8x128xf32>
    %238 = arith.mulf %229, %209 : vector<8x128xf32>
    %239 = arith.addf %237, %238 : vector<8x128xf32>
    %240 = tpu.concatenate %149, %179, %209, %239 in 0 : vector<8x128xf32>, vector<8x128xf32>, vector<8x128xf32>, vector<8x128xf32> -> vector<32x128xf32>
    %c0_106 = arith.constant 0 : index
    %c0_107 = arith.constant 0 : index
    %241 = vector.load %arg22[%c0_106, %c0_107] : memref<128x9xf32, #tpu.memory_space<vmem>>, vector<128x9xf32>
    %cst_108 = arith.constant dense<0.000000e+00> : vector<32x9xf32>
    %242 = tpu.matmul %240, %241, %cst_108 {dimension_numbers = #tpu.dot_dimension_numbers<[1], [0], [0], [1], [0, 0, 1, 1], [], []>} : vector<32x128xf32>, vector<128x9xf32>, vector<32x9xf32> -> vector<32x9xf32>
    %c0_109 = arith.constant 0 : index
    %c0_110 = arith.constant 0 : index
    %243 = vector.load %arg23[%c0_109, %c0_110] : memref<1x9xf32, #tpu.memory_space<vmem>>, vector<1x9xf32>
    %244 = vector.broadcast %243 : vector<1x9xf32> to vector<32x9xf32>
    %245 = arith.addf %242, %244 : vector<32x9xf32>
    %246 = tpu.transpose %245, [1, 0] : vector<32x9xf32> -> vector<9x32xf32>
    %247 = vector.extract_strided_slice %246 {offsets = [0, 0], sizes = [9, 8], strides = [1, 1]} : vector<9x32xf32> to vector<9x8xf32>
    %c0_111 = arith.constant 0 : index
    %c0_112 = arith.constant 0 : index
    %c0_113 = arith.constant 0 : index
    %248 = vector.load %arg24[%c0_111, %c0_112, %c0_113] : memref<4x9x8xf32, #tpu.memory_space<vmem>>, vector<1x9x8xf32>
    %249 = vector.shape_cast %248 : vector<1x9x8xf32> to vector<9x8xf32>
    %250 = vector.shape_cast %247 : vector<9x8xf32> to vector<1x9x8xf32>
    tpu.vector_store %arg24[%c0_111, %c0_112, %c0_113], %250 {strides = array<i32>} : memref<4x9x8xf32, #tpu.memory_space<vmem>>, vector<1x9x8xf32>,
    %251 = vector.extract_strided_slice %246 {offsets = [0, 8], sizes = [9, 8], strides = [1, 1]} : vector<9x32xf32> to vector<9x8xf32>
    %c1 = arith.constant 1 : index
    %c0_114 = arith.constant 0 : index
    %c0_115 = arith.constant 0 : index
    %252 = vector.load %arg24[%c1, %c0_114, %c0_115] : memref<4x9x8xf32, #tpu.memory_space<vmem>>, vector<1x9x8xf32>
    %253 = vector.shape_cast %252 : vector<1x9x8xf32> to vector<9x8xf32>
    %254 = vector.shape_cast %251 : vector<9x8xf32> to vector<1x9x8xf32>
    tpu.vector_store %arg24[%c1, %c0_114, %c0_115], %254 {strides = array<i32>} : memref<4x9x8xf32, #tpu.memory_space<vmem>>, vector<1x9x8xf32>,
    %255 = vector.extract_strided_slice %246 {offsets = [0, 16], sizes = [9, 8], strides = [1, 1]} : vector<9x32xf32> to vector<9x8xf32>
    %c2 = arith.constant 2 : index
    %c0_116 = arith.constant 0 : index
    %c0_117 = arith.constant 0 : index
    %256 = vector.load %arg24[%c2, %c0_116, %c0_117] : memref<4x9x8xf32, #tpu.memory_space<vmem>>, vector<1x9x8xf32>
    %257 = vector.shape_cast %256 : vector<1x9x8xf32> to vector<9x8xf32>
    %258 = vector.shape_cast %255 : vector<9x8xf32> to vector<1x9x8xf32>
    tpu.vector_store %arg24[%c2, %c0_116, %c0_117], %258 {strides = array<i32>} : memref<4x9x8xf32, #tpu.memory_space<vmem>>, vector<1x9x8xf32>,
    %259 = vector.extract_strided_slice %246 {offsets = [0, 24], sizes = [9, 8], strides = [1, 1]} : vector<9x32xf32> to vector<9x8xf32>
    %c3 = arith.constant 3 : index
    %c0_118 = arith.constant 0 : index
    %c0_119 = arith.constant 0 : index
    %260 = vector.load %arg24[%c3, %c0_118, %c0_119] : memref<4x9x8xf32, #tpu.memory_space<vmem>>, vector<1x9x8xf32>
    %261 = vector.shape_cast %260 : vector<1x9x8xf32> to vector<9x8xf32>
    %262 = vector.shape_cast %259 : vector<9x8xf32> to vector<1x9x8xf32>
    tpu.vector_store %arg24[%c3, %c0_118, %c0_119], %262 {strides = array<i32>} : memref<4x9x8xf32, #tpu.memory_space<vmem>>, vector<1x9x8xf32>,
    %c0_120 = arith.constant 0 : index
    %c0_121 = arith.constant 0 : index
    %c0_122 = arith.constant 0 : index
    %263 = vector.load %arg25[%c0_120, %c0_121, %c0_122] : memref<1x8x128xf32, #tpu.memory_space<vmem>>, vector<1x8x128xf32>
    %264 = vector.shape_cast %263 : vector<1x8x128xf32> to vector<8x128xf32>
    %265 = vector.shape_cast %239 : vector<8x128xf32> to vector<1x8x128xf32>
    tpu.vector_store %arg25[%c0_120, %c0_121, %c0_122], %265 {strides = array<i32>} : memref<1x8x128xf32, #tpu.memory_space<vmem>>, vector<1x8x128xf32>,
    return
  }
}

</mosaic_0001>

<llo_original>
// kernel: eeg_model_3_forward.1
$region0: #{eeg_model_3_forward.1}
  #allocation0 [shape = 'u32[]', space=smem, size = 0x4, offset = 0x4, fixed_abs, tag = 'smem constant byte address 0x4 - core index']
  #allocation1 [shape = 'u32[144,128]{1,0:T(1,128)}', space=vmem, size = 0x12000, scoped, tag = 'internal scratch']
  %s0 = inlined_call_operand.vmem [shape: f32[32,512], index: 0, kind: input, shape index: {}]
  %s1 = inlined_call_operand.vmem [shape: f32[32,32], index: 1, kind: input, shape index: {}]
  %s2 = inlined_call_operand.vmem [shape: bf16[512,512], index: 2, kind: input, shape index: {}]
  %s3 = inlined_call_operand.vmem [shape: f32[512,16], index: 3, kind: input, shape index: {}]
  %s4 = inlined_call_operand.vmem [shape: f32[16,512], index: 4, kind: input, shape index: {}]
  %s5 = inlined_call_operand.vmem [shape: f32[1,512], index: 5, kind: input, shape index: {}]
  %s6 = inlined_call_operand.vmem [shape: f32[1,512], index: 6, kind: input, shape index: {}]
  %s7 = inlined_call_operand.vmem [shape: bf16[512,256], index: 7, kind: input, shape index: {}]
  %s8 = inlined_call_operand.vmem [shape: f32[256,8], index: 8, kind: input, shape index: {}]
  %s9 = inlined_call_operand.vmem [shape: f32[8,256], index: 9, kind: input, shape index: {}]
  %s10 = inlined_call_operand.vmem [shape: f32[1,256], index: 10, kind: input, shape index: {}]
  %s11 = inlined_call_operand.vmem [shape: f32[1,256], index: 11, kind: input, shape index: {}]
  %s12 = inlined_call_operand.vmem [shape: bf16[256,128], index: 12, kind: input, shape index: {}]
  %s13 = inlined_call_operand.vmem [shape: f32[1,128], index: 13, kind: input, shape index: {}]
  %s14 = inlined_call_operand.vmem [shape: f32[128,8], index: 14, kind: input, shape index: {}]
  %s15 = inlined_call_operand.vmem [shape: f32[8,128], index: 15, kind: input, shape index: {}]
  %s16 = inlined_call_operand.vmem [shape: f32[1,128], index: 16, kind: input, shape index: {}]
  %s17 = inlined_call_operand.vmem [shape: f32[1,128], index: 17, kind: input, shape index: {}]
  %s18 = inlined_call_operand.vmem [shape: bf16[128,384], index: 18, kind: input, shape index: {}]
  %s19 = inlined_call_operand.vmem [shape: f32[1,384], index: 19, kind: input, shape index: {}]
  %s20 = inlined_call_operand.vmem [shape: f32[128,384], index: 20, kind: input, shape index: {}]
  %s21 = inlined_call_operand.vmem [shape: f32[1,384], index: 21, kind: input, shape index: {}]
  %s22 = inlined_call_operand.vmem [shape: f32[128,9], index: 22, kind: input, shape index: {}]
  %s23 = inlined_call_operand.vmem [shape: f32[1,9], index: 23, kind: input, shape index: {}]
  %s24 = inlined_call_operand.vmem [shape: f32[4,9,8], index: 24, kind: output, shape index: {0}]
  %s25 = inlined_call_operand.hbm [shape: f32[1,8,128], index: 25, kind: output, shape index: {1}]
  %26 = xla_tuple %s24, %s25
  %s27 = sld [smem:[#allocation0]]
  $region114: #{eeg_model_3_forward.1} parent=0
    _
  %s29 = ssub.s32 1, %s27
  %s30 = scalar_select 0, %s29, %s27
  $region1: #{eeg_model_3_forward.1} parent=0
    #allocation2 [shape = 'u8[4096]{0}', space=vmem, size = 0x1000, scoped, tag = 'output window, operand 1, single buffered']
    #allocation3 [shape = 's32[1]{0}', space=sflag, size = 0x4, scoped, tag = 'scoped memory for eeg_model_3_forward.1']
    %31 = vsyncpa [#allocation3], 0
    // Predicated region
    $region2: #{eeg_model_3_forward.1} parent=1 // pred_check
      _
    $region3: #{eeg_model_3_forward.1} parent=1 // pred_check_branch
      %33 = sbr.rel (0) target = $region5
    $region4: #{eeg_model_3_forward.1} parent=1 // pred_region
      _
    $region5: #{eeg_model_3_forward.1} parent=1 // pred_fallthru
      _
    // Predicated region
    $region6: #{eeg_model_3_forward.1} parent=1 // pred_check
      _
    $region7: #{eeg_model_3_forward.1} parent=1 // pred_check_branch
      %35 = sbr.rel (0) target = $region9
    $region8: #{eeg_model_3_forward.1} parent=1 // pred_region
      _
    $region9: #{eeg_model_3_forward.1} parent=1 // pred_fallthru
      _
    // Predicated region
    $region10: #{eeg_model_3_forward.1} parent=1 // pred_check
      _
    $region11: #{eeg_model_3_forward.1} parent=1 // pred_check_branch
      %37 = sbr.rel (0) target = $region13
    $region12: #{eeg_model_3_forward.1} parent=1 // pred_region
      _
    $region13: #{eeg_model_3_forward.1} parent=1 // pred_fallthru
      _
    // Predicated region
    $region14: #{eeg_model_3_forward.1} parent=1 // pred_check
      _
    $region15: #{eeg_model_3_forward.1} parent=1 // pred_check_branch
      %39 = sbr.rel (0) target = $region17
    $region16: #{eeg_model_3_forward.1} parent=1 // pred_region
      _
    $region17: #{eeg_model_3_forward.1} parent=1 // pred_fallthru
      _
    // Predicated region
    $region18: #{eeg_model_3_forward.1} parent=1 // pred_check
      _
    $region19: #{eeg_model_3_forward.1} parent=1 // pred_check_branch
      %41 = sbr.rel (0) target = $region21
    $region20: #{eeg_model_3_forward.1} parent=1 // pred_region
      _
    $region21: #{eeg_model_3_forward.1} parent=1 // pred_fallthru
      _
    // Predicated region
    $region22: #{eeg_model_3_forward.1} parent=1 // pred_check
      _
    $region23: #{eeg_model_3_forward.1} parent=1 // pred_check_branch
      %43 = sbr.rel (0) target = $region25
    $region24: #{eeg_model_3_forward.1} parent=1 // pred_region
      _
    $region25: #{eeg_model_3_forward.1} parent=1 // pred_fallthru
      _
    // Predicated region
    $region26: #{eeg_model_3_forward.1} parent=1 // pred_check
      _
    $region27: #{eeg_model_3_forward.1} parent=1 // pred_check_branch
      %45 = sbr.rel (0) target = $region29
    $region28: #{eeg_model_3_forward.1} parent=1 // pred_region
      _
    $region29: #{eeg_model_3_forward.1} parent=1 // pred_fallthru
      _
    // Predicated region
    $region30: #{eeg_model_3_forward.1} parent=1 // pred_check
      _
    $region31: #{eeg_model_3_forward.1} parent=1 // pred_check_branch
      %47 = sbr.rel (0) target = $region33
    $region32: #{eeg_model_3_forward.1} parent=1 // pred_region
      _
    $region33: #{eeg_model_3_forward.1} parent=1 // pred_fallthru
      _
    // Predicated region
    $region34: #{eeg_model_3_forward.1} parent=1 // pred_check
      _
    $region35: #{eeg_model_3_forward.1} parent=1 // pred_check_branch
      %49 = sbr.rel (0) target = $region37
    $region36: #{eeg_model_3_forward.1} parent=1 // pred_region
      _
    $region37: #{eeg_model_3_forward.1} parent=1 // pred_fallthru
      _
    // Predicated region
    $region38: #{eeg_model_3_forward.1} parent=1 // pred_check
      _
    $region39: #{eeg_model_3_forward.1} parent=1 // pred_check_branch
      %51 = sbr.rel (0) target = $region41
    $region40: #{eeg_model_3_forward.1} parent=1 // pred_region
      _
    $region41: #{eeg_model_3_forward.1} parent=1 // pred_fallthru
      _
    // Predicated region
    $region42: #{eeg_model_3_forward.1} parent=1 // pred_check
      _
    $region43: #{eeg_model_3_forward.1} parent=1 // pred_check_branch
      %53 = sbr.rel (0) target = $region45
    $region44: #{eeg_model_3_forward.1} parent=1 // pred_region
      _
    $region45: #{eeg_model_3_forward.1} parent=1 // pred_fallthru
      _
    // Predicated region
    $region46: #{eeg_model_3_forward.1} parent=1 // pred_check
      _
    $region47: #{eeg_model_3_forward.1} parent=1 // pred_check_branch
      %55 = sbr.rel (0) target = $region49
    $region48: #{eeg_model_3_forward.1} parent=1 // pred_region
      _
    $region49: #{eeg_model_3_forward.1} parent=1 // pred_fallthru
      _
    // Predicated region
    $region50: #{eeg_model_3_forward.1} parent=1 // pred_check
      _
    $region51: #{eeg_model_3_forward.1} parent=1 // pred_check_branch
      %57 = sbr.rel (0) target = $region53
    $region52: #{eeg_model_3_forward.1} parent=1 // pred_region
      _
    $region53: #{eeg_model_3_forward.1} parent=1 // pred_fallthru
      _
    // Predicated region
    $region54: #{eeg_model_3_forward.1} parent=1 // pred_check
      _
    $region55: #{eeg_model_3_forward.1} parent=1 // pred_check_branch
      %59 = sbr.rel (0) target = $region57
    $region56: #{eeg_model_3_forward.1} parent=1 // pred_region
      _
    $region57: #{eeg_model_3_forward.1} parent=1 // pred_fallthru
      _
    // Predicated region
    $region58: #{eeg_model_3_forward.1} parent=1 // pred_check
      _
    $region59: #{eeg_model_3_forward.1} parent=1 // pred_check_branch
      %61 = sbr.rel (0) target = $region61
    $region60: #{eeg_model_3_forward.1} parent=1 // pred_region
      _
    $region61: #{eeg_model_3_forward.1} parent=1 // pred_fallthru
      _
    // Predicated region
    $region62: #{eeg_model_3_forward.1} parent=1 // pred_check
      _
    $region63: #{eeg_model_3_forward.1} parent=1 // pred_check_branch
      %63 = sbr.rel (0) target = $region65
    $region64: #{eeg_model_3_forward.1} parent=1 // pred_region
      _
    $region65: #{eeg_model_3_forward.1} parent=1 // pred_fallthru
      _
    // Predicated region
    $region66: #{eeg_model_3_forward.1} parent=1 // pred_check
      _
    $region67: #{eeg_model_3_forward.1} parent=1 // pred_check_branch
      %65 = sbr.rel (0) target = $region69
    $region68: #{eeg_model_3_forward.1} parent=1 // pred_region
      _
    $region69: #{eeg_model_3_forward.1} parent=1 // pred_fallthru
      _
    // Predicated region
    $region70: #{eeg_model_3_forward.1} parent=1 // pred_check
      _
    $region71: #{eeg_model_3_forward.1} parent=1 // pred_check_branch
      %67 = sbr.rel (0) target = $region73
    $region72: #{eeg_model_3_forward.1} parent=1 // pred_region
      _
    $region73: #{eeg_model_3_forward.1} parent=1 // pred_fallthru
      _
    // Predicated region
    $region74: #{eeg_model_3_forward.1} parent=1 // pred_check
      _
    $region75: #{eeg_model_3_forward.1} parent=1 // pred_check_branch
      %69 = sbr.rel (0) target = $region77
    $region76: #{eeg_model_3_forward.1} parent=1 // pred_region
      _
    $region77: #{eeg_model_3_forward.1} parent=1 // pred_fallthru
      _
    // Predicated region
    $region78: #{eeg_model_3_forward.1} parent=1 // pred_check
      _
    $region79: #{eeg_model_3_forward.1} parent=1 // pred_check_branch
      %71 = sbr.rel (0) target = $region81
    $region80: #{eeg_model_3_forward.1} parent=1 // pred_region
      _
    $region81: #{eeg_model_3_forward.1} parent=1 // pred_fallthru
      _
    // Predicated region
    $region82: #{eeg_model_3_forward.1} parent=1 // pred_check
      _
    $region83: #{eeg_model_3_forward.1} parent=1 // pred_check_branch
      %73 = sbr.rel (0) target = $region85
    $region84: #{eeg_model_3_forward.1} parent=1 // pred_region
      _
    $region85: #{eeg_model_3_forward.1} parent=1 // pred_fallthru
      _
    // Predicated region
    $region86: #{eeg_model_3_forward.1} parent=1 // pred_check
      _
    $region87: #{eeg_model_3_forward.1} parent=1 // pred_check_branch
      %75 = sbr.rel (0) target = $region89
    $region88: #{eeg_model_3_forward.1} parent=1 // pred_region
      _
    $region89: #{eeg_model_3_forward.1} parent=1 // pred_fallthru
      _
    // Predicated region
    $region90: #{eeg_model_3_forward.1} parent=1 // pred_check
      _
    $region91: #{eeg_model_3_forward.1} parent=1 // pred_check_branch
      %77 = sbr.rel (0) target = $region93
    $region92: #{eeg_model_3_forward.1} parent=1 // pred_region
      _
    $region93: #{eeg_model_3_forward.1} parent=1 // pred_fallthru
      _
    // Predicated region
    $region94: #{eeg_model_3_forward.1} parent=1 // pred_check
      _
    $region95: #{eeg_model_3_forward.1} parent=1 // pred_check_branch
      %79 = sbr.rel (0) target = $region97
    $region96: #{eeg_model_3_forward.1} parent=1 // pred_region
      _
    $region97: #{eeg_model_3_forward.1} parent=1 // pred_fallthru
      _
    %v81 = vld [vmem:[%s0] sm:$0xff]
    %v82 = vld [vmem:[%s0 + $0x8] sm:$0xff]
    %v83 = vld [vmem:[%s0 + $0x10] sm:$0xff]
    %v84 = vld [vmem:[%s0 + $0x18] sm:$0xff]
    %v85 = vld [vmem:[%s0 + $0x20] sm:$0xff]
    %v86 = vld [vmem:[%s0 + $0x28] sm:$0xff]
    %v87 = vld [vmem:[%s0 + $0x30] sm:$0xff]
    %v88 = vld [vmem:[%s0 + $0x38] sm:$0xff]
    %v89 = vld [vmem:[%s0 + $0x40] sm:$0xff]
    %v90 = vld [vmem:[%s0 + $0x48] sm:$0xff]
    %v91 = vld [vmem:[%s0 + $0x50] sm:$0xff]
    %v92 = vld [vmem:[%s0 + $0x58] sm:$0xff]
    %v93 = vld [vmem:[%s0 + $0x60] sm:$0xff]
    %v94 = vld [vmem:[%s0 + $0x68] sm:$0xff]
    %v95 = vld [vmem:[%s0 + $0x70] sm:$0xff]
    %v96 = vld [vmem:[%s0 + $0x78] sm:$0xff]
    %v97 = vld [vmem:[%s2] sm:$0xff]
    %v98 = vld [vmem:[%s2 + $0x8] sm:$0xff]
    %v99 = vld [vmem:[%s2 + $0x10] sm:$0xff]
    %v100 = vld [vmem:[%s2 + $0x18] sm:$0xff]
    %v101 = vld [vmem:[%s2 + $0x20] sm:$0xff]
    %v102 = vld [vmem:[%s2 + $0x28] sm:$0xff]
    %v103 = vld [vmem:[%s2 + $0x30] sm:$0xff]
    %v104 = vld [vmem:[%s2 + $0x38] sm:$0xff]
    %v105 = vld [vmem:[%s2 + $0x40] sm:$0xff]
    %v106 = vld [vmem:[%s2 + $0x48] sm:$0xff]
    %v107 = vld [vmem:[%s2 + $0x50] sm:$0xff]
    %v108 = vld [vmem:[%s2 + $0x58] sm:$0xff]
    %v109 = vld [vmem:[%s2 + $0x60] sm:$0xff]
    %v110 = vld [vmem:[%s2 + $0x68] sm:$0xff]
    %v111 = vld [vmem:[%s2 + $0x70] sm:$0xff]
    %v112 = vld [vmem:[%s2 + $0x78] sm:$0xff]
    %v113 = vld [vmem:[%s2 + $0x80] sm:$0xff]
    %v114 = vld [vmem:[%s2 + $0x88] sm:$0xff]
    %v115 = vld [vmem:[%s2 + $0x90] sm:$0xff]
    %v116 = vld [vmem:[%s2 + $0x98] sm:$0xff]
    %v117 = vld [vmem:[%s2 + $0xa0] sm:$0xff]
    %v118 = vld [vmem:[%s2 + $0xa8] sm:$0xff]
    %v119 = vld [vmem:[%s2 + $0xb0] sm:$0xff]
    %v120 = vld [vmem:[%s2 + $0xb8] sm:$0xff]
    %v121 = vld [vmem:[%s2 + $0xc0] sm:$0xff]
    %v122 = vld [vmem:[%s2 + $0xc8] sm:$0xff]
    %v123 = vld [vmem:[%s2 + $0xd0] sm:$0xff]
    %v124 = vld [vmem:[%s2 + $0xd8] sm:$0xff]
    %v125 = vld [vmem:[%s2 + $0xe0] sm:$0xff]
    %v126 = vld [vmem:[%s2 + $0xe8] sm:$0xff]
    %v127 = vld [vmem:[%s2 + $0xf0] sm:$0xff]
    %v128 = vld [vmem:[%s2 + $0xf8] sm:$0xff]
    %v129 = vld [vmem:[%s2 + $0x100] sm:$0xff]
    %v130 = vld [vmem:[%s2 + $0x108] sm:$0xff]
    %v131 = vld [vmem:[%s2 + $0x110] sm:$0xff]
    %v132 = vld [vmem:[%s2 + $0x118] sm:$0xff]
    %v133 = vld [vmem:[%s2 + $0x120] sm:$0xff]
    %v134 = vld [vmem:[%s2 + $0x128] sm:$0xff]
    %v135 = vld [vmem:[%s2 + $0x130] sm:$0xff]
    %v136 = vld [vmem:[%s2 + $0x138] sm:$0xff]
    %v137 = vld [vmem:[%s2 + $0x140] sm:$0xff]
    %v138 = vld [vmem:[%s2 + $0x148] sm:$0xff]
    %v139 = vld [vmem:[%s2 + $0x150] sm:$0xff]
    %v140 = vld [vmem:[%s2 + $0x158] sm:$0xff]
    %v141 = vld [vmem:[%s2 + $0x160] sm:$0xff]
    %v142 = vld [vmem:[%s2 + $0x168] sm:$0xff]
    %v143 = vld [vmem:[%s2 + $0x170] sm:$0xff]
    %v144 = vld [vmem:[%s2 + $0x178] sm:$0xff]
    %v145 = vld [vmem:[%s2 + $0x180] sm:$0xff]
    %v146 = vld [vmem:[%s2 + $0x188] sm:$0xff]
    %v147 = vld [vmem:[%s2 + $0x190] sm:$0xff]
    %v148 = vld [vmem:[%s2 + $0x198] sm:$0xff]
    %v149 = vld [vmem:[%s2 + $0x1a0] sm:$0xff]
    %v150 = vld [vmem:[%s2 + $0x1a8] sm:$0xff]
    %v151 = vld [vmem:[%s2 + $0x1b0] sm:$0xff]
    %v152 = vld [vmem:[%s2 + $0x1b8] sm:$0xff]
    %v153 = vld [vmem:[%s2 + $0x1c0] sm:$0xff]
    %v154 = vld [vmem:[%s2 + $0x1c8] sm:$0xff]
    %v155 = vld [vmem:[%s2 + $0x1d0] sm:$0xff]
    %v156 = vld [vmem:[%s2 + $0x1d8] sm:$0xff]
    %v157 = vld [vmem:[%s2 + $0x1e0] sm:$0xff]
    %v158 = vld [vmem:[%s2 + $0x1e8] sm:$0xff]
    %v159 = vld [vmem:[%s2 + $0x1f0] sm:$0xff]
    %v160 = vld [vmem:[%s2 + $0x1f8] sm:$0xff]
    %v161 = vld [vmem:[%s2 + $0x200] sm:$0xff]
    %v162 = vld [vmem:[%s2 + $0x208] sm:$0xff]
    %v163 = vld [vmem:[%s2 + $0x210] sm:$0xff]
    %v164 = vld [vmem:[%s2 + $0x218] sm:$0xff]
    %v165 = vld [vmem:[%s2 + $0x220] sm:$0xff]
    %v166 = vld [vmem:[%s2 + $0x228] sm:$0xff]
    %v167 = vld [vmem:[%s2 + $0x230] sm:$0xff]
    %v168 = vld [vmem:[%s2 + $0x238] sm:$0xff]
    %v169 = vld [vmem:[%s2 + $0x240] sm:$0xff]
    %v170 = vld [vmem:[%s2 + $0x248] sm:$0xff]
    %v171 = vld [vmem:[%s2 + $0x250] sm:$0xff]
    %v172 = vld [vmem:[%s2 + $0x258] sm:$0xff]
    %v173 = vld [vmem:[%s2 + $0x260] sm:$0xff]
    %v174 = vld [vmem:[%s2 + $0x268] sm:$0xff]
    %v175 = vld [vmem:[%s2 + $0x270] sm:$0xff]
    %v176 = vld [vmem:[%s2 + $0x278] sm:$0xff]
    %v177 = vld [vmem:[%s2 + $0x280] sm:$0xff]
    %v178 = vld [vmem:[%s2 + $0x288] sm:$0xff]
    %v179 = vld [vmem:[%s2 + $0x290] sm:$0xff]
    %v180 = vld [vmem:[%s2 + $0x298] sm:$0xff]
    %v181 = vld [vmem:[%s2 + $0x2a0] sm:$0xff]
    %v182 = vld [vmem:[%s2 + $0x2a8] sm:$0xff]
    %v183 = vld [vmem:[%s2 + $0x2b0] sm:$0xff]
    %v184 = vld [vmem:[%s2 + $0x2b8] sm:$0xff]
    %v185 = vld [vmem:[%s2 + $0x2c0] sm:$0xff]
    %v186 = vld [vmem:[%s2 + $0x2c8] sm:$0xff]
    %v187 = vld [vmem:[%s2 + $0x2d0] sm:$0xff]
    %v188 = vld [vmem:[%s2 + $0x2d8] sm:$0xff]
    %v189 = vld [vmem:[%s2 + $0x2e0] sm:$0xff]
    %v190 = vld [vmem:[%s2 + $0x2e8] sm:$0xff]
    %v191 = vld [vmem:[%s2 + $0x2f0] sm:$0xff]
    %v192 = vld [vmem:[%s2 + $0x2f8] sm:$0xff]
    %v193 = vld [vmem:[%s2 + $0x300] sm:$0xff]
    %v194 = vld [vmem:[%s2 + $0x308] sm:$0xff]
    %v195 = vld [vmem:[%s2 + $0x310] sm:$0xff]
    %v196 = vld [vmem:[%s2 + $0x318] sm:$0xff]
    %v197 = vld [vmem:[%s2 + $0x320] sm:$0xff]
    %v198 = vld [vmem:[%s2 + $0x328] sm:$0xff]
    %v199 = vld [vmem:[%s2 + $0x330] sm:$0xff]
    %v200 = vld [vmem:[%s2 + $0x338] sm:$0xff]
    %v201 = vld [vmem:[%s2 + $0x340] sm:$0xff]
    %v202 = vld [vmem:[%s2 + $0x348] sm:$0xff]
    %v203 = vld [vmem:[%s2 + $0x350] sm:$0xff]
    %v204 = vld [vmem:[%s2 + $0x358] sm:$0xff]
    %v205 = vld [vmem:[%s2 + $0x360] sm:$0xff]
    %v206 = vld [vmem:[%s2 + $0x368] sm:$0xff]
    %v207 = vld [vmem:[%s2 + $0x370] sm:$0xff]
    %v208 = vld [vmem:[%s2 + $0x378] sm:$0xff]
    %v209 = vld [vmem:[%s2 + $0x380] sm:$0xff]
    %v210 = vld [vmem:[%s2 + $0x388] sm:$0xff]
    %v211 = vld [vmem:[%s2 + $0x390] sm:$0xff]
    %v212 = vld [vmem:[%s2 + $0x398] sm:$0xff]
    %v213 = vld [vmem:[%s2 + $0x3a0] sm:$0xff]
    %v214 = vld [vmem:[%s2 + $0x3a8] sm:$0xff]
    %v215 = vld [vmem:[%s2 + $0x3b0] sm:$0xff]
    %v216 = vld [vmem:[%s2 + $0x3b8] sm:$0xff]
    %v217 = vld [vmem:[%s2 + $0x3c0] sm:$0xff]
    %v218 = vld [vmem:[%s2 + $0x3c8] sm:$0xff]
    %v219 = vld [vmem:[%s2 + $0x3d0] sm:$0xff]
    %v220 = vld [vmem:[%s2 + $0x3d8] sm:$0xff]
    %v221 = vld [vmem:[%s2 + $0x3e0] sm:$0xff]
    %v222 = vld [vmem:[%s2 + $0x3e8] sm:$0xff]
    %v223 = vld [vmem:[%s2 + $0x3f0] sm:$0xff]
    %v224 = vld [vmem:[%s2 + $0x3f8] sm:$0xff]
    %v225 = vpack.c.bf16 %v85, %v81
    %v226 = vpack.c.bf16 %v86, %v82
    %v227 = vpack.c.bf16 %v87, %v83
    %v228 = vpack.c.bf16 %v88, %v84
    %v229 = vpack.c.bf16 %v93, %v89
    %v230 = vpack.c.bf16 %v94, %v90
    %v231 = vpack.c.bf16 %v95, %v91
    %v232 = vpack.c.bf16 %v96, %v92
    %v361 = vunpack.c.l.b16 %v97
    %v362 = vunpack.c.h.b16 %v97
    %v363 = vunpack.c.l.b16 %v98
    %v364 = vunpack.c.h.b16 %v98
    %v365 = vunpack.c.l.b16 %v99
    %v366 = vunpack.c.h.b16 %v99
    %v367 = vunpack.c.l.b16 %v100
    %v368 = vunpack.c.h.b16 %v100
    %v369 = vunpack.c.l.b16 %v101
    %v370 = vunpack.c.h.b16 %v101
    %v371 = vunpack.c.l.b16 %v102
    %v372 = vunpack.c.h.b16 %v102
    %v373 = vunpack.c.l.b16 %v103
    %v374 = vunpack.c.h.b16 %v103
    %v375 = vunpack.c.l.b16 %v104
    %v376 = vunpack.c.h.b16 %v104
    %v377 = vunpack.c.l.b16 %v105
    %v378 = vunpack.c.h.b16 %v105
    %v379 = vunpack.c.l.b16 %v106
    %v380 = vunpack.c.h.b16 %v106
    %v381 = vunpack.c.l.b16 %v107
    %v382 = vunpack.c.h.b16 %v107
    %v383 = vunpack.c.l.b16 %v108
    %v384 = vunpack.c.h.b16 %v108
    %v385 = vunpack.c.l.b16 %v109
    %v386 = vunpack.c.h.b16 %v109
    %v387 = vunpack.c.l.b16 %v110
    %v388 = vunpack.c.h.b16 %v110
    %v389 = vunpack.c.l.b16 %v111
    %v390 = vunpack.c.h.b16 %v111
    %v391 = vunpack.c.l.b16 %v112
    %v392 = vunpack.c.h.b16 %v112
    %v393 = vunpack.c.l.b16 %v113
    %v394 = vunpack.c.h.b16 %v113
    %v395 = vunpack.c.l.b16 %v114
    %v396 = vunpack.c.h.b16 %v114
    %v397 = vunpack.c.l.b16 %v115
    %v398 = vunpack.c.h.b16 %v115
    %v399 = vunpack.c.l.b16 %v116
    %v400 = vunpack.c.h.b16 %v116
    %v401 = vunpack.c.l.b16 %v117
    %v402 = vunpack.c.h.b16 %v117
    %v403 = vunpack.c.l.b16 %v118
    %v404 = vunpack.c.h.b16 %v118
    %v405 = vunpack.c.l.b16 %v119
    %v406 = vunpack.c.h.b16 %v119
    %v407 = vunpack.c.l.b16 %v120
    %v408 = vunpack.c.h.b16 %v120
    %v409 = vunpack.c.l.b16 %v121
    %v410 = vunpack.c.h.b16 %v121
    %v411 = vunpack.c.l.b16 %v122
    %v412 = vunpack.c.h.b16 %v122
    %v413 = vunpack.c.l.b16 %v123
    %v414 = vunpack.c.h.b16 %v123
    %v415 = vunpack.c.l.b16 %v124
    %v416 = vunpack.c.h.b16 %v124
    %v417 = vunpack.c.l.b16 %v125
    %v418 = vunpack.c.h.b16 %v125
    %v419 = vunpack.c.l.b16 %v126
    %v420 = vunpack.c.h.b16 %v126
    %v421 = vunpack.c.l.b16 %v127
    %v422 = vunpack.c.h.b16 %v127
    %v423 = vunpack.c.l.b16 %v128
    %v424 = vunpack.c.h.b16 %v128
    %v425 = vunpack.c.l.b16 %v129
    %v426 = vunpack.c.h.b16 %v129
    %v427 = vunpack.c.l.b16 %v130
    %v428 = vunpack.c.h.b16 %v130
    %v429 = vunpack.c.l.b16 %v131
    %v430 = vunpack.c.h.b16 %v131
    %v431 = vunpack.c.l.b16 %v132
    %v432 = vunpack.c.h.b16 %v132
    %v433 = vunpack.c.l.b16 %v133
    %v434 = vunpack.c.h.b16 %v133
    %v435 = vunpack.c.l.b16 %v134
    %v436 = vunpack.c.h.b16 %v134
    %v437 = vunpack.c.l.b16 %v135
    %v438 = vunpack.c.h.b16 %v135
    %v439 = vunpack.c.l.b16 %v136
    %v440 = vunpack.c.h.b16 %v136
    %v441 = vunpack.c.l.b16 %v137
    %v442 = vunpack.c.h.b16 %v137
    %v443 = vunpack.c.l.b16 %v138
    %v444 = vunpack.c.h.b16 %v138
    %v445 = vunpack.c.l.b16 %v139
    %v446 = vunpack.c.h.b16 %v139
    %v447 = vunpack.c.l.b16 %v140
    %v448 = vunpack.c.h.b16 %v140
    %v449 = vunpack.c.l.b16 %v141
    %v450 = vunpack.c.h.b16 %v141
    %v451 = vunpack.c.l.b16 %v142
    %v452 = vunpack.c.h.b16 %v142
    %v453 = vunpack.c.l.b16 %v143
    %v454 = vunpack.c.h.b16 %v143
    %v455 = vunpack.c.l.b16 %v144
    %v456 = vunpack.c.h.b16 %v144
    %v457 = vunpack.c.l.b16 %v145
    %v458 = vunpack.c.h.b16 %v145
    %v459 = vunpack.c.l.b16 %v146
    %v460 = vunpack.c.h.b16 %v146
    %v461 = vunpack.c.l.b16 %v147
    %v462 = vunpack.c.h.b16 %v147
    %v463 = vunpack.c.l.b16 %v148
    %v464 = vunpack.c.h.b16 %v148
    %v465 = vunpack.c.l.b16 %v149
    %v466 = vunpack.c.h.b16 %v149
    %v467 = vunpack.c.l.b16 %v150
    %v468 = vunpack.c.h.b16 %v150
    %v469 = vunpack.c.l.b16 %v151
    %v470 = vunpack.c.h.b16 %v151
    %v471 = vunpack.c.l.b16 %v152
    %v472 = vunpack.c.h.b16 %v152
    %v473 = vunpack.c.l.b16 %v153
    %v474 = vunpack.c.h.b16 %v153
    %v475 = vunpack.c.l.b16 %v154
    %v476 = vunpack.c.h.b16 %v154
    %v477 = vunpack.c.l.b16 %v155
    %v478 = vunpack.c.h.b16 %v155
    %v479 = vunpack.c.l.b16 %v156
    %v480 = vunpack.c.h.b16 %v156
    %v481 = vunpack.c.l.b16 %v157
    %v482 = vunpack.c.h.b16 %v157
    %v483 = vunpack.c.l.b16 %v158
    %v484 = vunpack.c.h.b16 %v158
    %v485 = vunpack.c.l.b16 %v159
    %v486 = vunpack.c.h.b16 %v159
    %v487 = vunpack.c.l.b16 %v160
    %v488 = vunpack.c.h.b16 %v160
    %v489 = vunpack.c.l.b16 %v161
    %v490 = vunpack.c.h.b16 %v161
    %v491 = vunpack.c.l.b16 %v162
    %v492 = vunpack.c.h.b16 %v162
    %v493 = vunpack.c.l.b16 %v163
    %v494 = vunpack.c.h.b16 %v163
    %v495 = vunpack.c.l.b16 %v164
    %v496 = vunpack.c.h.b16 %v164
    %v497 = vunpack.c.l.b16 %v165
    %v498 = vunpack.c.h.b16 %v165
    %v499 = vunpack.c.l.b16 %v166
    %v500 = vunpack.c.h.b16 %v166
    %v501 = vunpack.c.l.b16 %v167
    %v502 = vunpack.c.h.b16 %v167
    %v503 = vunpack.c.l.b16 %v168
    %v504 = vunpack.c.h.b16 %v168
    %v505 = vunpack.c.l.b16 %v169
    %v506 = vunpack.c.h.b16 %v169
    %v507 = vunpack.c.l.b16 %v170
    %v508 = vunpack.c.h.b16 %v170
    %v509 = vunpack.c.l.b16 %v171
    %v510 = vunpack.c.h.b16 %v171
    %v511 = vunpack.c.l.b16 %v172
    %v512 = vunpack.c.h.b16 %v172
    %v513 = vunpack.c.l.b16 %v173
    %v514 = vunpack.c.h.b16 %v173
    %v515 = vunpack.c.l.b16 %v174
    %v516 = vunpack.c.h.b16 %v174
    %v517 = vunpack.c.l.b16 %v175
    %v518 = vunpack.c.h.b16 %v175
    %v519 = vunpack.c.l.b16 %v176
    %v520 = vunpack.c.h.b16 %v176
    %v521 = vunpack.c.l.b16 %v177
    %v522 = vunpack.c.h.b16 %v177
    %v523 = vunpack.c.l.b16 %v178
    %v524 = vunpack.c.h.b16 %v178
    %v525 = vunpack.c.l.b16 %v179
    %v526 = vunpack.c.h.b16 %v179
    %v527 = vunpack.c.l.b16 %v180
    %v528 = vunpack.c.h.b16 %v180
    %v529 = vunpack.c.l.b16 %v181
    %v530 = vunpack.c.h.b16 %v181
    %v531 = vunpack.c.l.b16 %v182
    %v532 = vunpack.c.h.b16 %v182
    %v533 = vunpack.c.l.b16 %v183
    %v534 = vunpack.c.h.b16 %v183
    %v535 = vunpack.c.l.b16 %v184
    %v536 = vunpack.c.h.b16 %v184
    %v537 = vunpack.c.l.b16 %v185
    %v538 = vunpack.c.h.b16 %v185
    %v539 = vunpack.c.l.b16 %v186
    %v540 = vunpack.c.h.b16 %v186
    %v541 = vunpack.c.l.b16 %v187
    %v542 = vunpack.c.h.b16 %v187
    %v543 = vunpack.c.l.b16 %v188
    %v544 = vunpack.c.h.b16 %v188
    %v545 = vunpack.c.l.b16 %v189
    %v546 = vunpack.c.h.b16 %v189
    %v547 = vunpack.c.l.b16 %v190
    %v548 = vunpack.c.h.b16 %v190
    %v549 = vunpack.c.l.b16 %v191
    %v550 = vunpack.c.h.b16 %v191
    %v551 = vunpack.c.l.b16 %v192
    %v552 = vunpack.c.h.b16 %v192
    %v553 = vunpack.c.l.b16 %v193
    %v554 = vunpack.c.h.b16 %v193
    %v555 = vunpack.c.l.b16 %v194
    %v556 = vunpack.c.h.b16 %v194
    %v557 = vunpack.c.l.b16 %v195
    %v558 = vunpack.c.h.b16 %v195
    %v559 = vunpack.c.l.b16 %v196
    %v560 = vunpack.c.h.b16 %v196
    %v561 = vunpack.c.l.b16 %v197
    %v562 = vunpack.c.h.b16 %v197
    %v563 = vunpack.c.l.b16 %v198
    %v564 = vunpack.c.h.b16 %v198
    %v565 = vunpack.c.l.b16 %v199
    %v566 = vunpack.c.h.b16 %v199
    %v567 = vunpack.c.l.b16 %v200
    %v568 = vunpack.c.h.b16 %v200
    %v569 = vunpack.c.l.b16 %v201
    %v570 = vunpack.c.h.b16 %v201
    %v571 = vunpack.c.l.b16 %v202
    %v572 = vunpack.c.h.b16 %v202
    %v573 = vunpack.c.l.b16 %v203
    %v574 = vunpack.c.h.b16 %v203
    %v575 = vunpack.c.l.b16 %v204
    %v576 = vunpack.c.h.b16 %v204
    %v577 = vunpack.c.l.b16 %v205
    %v578 = vunpack.c.h.b16 %v205
    %v579 = vunpack.c.l.b16 %v206
    %v580 = vunpack.c.h.b16 %v206
    %v581 = vunpack.c.l.b16 %v207
    %v582 = vunpack.c.h.b16 %v207
    %v583 = vunpack.c.l.b16 %v208
    %v584 = vunpack.c.h.b16 %v208
    %v585 = vunpack.c.l.b16 %v209
    %v586 = vunpack.c.h.b16 %v209
    %v587 = vunpack.c.l.b16 %v210
    %v588 = vunpack.c.h.b16 %v210
    %v589 = vunpack.c.l.b16 %v211
    %v590 = vunpack.c.h.b16 %v211
    %v591 = vunpack.c.l.b16 %v212
    %v592 = vunpack.c.h.b16 %v212
    %v593 = vunpack.c.l.b16 %v213
    %v594 = vunpack.c.h.b16 %v213
    %v595 = vunpack.c.l.b16 %v214
    %v596 = vunpack.c.h.b16 %v214
    %v597 = vunpack.c.l.b16 %v215
    %v598 = vunpack.c.h.b16 %v215
    %v599 = vunpack.c.l.b16 %v216
    %v600 = vunpack.c.h.b16 %v216
    %v601 = vunpack.c.l.b16 %v217
    %v602 = vunpack.c.h.b16 %v217
    %v603 = vunpack.c.l.b16 %v218
    %v604 = vunpack.c.h.b16 %v218
    %v605 = vunpack.c.l.b16 %v219
    %v606 = vunpack.c.h.b16 %v219
    %v607 = vunpack.c.l.b16 %v220
    %v608 = vunpack.c.h.b16 %v220
    %v609 = vunpack.c.l.b16 %v221
    %v610 = vunpack.c.h.b16 %v221
    %v611 = vunpack.c.l.b16 %v222
    %v612 = vunpack.c.h.b16 %v222
    %v613 = vunpack.c.l.b16 %v223
    %v614 = vunpack.c.h.b16 %v223
    %v615 = vunpack.c.l.b16 %v224
    %v616 = vunpack.c.h.b16 %v224
    %v617 = vpack.c.b16 %v365, %v361
    %v618 = vpack.c.b16 %v366, %v362
    %v619 = vpack.c.b16 %v367, %v363
    %v620 = vpack.c.b16 %v368, %v364
    %v621 = vpack.c.b16 %v373, %v369
    %v622 = vpack.c.b16 %v374, %v370
    %v623 = vpack.c.b16 %v375, %v371
    %v624 = vpack.c.b16 %v376, %v372
    %v625 = vpack.c.b16 %v381, %v377
    %v626 = vpack.c.b16 %v382, %v378
    %v627 = vpack.c.b16 %v383, %v379
    %v628 = vpack.c.b16 %v384, %v380
    %v629 = vpack.c.b16 %v389, %v385
    %v630 = vpack.c.b16 %v390, %v386
    %v631 = vpack.c.b16 %v391, %v387
    %v632 = vpack.c.b16 %v392, %v388
    %v633 = vpack.c.b16 %v397, %v393
    %v634 = vpack.c.b16 %v398, %v394
    %v635 = vpack.c.b16 %v399, %v395
    %v636 = vpack.c.b16 %v400, %v396
    %v637 = vpack.c.b16 %v405, %v401
    %v638 = vpack.c.b16 %v406, %v402
    %v639 = vpack.c.b16 %v407, %v403
    %v640 = vpack.c.b16 %v408, %v404
    %v641 = vpack.c.b16 %v413, %v409
    %v642 = vpack.c.b16 %v414, %v410
    %v643 = vpack.c.b16 %v415, %v411
    %v644 = vpack.c.b16 %v416, %v412
    %v645 = vpack.c.b16 %v421, %v417
    %v646 = vpack.c.b16 %v422, %v418
    %v647 = vpack.c.b16 %v423, %v419
    %v648 = vpack.c.b16 %v424, %v420
    %v649 = vpack.c.b16 %v429, %v425
    %v650 = vpack.c.b16 %v430, %v426
    %v651 = vpack.c.b16 %v431, %v427
    %v652 = vpack.c.b16 %v432, %v428
    %v653 = vpack.c.b16 %v437, %v433
    %v654 = vpack.c.b16 %v438, %v434
    %v655 = vpack.c.b16 %v439, %v435
    %v656 = vpack.c.b16 %v440, %v436
    %v657 = vpack.c.b16 %v445, %v441
    %v658 = vpack.c.b16 %v446, %v442
    %v659 = vpack.c.b16 %v447, %v443
    %v660 = vpack.c.b16 %v448, %v444
    %v661 = vpack.c.b16 %v453, %v449
    %v662 = vpack.c.b16 %v454, %v450
    %v663 = vpack.c.b16 %v455, %v451
    %v664 = vpack.c.b16 %v456, %v452
    %v665 = vpack.c.b16 %v461, %v457
    %v666 = vpack.c.b16 %v462, %v458
    %v667 = vpack.c.b16 %v463, %v459
    %v668 = vpack.c.b16 %v464, %v460
    %v669 = vpack.c.b16 %v469, %v465
    %v670 = vpack.c.b16 %v470, %v466
    %v671 = vpack.c.b16 %v471, %v467
    %v672 = vpack.c.b16 %v472, %v468
    %v673 = vpack.c.b16 %v477, %v473
    %v674 = vpack.c.b16 %v478, %v474
    %v675 = vpack.c.b16 %v479, %v475
    %v676 = vpack.c.b16 %v480, %v476
    %v677 = vpack.c.b16 %v485, %v481
    %v678 = vpack.c.b16 %v486, %v482
    %v679 = vpack.c.b16 %v487, %v483
    %v680 = vpack.c.b16 %v488, %v484
    %v681 = vpack.c.b16 %v493, %v489
    %v682 = vpack.c.b16 %v494, %v490
    %v683 = vpack.c.b16 %v495, %v491
    %v684 = vpack.c.b16 %v496, %v492
    %v685 = vpack.c.b16 %v501, %v497
    %v686 = vpack.c.b16 %v502, %v498
    %v687 = vpack.c.b16 %v503, %v499
    %v688 = vpack.c.b16 %v504, %v500
    %v689 = vpack.c.b16 %v509, %v505
    %v690 = vpack.c.b16 %v510, %v506
    %v691 = vpack.c.b16 %v511, %v507
    %v692 = vpack.c.b16 %v512, %v508
    %v693 = vpack.c.b16 %v517, %v513
    %v694 = vpack.c.b16 %v518, %v514
    %v695 = vpack.c.b16 %v519, %v515
    %v696 = vpack.c.b16 %v520, %v516
    %v697 = vpack.c.b16 %v525, %v521
    %v698 = vpack.c.b16 %v526, %v522
    %v699 = vpack.c.b16 %v527, %v523
    %v700 = vpack.c.b16 %v528, %v524
    %v701 = vpack.c.b16 %v533, %v529
    %v702 = vpack.c.b16 %v534, %v530
    %v703 = vpack.c.b16 %v535, %v531
    %v704 = vpack.c.b16 %v536, %v532
    %v705 = vpack.c.b16 %v541, %v537
    %v706 = vpack.c.b16 %v542, %v538
    %v707 = vpack.c.b16 %v543, %v539
    %v708 = vpack.c.b16 %v544, %v540
    %v709 = vpack.c.b16 %v549, %v545
    %v710 = vpack.c.b16 %v550, %v546
    %v711 = vpack.c.b16 %v551, %v547
    %v712 = vpack.c.b16 %v552, %v548
    %v713 = vpack.c.b16 %v557, %v553
    %v714 = vpack.c.b16 %v558, %v554
    %v715 = vpack.c.b16 %v559, %v555
    %v716 = vpack.c.b16 %v560, %v556
    %v717 = vpack.c.b16 %v565, %v561
    %v718 = vpack.c.b16 %v566, %v562
    %v719 = vpack.c.b16 %v567, %v563
    %v720 = vpack.c.b16 %v568, %v564
    %v721 = vpack.c.b16 %v573, %v569
    %v722 = vpack.c.b16 %v574, %v570
    %v723 = vpack.c.b16 %v575, %v571
    %v724 = vpack.c.b16 %v576, %v572
    %v725 = vpack.c.b16 %v581, %v577
    %v726 = vpack.c.b16 %v582, %v578
    %v727 = vpack.c.b16 %v583, %v579
    %v728 = vpack.c.b16 %v584, %v580
    %v729 = vpack.c.b16 %v589, %v585
    %v730 = vpack.c.b16 %v590, %v586
    %v731 = vpack.c.b16 %v591, %v587
    %v732 = vpack.c.b16 %v592, %v588
    %v733 = vpack.c.b16 %v597, %v593
    %v734 = vpack.c.b16 %v598, %v594
    %v735 = vpack.c.b16 %v599, %v595
    %v736 = vpack.c.b16 %v600, %v596
    %v737 = vpack.c.b16 %v605, %v601
    %v738 = vpack.c.b16 %v606, %v602
    %v739 = vpack.c.b16 %v607, %v603
    %v740 = vpack.c.b16 %v608, %v604
    %v741 = vpack.c.b16 %v613, %v609
    %v742 = vpack.c.b16 %v614, %v610
    %v743 = vpack.c.b16 %v615, %v611
    %v744 = vpack.c.b16 %v616, %v612
    %873 = vmatprep.subr.bf16.mxu0 %v618
    %874 = vmatpush1.bf16.msra.mxu0 %v617
    %875 = vmatprep.subr.bf16.mxu0 %v622
    %876 = vmatpush1.bf16.msra.mxu0 %v621
    %877 = vmatprep.subr.bf16.mxu0 %v626
    %878 = vmatpush1.bf16.msra.mxu0 %v625
    %879 = vmatprep.subr.bf16.mxu0 %v630
    %880 = vmatpush1.bf16.msra.mxu0 %v629
    %881 = vmatprep.subr.bf16.mxu0 %v634
    %882 = vmatpush1.bf16.msra.mxu0 %v633
    %883 = vmatprep.subr.bf16.mxu0 %v638
    %884 = vmatpush1.bf16.msra.mxu0 %v637
    %885 = vmatprep.subr.bf16.mxu0 %v642
    %886 = vmatpush1.bf16.msra.mxu0 %v641
    %887 = vmatprep.subr.bf16.mxu0 %v646
    %888 = vmatpush1.bf16.msra.mxu0 %v645
    %889 = vmatprep.subr.bf16.mxu0 %v650
    %890 = vmatpush1.bf16.msra.mxu0 %v649
    %891 = vmatprep.subr.bf16.mxu0 %v654
    %892 = vmatpush1.bf16.msra.mxu0 %v653
    %893 = vmatprep.subr.bf16.mxu0 %v658
    %894 = vmatpush1.bf16.msra.mxu0 %v657
    %895 = vmatprep.subr.bf16.mxu0 %v662
    %896 = vmatpush1.bf16.msra.mxu0 %v661
    %897 = vmatprep.subr.bf16.mxu0 %v666
    %898 = vmatpush1.bf16.msra.mxu0 %v665
    %899 = vmatprep.subr.bf16.mxu0 %v670
    %900 = vmatpush1.bf16.msra.mxu0 %v669
    %901 = vmatprep.subr.bf16.mxu0 %v674
    %902 = vmatpush1.bf16.msra.mxu0 %v673
    %903 = vmatprep.subr.bf16.mxu0 %v678
    %904 = vmatpush1.bf16.msra.mxu0 %v677
    %905 = vmatprep.mubr.bf16.mxu0 %v226
    %906 = vmatmul.mubr.bf16.gmra.mrb[0].mxu0 %v225
    %v907 = vpop.f32.mrb[0].mxu0
    %v908 = vadd.f32 0.0, %v907
    %v909 = vpop.f32.mrb[0].mxu0
    %v910 = vadd.f32 0.0, %v909
    %v911 = vpop.f32.mrb[0].mxu0
    %v912 = vadd.f32 0.0, %v911
    %v913 = vpop.f32.mrb[0].mxu0
    %v914 = vadd.f32 0.0, %v913
    %915 = vmatprep.mubr.bf16.mxu0 %v230
    %916 = vmatmul.mubr.bf16.gmra.mrb[0].mxu0 %v229
    %v917 = vpop.f32.mrb[0].mxu0
    %v918 = vadd.f32 0.0, %v917
    %v919 = vpop.f32.mrb[0].mxu0
    %v920 = vadd.f32 0.0, %v919
    %v921 = vpop.f32.mrb[0].mxu0
    %v922 = vadd.f32 0.0, %v921
    %v923 = vpop.f32.mrb[0].mxu0
    %v924 = vadd.f32 0.0, %v923
    %925 = vdwg.mxu0
    %926 = vmatprep.subr.bf16.mxu0 %v682
    %927 = vmatpush1.bf16.msra.mxu0 %v681
    %928 = vmatprep.subr.bf16.mxu0 %v686
    %929 = vmatpush1.bf16.msra.mxu0 %v685
    %930 = vmatprep.subr.bf16.mxu0 %v690
    %931 = vmatpush1.bf16.msra.mxu0 %v689
    %932 = vmatprep.subr.bf16.mxu0 %v694
    %933 = vmatpush1.bf16.msra.mxu0 %v693
    %934 = vmatprep.subr.bf16.mxu0 %v698
    %935 = vmatpush1.bf16.msra.mxu0 %v697
    %936 = vmatprep.subr.bf16.mxu0 %v702
    %937 = vmatpush1.bf16.msra.mxu0 %v701
    %938 = vmatprep.subr.bf16.mxu0 %v706
    %939 = vmatpush1.bf16.msra.mxu0 %v705
    %940 = vmatprep.subr.bf16.mxu0 %v710
    %941 = vmatpush1.bf16.msra.mxu0 %v709
    %942 = vmatprep.subr.bf16.mxu0 %v714
    %943 = vmatpush1.bf16.msra.mxu0 %v713
    %944 = vmatprep.subr.bf16.mxu0 %v718
    %945 = vmatpush1.bf16.msra.mxu0 %v717
    %946 = vmatprep.subr.bf16.mxu0 %v722
    %947 = vmatpush1.bf16.msra.mxu0 %v721
    %948 = vmatprep.subr.bf16.mxu0 %v726
    %949 = vmatpush1.bf16.msra.mxu0 %v725
    %950 = vmatprep.subr.bf16.mxu0 %v730
    %951 = vmatpush1.bf16.msra.mxu0 %v729
    %952 = vmatprep.subr.bf16.mxu0 %v734
    %953 = vmatpush1.bf16.msra.mxu0 %v733
    %954 = vmatprep.subr.bf16.mxu0 %v738
    %955 = vmatpush1.bf16.msra.mxu0 %v737
    %956 = vmatprep.subr.bf16.mxu0 %v742
    %957 = vmatpush1.bf16.msra.mxu0 %v741
    %958 = vmatprep.mubr.bf16.mxu0 %v228
    %959 = vmatmul.mubr.bf16.gmra.mrb[0].mxu0 %v227
    %v960 = vpop.f32.mrb[0].mxu0
    %v961 = vadd.f32 %v908, %v960
    %v962 = vpop.f32.mrb[0].mxu0
    %v963 = vadd.f32 %v910, %v962
    %v964 = vpop.f32.mrb[0].mxu0
    %v965 = vadd.f32 %v912, %v964
    %v966 = vpop.f32.mrb[0].mxu0
    %v967 = vadd.f32 %v914, %v966
    %968 = vmatprep.mubr.bf16.mxu0 %v232
    %969 = vmatmul.mubr.bf16.gmra.mrb[0].mxu0 %v231
    %v970 = vpop.f32.mrb[0].mxu0
    %v971 = vadd.f32 %v918, %v970
    %v972 = vpop.f32.mrb[0].mxu0
    %v973 = vadd.f32 %v920, %v972
    %v974 = vpop.f32.mrb[0].mxu0
    %v975 = vadd.f32 %v922, %v974
    %v976 = vpop.f32.mrb[0].mxu0
    %v977 = vadd.f32 %v924, %v976
    %978 = vdwg.mxu0
    %979 = vmatprep.subr.bf16.mxu0 %v620
    %980 = vmatpush1.bf16.msra.mxu0 %v619
    %981 = vmatprep.subr.bf16.mxu0 %v624
    %982 = vmatpush1.bf16.msra.mxu0 %v623
    %983 = vmatprep.subr.bf16.mxu0 %v628
    %984 = vmatpush1.bf16.msra.mxu0 %v627
    %985 = vmatprep.subr.bf16.mxu0 %v632
    %986 = vmatpush1.bf16.msra.mxu0 %v631
    %987 = vmatprep.subr.bf16.mxu0 %v636
    %988 = vmatpush1.bf16.msra.mxu0 %v635
    %989 = vmatprep.subr.bf16.mxu0 %v640
    %990 = vmatpush1.bf16.msra.mxu0 %v639
    %991 = vmatprep.subr.bf16.mxu0 %v644
    %992 = vmatpush1.bf16.msra.mxu0 %v643
    %993 = vmatprep.subr.bf16.mxu0 %v648
    %994 = vmatpush1.bf16.msra.mxu0 %v647
    %995 = vmatprep.subr.bf16.mxu0 %v652
    %996 = vmatpush1.bf16.msra.mxu0 %v651
    %997 = vmatprep.subr.bf16.mxu0 %v656
    %998 = vmatpush1.bf16.msra.mxu0 %v655
    %999 = vmatprep.subr.bf16.mxu0 %v660
    %1000 = vmatpush1.bf16.msra.mxu0 %v659
    %1001 = vmatprep.subr.bf16.mxu0 %v664
    %1002 = vmatpush1.bf16.msra.mxu0 %v663
    %1003 = vmatprep.subr.bf16.mxu0 %v668
    %1004 = vmatpush1.bf16.msra.mxu0 %v667
    %1005 = vmatprep.subr.bf16.mxu0 %v672
    %1006 = vmatpush1.bf16.msra.mxu0 %v671
    %1007 = vmatprep.subr.bf16.mxu0 %v676
    %1008 = vmatpush1.bf16.msra.mxu0 %v675
    %1009 = vmatprep.subr.bf16.mxu0 %v680
    %1010 = vmatpush1.bf16.msra.mxu0 %v679
    %1011 = vmatprep.mubr.bf16.mxu0 %v226
    %1012 = vmatmul.mubr.bf16.gmra.mrb[0].mxu0 %v225
    %v1013 = vpop.f32.mrb[0].mxu0
    %v1014 = vadd.f32 0.0, %v1013
    %v1015 = vpop.f32.mrb[0].mxu0
    %v1016 = vadd.f32 0.0, %v1015
    %v1017 = vpop.f32.mrb[0].mxu0
    %v1018 = vadd.f32 0.0, %v1017
    %v1019 = vpop.f32.mrb[0].mxu0
    %v1020 = vadd.f32 0.0, %v1019
    %1021 = vmatprep.mubr.bf16.mxu0 %v230
    %1022 = vmatmul.mubr.bf16.gmra.mrb[0].mxu0 %v229
    %v1023 = vpop.f32.mrb[0].mxu0
    %v1024 = vadd.f32 0.0, %v1023
    %v1025 = vpop.f32.mrb[0].mxu0
    %v1026 = vadd.f32 0.0, %v1025
    %v1027 = vpop.f32.mrb[0].mxu0
    %v1028 = vadd.f32 0.0, %v1027
    %v1029 = vpop.f32.mrb[0].mxu0
    %v1030 = vadd.f32 0.0, %v1029
    %1031 = vdwg.mxu0
    %1032 = vmatprep.subr.bf16.mxu0 %v684
    %1033 = vmatpush1.bf16.msra.mxu0 %v683
    %1034 = vmatprep.subr.bf16.mxu0 %v688
    %1035 = vmatpush1.bf16.msra.mxu0 %v687
    %1036 = vmatprep.subr.bf16.mxu0 %v692
    %1037 = vmatpush1.bf16.msra.mxu0 %v691
    %1038 = vmatprep.subr.bf16.mxu0 %v696
    %1039 = vmatpush1.bf16.msra.mxu0 %v695
    %1040 = vmatprep.subr.bf16.mxu0 %v700
    %1041 = vmatpush1.bf16.msra.mxu0 %v699
    %1042 = vmatprep.subr.bf16.mxu0 %v704
    %1043 = vmatpush1.bf16.msra.mxu0 %v703
    %1044 = vmatprep.subr.bf16.mxu0 %v708
    %1045 = vmatpush1.bf16.msra.mxu0 %v707
    %1046 = vmatprep.subr.bf16.mxu0 %v712
    %1047 = vmatpush1.bf16.msra.mxu0 %v711
    %1048 = vmatprep.subr.bf16.mxu0 %v716
    %1049 = vmatpush1.bf16.msra.mxu0 %v715
    %1050 = vmatprep.subr.bf16.mxu0 %v720
    %1051 = vmatpush1.bf16.msra.mxu0 %v719
    %1052 = vmatprep.subr.bf16.mxu0 %v724
    %1053 = vmatpush1.bf16.msra.mxu0 %v723
    %1054 = vmatprep.subr.bf16.mxu0 %v728
    %1055 = vmatpush1.bf16.msra.mxu0 %v727
    %1056 = vmatprep.subr.bf16.mxu0 %v732
    %1057 = vmatpush1.bf16.msra.mxu0 %v731
    %1058 = vmatprep.subr.bf16.mxu0 %v736
    %1059 = vmatpush1.bf16.msra.mxu0 %v735
    %1060 = vmatprep.subr.bf16.mxu0 %v740
    %1061 = vmatpush1.bf16.msra.mxu0 %v739
    %1062 = vmatprep.subr.bf16.mxu0 %v744
    %1063 = vmatpush1.bf16.msra.mxu0 %v743
    %1064 = vmatprep.mubr.bf16.mxu0 %v228
    %1065 = vmatmul.mubr.bf16.gmra.mrb[0].mxu0 %v227
    %v1066 = vpop.f32.mrb[0].mxu0
    %v1067 = vadd.f32 %v1014, %v1066
    %v1068 = vpop.f32.mrb[0].mxu0
    %v1069 = vadd.f32 %v1016, %v1068
    %v1070 = vpop.f32.mrb[0].mxu0
    %v1071 = vadd.f32 %v1018, %v1070
    %v1072 = vpop.f32.mrb[0].mxu0
    %v1073 = vadd.f32 %v1020, %v1072
    %1074 = vmatprep.mubr.bf16.mxu0 %v232
    %1075 = vmatmul.mubr.bf16.gmra.mrb[0].mxu0 %v231
    %v1076 = vpop.f32.mrb[0].mxu0
    %v1077 = vadd.f32 %v1024, %v1076
    %v1078 = vpop.f32.mrb[0].mxu0
    %v1079 = vadd.f32 %v1026, %v1078
    %v1080 = vpop.f32.mrb[0].mxu0
    %v1081 = vadd.f32 %v1028, %v1080
    %v1082 = vpop.f32.mrb[0].mxu0
    %v1083 = vadd.f32 %v1030, %v1082
    %1084 = vdwg.mxu0
    %v1085 = vadd.f32 %v961, %v965
    %v1086 = vadd.f32 %v1085, %v971
    %v1087 = vadd.f32 %v1086, %v975
    %v1088 = vrot.slane %v1087, 4
    %v1089 = vadd.f32 %v1087, %v1088
    %v1090 = vrot.slane %v1089, 2
    %v1091 = vadd.f32 %v1089, %v1090
    %v1092 = vrot.slane %v1091, 1
    %v1093 = vadd.f32 %v1091, %v1092
    %v1094 = vadd.f32 %v963, %v967
    %v1095 = vadd.f32 %v1094, %v973
    %v1096 = vadd.f32 %v1095, %v977
    %v1097 = vrot.slane %v1096, 4
    %v1098 = vadd.f32 %v1096, %v1097
    %v1099 = vrot.slane %v1098, 2
    %v1100 = vadd.f32 %v1098, %v1099
    %v1101 = vrot.slane %v1100, 1
    %v1102 = vadd.f32 %v1100, %v1101
    %v1103 = vadd.f32 %v1067, %v1071
    %v1104 = vadd.f32 %v1103, %v1077
    %v1105 = vadd.f32 %v1104, %v1081
    %v1106 = vrot.slane %v1105, 4
    %v1107 = vadd.f32 %v1105, %v1106
    %v1108 = vrot.slane %v1107, 2
    %v1109 = vadd.f32 %v1107, %v1108
    %v1110 = vrot.slane %v1109, 1
    %v1111 = vadd.f32 %v1109, %v1110
    %v1112 = vadd.f32 %v1069, %v1073
    %v1113 = vadd.f32 %v1112, %v1079
    %v1114 = vadd.f32 %v1113, %v1083
    %v1115 = vrot.slane %v1114, 4
    %v1116 = vadd.f32 %v1114, %v1115
    %v1117 = vrot.slane %v1116, 2
    %v1118 = vadd.f32 %v1116, %v1117
    %v1119 = vrot.slane %v1118, 1
    %v1120 = vadd.f32 %v1118, %v1119
    %v1121 = vld [vmem:[%s3] sm:$0xff]
    %v1122 = vld [vmem:[%s3 + $0x8] sm:$0xff]
    %v1123 = vld [vmem:[%s3 + $0x10] sm:$0xff]
    %v1124 = vld [vmem:[%s3 + $0x18] sm:$0xff]
    %v1125 = vld [vmem:[%s3 + $0x20] sm:$0xff]
    %v1126 = vld [vmem:[%s3 + $0x28] sm:$0xff]
    %v1127 = vld [vmem:[%s3 + $0x30] sm:$0xff]
    %v1128 = vld [vmem:[%s3 + $0x38] sm:$0xff]
    %v1129 = vld [vmem:[%s3 + $0x40] sm:$0xff]
    %v1130 = vld [vmem:[%s3 + $0x48] sm:$0xff]
    %v1131 = vld [vmem:[%s3 + $0x50] sm:$0xff]
    %v1132 = vld [vmem:[%s3 + $0x58] sm:$0xff]
    %v1133 = vld [vmem:[%s3 + $0x60] sm:$0xff]
    %v1134 = vld [vmem:[%s3 + $0x68] sm:$0xff]
    %v1135 = vld [vmem:[%s3 + $0x70] sm:$0xff]
    %v1136 = vld [vmem:[%s3 + $0x78] sm:$0xff]
    %v1137 = vld [vmem:[%s3 + $0x80] sm:$0xff]
    %v1138 = vld [vmem:[%s3 + $0x88] sm:$0xff]
    %v1139 = vld [vmem:[%s3 + $0x90] sm:$0xff]
    %v1140 = vld [vmem:[%s3 + $0x98] sm:$0xff]
    %v1141 = vld [vmem:[%s3 + $0xa0] sm:$0xff]
    %v1142 = vld [vmem:[%s3 + $0xa8] sm:$0xff]
    %v1143 = vld [vmem:[%s3 + $0xb0] sm:$0xff]
    %v1144 = vld [vmem:[%s3 + $0xb8] sm:$0xff]
    %v1145 = vld [vmem:[%s3 + $0xc0] sm:$0xff]
    %v1146 = vld [vmem:[%s3 + $0xc8] sm:$0xff]
    %v1147 = vld [vmem:[%s3 + $0xd0] sm:$0xff]
    %v1148 = vld [vmem:[%s3 + $0xd8] sm:$0xff]
    %v1149 = vld [vmem:[%s3 + $0xe0] sm:$0xff]
    %v1150 = vld [vmem:[%s3 + $0xe8] sm:$0xff]
    %v1151 = vld [vmem:[%s3 + $0xf0] sm:$0xff]
    %v1152 = vld [vmem:[%s3 + $0xf8] sm:$0xff]
    %v1153 = vld [vmem:[%s3 + $0x100] sm:$0xff]
    %v1154 = vld [vmem:[%s3 + $0x108] sm:$0xff]
    %v1155 = vld [vmem:[%s3 + $0x110] sm:$0xff]
    %v1156 = vld [vmem:[%s3 + $0x118] sm:$0xff]
    %v1157 = vld [vmem:[%s3 + $0x120] sm:$0xff]
    %v1158 = vld [vmem:[%s3 + $0x128] sm:$0xff]
    %v1159 = vld [vmem:[%s3 + $0x130] sm:$0xff]
    %v1160 = vld [vmem:[%s3 + $0x138] sm:$0xff]
    %v1161 = vld [vmem:[%s3 + $0x140] sm:$0xff]
    %v1162 = vld [vmem:[%s3 + $0x148] sm:$0xff]
    %v1163 = vld [vmem:[%s3 + $0x150] sm:$0xff]
    %v1164 = vld [vmem:[%s3 + $0x158] sm:$0xff]
    %v1165 = vld [vmem:[%s3 + $0x160] sm:$0xff]
    %v1166 = vld [vmem:[%s3 + $0x168] sm:$0xff]
    %v1167 = vld [vmem:[%s3 + $0x170] sm:$0xff]
    %v1168 = vld [vmem:[%s3 + $0x178] sm:$0xff]
    %v1169 = vld [vmem:[%s3 + $0x180] sm:$0xff]
    %v1170 = vld [vmem:[%s3 + $0x188] sm:$0xff]
    %v1171 = vld [vmem:[%s3 + $0x190] sm:$0xff]
    %v1172 = vld [vmem:[%s3 + $0x198] sm:$0xff]
    %v1173 = vld [vmem:[%s3 + $0x1a0] sm:$0xff]
    %v1174 = vld [vmem:[%s3 + $0x1a8] sm:$0xff]
    %v1175 = vld [vmem:[%s3 + $0x1b0] sm:$0xff]
    %v1176 = vld [vmem:[%s3 + $0x1b8] sm:$0xff]
    %v1177 = vld [vmem:[%s3 + $0x1c0] sm:$0xff]
    %v1178 = vld [vmem:[%s3 + $0x1c8] sm:$0xff]
    %v1179 = vld [vmem:[%s3 + $0x1d0] sm:$0xff]
    %v1180 = vld [vmem:[%s3 + $0x1d8] sm:$0xff]
    %v1181 = vld [vmem:[%s3 + $0x1e0] sm:$0xff]
    %v1182 = vld [vmem:[%s3 + $0x1e8] sm:$0xff]
    %v1183 = vld [vmem:[%s3 + $0x1f0] sm:$0xff]
    %v1184 = vld [vmem:[%s3 + $0x1f8] sm:$0xff]
    %1185 = vmatprep.subr.mxu0 0.0
    %1186 = vmatpush1.msra.mxu0 %v1121
    %1187 = vmatprep.subr.mxu0 0.0
    %1188 = vmatpush1.msra.mxu0 %v1122
    %1189 = vmatprep.subr.mxu0 0.0
    %1190 = vmatpush1.msra.mxu0 %v1123
    %1191 = vmatprep.subr.mxu0 0.0
    %1192 = vmatpush1.msra.mxu0 %v1124
    %1193 = vmatprep.subr.mxu0 0.0
    %1194 = vmatpush1.msra.mxu0 %v1125
    %1195 = vmatprep.subr.mxu0 0.0
    %1196 = vmatpush1.msra.mxu0 %v1126
    %1197 = vmatprep.subr.mxu0 0.0
    %1198 = vmatpush1.msra.mxu0 %v1127
    %1199 = vmatprep.subr.mxu0 0.0
    %1200 = vmatpush1.msra.mxu0 %v1128
    %1201 = vmatprep.subr.mxu0 0.0
    %1202 = vmatpush1.msra.mxu0 %v1129
    %1203 = vmatprep.subr.mxu0 0.0
    %1204 = vmatpush1.msra.mxu0 %v1130
    %1205 = vmatprep.subr.mxu0 0.0
    %1206 = vmatpush1.msra.mxu0 %v1131
    %1207 = vmatprep.subr.mxu0 0.0
    %1208 = vmatpush1.msra.mxu0 %v1132
    %1209 = vmatprep.subr.mxu0 0.0
    %1210 = vmatpush1.msra.mxu0 %v1133
    %1211 = vmatprep.subr.mxu0 0.0
    %1212 = vmatpush1.msra.mxu0 %v1134
    %1213 = vmatprep.subr.mxu0 0.0
    %1214 = vmatpush1.msra.mxu0 %v1135
    %1215 = vmatprep.subr.mxu0 0.0
    %1216 = vmatpush1.msra.mxu0 %v1136
    %1217 = vmatprep.subr.mxu0 0.0
    %1218 = vmatpush1.msra.mxu0 %v1137
    %1219 = vmatprep.subr.mxu0 0.0
    %1220 = vmatpush1.msra.mxu0 %v1138
    %1221 = vmatprep.subr.mxu0 0.0
    %1222 = vmatpush1.msra.mxu0 %v1139
    %1223 = vmatprep.subr.mxu0 0.0
    %1224 = vmatpush1.msra.mxu0 %v1140
    %1225 = vmatprep.subr.mxu0 0.0
    %1226 = vmatpush1.msra.mxu0 %v1141
    %1227 = vmatprep.subr.mxu0 0.0
    %1228 = vmatpush1.msra.mxu0 %v1142
    %1229 = vmatprep.subr.mxu0 0.0
    %1230 = vmatpush1.msra.mxu0 %v1143
    %1231 = vmatprep.subr.mxu0 0.0
    %1232 = vmatpush1.msra.mxu0 %v1144
    %1233 = vmatprep.subr.mxu0 0.0
    %1234 = vmatpush1.msra.mxu0 %v1145
    %1235 = vmatprep.subr.mxu0 0.0
    %1236 = vmatpush1.msra.mxu0 %v1146
    %1237 = vmatprep.subr.mxu0 0.0
    %1238 = vmatpush1.msra.mxu0 %v1147
    %1239 = vmatprep.subr.mxu0 0.0
    %1240 = vmatpush1.msra.mxu0 %v1148
    %1241 = vmatprep.subr.mxu0 0.0
    %1242 = vmatpush1.msra.mxu0 %v1149
    %1243 = vmatprep.subr.mxu0 0.0
    %1244 = vmatpush1.msra.mxu0 %v1150
    %1245 = vmatprep.subr.mxu0 0.0
    %1246 = vmatpush1.msra.mxu0 %v1151
    %1247 = vmatprep.subr.mxu0 0.0
    %1248 = vmatpush1.msra.mxu0 %v1152
    %1249 = vmatprep.mubr.f32.mxu0 %v1102
    %1250 = vmatmul.mubr.f32.gmra.mrb[0].mxu0 %v1093
    %v1251 = vpop.f32.mrb[0].mxu0
    %v1252 = vadd.f32 0.0, %v1251
    %v1253 = vpop.f32.mrb[0].mxu0
    %1254 = vdwg.mxu0
    %1255 = vmatprep.subr.mxu0 0.0
    %1256 = vmatpush1.msra.mxu0 %v1153
    %1257 = vmatprep.subr.mxu0 0.0
    %1258 = vmatpush1.msra.mxu0 %v1154
    %1259 = vmatprep.subr.mxu0 0.0
    %1260 = vmatpush1.msra.mxu0 %v1155
    %1261 = vmatprep.subr.mxu0 0.0
    %1262 = vmatpush1.msra.mxu0 %v1156
    %1263 = vmatprep.subr.mxu0 0.0
    %1264 = vmatpush1.msra.mxu0 %v1157
    %1265 = vmatprep.subr.mxu0 0.0
    %1266 = vmatpush1.msra.mxu0 %v1158
    %1267 = vmatprep.subr.mxu0 0.0
    %1268 = vmatpush1.msra.mxu0 %v1159
    %1269 = vmatprep.subr.mxu0 0.0
    %1270 = vmatpush1.msra.mxu0 %v1160
    %1271 = vmatprep.subr.mxu0 0.0
    %1272 = vmatpush1.msra.mxu0 %v1161
    %1273 = vmatprep.subr.mxu0 0.0
    %1274 = vmatpush1.msra.mxu0 %v1162
    %1275 = vmatprep.subr.mxu0 0.0
    %1276 = vmatpush1.msra.mxu0 %v1163
    %1277 = vmatprep.subr.mxu0 0.0
    %1278 = vmatpush1.msra.mxu0 %v1164
    %1279 = vmatprep.subr.mxu0 0.0
    %1280 = vmatpush1.msra.mxu0 %v1165
    %1281 = vmatprep.subr.mxu0 0.0
    %1282 = vmatpush1.msra.mxu0 %v1166
    %1283 = vmatprep.subr.mxu0 0.0
    %1284 = vmatpush1.msra.mxu0 %v1167
    %1285 = vmatprep.subr.mxu0 0.0
    %1286 = vmatpush1.msra.mxu0 %v1168
    %1287 = vmatprep.subr.mxu0 0.0
    %1288 = vmatpush1.msra.mxu0 %v1169
    %1289 = vmatprep.subr.mxu0 0.0
    %1290 = vmatpush1.msra.mxu0 %v1170
    %1291 = vmatprep.subr.mxu0 0.0
    %1292 = vmatpush1.msra.mxu0 %v1171
    %1293 = vmatprep.subr.mxu0 0.0
    %1294 = vmatpush1.msra.mxu0 %v1172
    %1295 = vmatprep.subr.mxu0 0.0
    %1296 = vmatpush1.msra.mxu0 %v1173
    %1297 = vmatprep.subr.mxu0 0.0
    %1298 = vmatpush1.msra.mxu0 %v1174
    %1299 = vmatprep.subr.mxu0 0.0
    %1300 = vmatpush1.msra.mxu0 %v1175
    %1301 = vmatprep.subr.mxu0 0.0
    %1302 = vmatpush1.msra.mxu0 %v1176
    %1303 = vmatprep.subr.mxu0 0.0
    %1304 = vmatpush1.msra.mxu0 %v1177
    %1305 = vmatprep.subr.mxu0 0.0
    %1306 = vmatpush1.msra.mxu0 %v1178
    %1307 = vmatprep.subr.mxu0 0.0
    %1308 = vmatpush1.msra.mxu0 %v1179
    %1309 = vmatprep.subr.mxu0 0.0
    %1310 = vmatpush1.msra.mxu0 %v1180
    %1311 = vmatprep.subr.mxu0 0.0
    %1312 = vmatpush1.msra.mxu0 %v1181
    %1313 = vmatprep.subr.mxu0 0.0
    %1314 = vmatpush1.msra.mxu0 %v1182
    %1315 = vmatprep.subr.mxu0 0.0
    %1316 = vmatpush1.msra.mxu0 %v1183
    %1317 = vmatprep.subr.mxu0 0.0
    %1318 = vmatpush1.msra.mxu0 %v1184
    %1319 = vmatprep.mubr.f32.mxu0 %v1120
    %1320 = vmatmul.mubr.f32.gmra.mrb[0].mxu0 %v1111
    %v1321 = vpop.f32.mrb[0].mxu0
    %v1322 = vadd.f32 %v1252, %v1321
    %v1323 = vpop.f32.mrb[0].mxu0
    %1324 = vdwg.mxu0
    %v1325 = vmul.f32 %v1322, 0.0009765625
    %v1326 = vld [vmem:[%s4] sm:$0xff]
    %v1327 = vld [vmem:[%s4 + $0x8] sm:$0xff]
    %v1328 = vld [vmem:[%s4 + $0x10] sm:$0xff]
    %v1329 = vld [vmem:[%s4 + $0x18] sm:$0xff]
    %v1330 = vld [vmem:[%s4 + $0x20] sm:$0xff]
    %v1331 = vld [vmem:[%s4 + $0x28] sm:$0xff]
    %v1332 = vld [vmem:[%s4 + $0x30] sm:$0xff]
    %v1333 = vld [vmem:[%s4 + $0x38] sm:$0xff]
    %vm1334 = vcmask 130048
    %v1336 = vsel %vm1334, %v1325, 0
    %1338 = vmatprep.subr.mxu0 %v1327
    %1339 = vmatpush1.msra.mxu0 %v1326
    %1340 = vmatprep.subr.mxu0 %v1331
    %1341 = vmatpush1.msra.mxu0 %v1330
    %1342 = vmatprep.subr.mxu0 0.0
    %1343 = vmatpush1.msra.mxu0 0.0
    %1344 = vmatprep.subr.mxu0 0.0
    %1345 = vmatpush1.msra.mxu0 0.0
    %1346 = vmatprep.subr.mxu0 0.0
    %1347 = vmatpush1.msra.mxu0 0.0
    %1348 = vmatprep.subr.mxu0 0.0
    %1349 = vmatpush1.msra.mxu0 0.0
    %1350 = vmatprep.subr.mxu0 0.0
    %1351 = vmatpush1.msra.mxu0 0.0
    %1352 = vmatprep.subr.mxu0 0.0
    %1353 = vmatpush1.msra.mxu0 0.0
    %1354 = vmatprep.subr.mxu0 0.0
    %1355 = vmatpush1.msra.mxu0 0.0
    %1356 = vmatprep.subr.mxu0 0.0
    %1357 = vmatpush1.msra.mxu0 0.0
    %1358 = vmatprep.subr.mxu0 0.0
    %1359 = vmatpush1.msra.mxu0 0.0
    %1360 = vmatprep.subr.mxu0 0.0
    %1361 = vmatpush1.msra.mxu0 0.0
    %1362 = vmatprep.subr.mxu0 0.0
    %1363 = vmatpush1.msra.mxu0 0.0
    %1364 = vmatprep.subr.mxu0 0.0
    %1365 = vmatpush1.msra.mxu0 0.0
    %1366 = vmatprep.subr.mxu0 0.0
    %1367 = vmatpush1.msra.mxu0 0.0
    %1368 = vmatprep.subr.mxu0 0.0
    %1369 = vmatpush1.msra.mxu0 0.0
    %1370 = vmatprep.subr.mxu0 0.0
    %1371 = vmatpush1.msra.mxu0 0.0
    %1372 = vmatprep.subr.mxu0 0.0
    %1373 = vmatpush1.msra.mxu0 0.0
    %1374 = vmatprep.subr.mxu0 0.0
    %1375 = vmatpush1.msra.mxu0 0.0
    %1376 = vmatprep.subr.mxu0 0.0
    %1377 = vmatpush1.msra.mxu0 0.0
    %1378 = vmatprep.subr.mxu0 0.0
    %1379 = vmatpush1.msra.mxu0 0.0
    %1380 = vmatprep.subr.mxu0 0.0
    %1381 = vmatpush1.msra.mxu0 0.0
    %1382 = vmatprep.subr.mxu0 0.0
    %1383 = vmatpush1.msra.mxu0 0.0
    %1384 = vmatprep.subr.mxu0 0.0
    %1385 = vmatpush1.msra.mxu0 0.0
    %1386 = vmatprep.subr.mxu0 0.0
    %1387 = vmatpush1.msra.mxu0 0.0
    %1388 = vmatprep.subr.mxu0 0.0
    %1389 = vmatpush1.msra.mxu0 0.0
    %1390 = vmatprep.subr.mxu0 0.0
    %1391 = vmatpush1.msra.mxu0 0.0
    %1392 = vmatprep.subr.mxu0 0.0
    %1393 = vmatpush1.msra.mxu0 0.0
    %1394 = vmatprep.subr.mxu0 0.0
    %1395 = vmatpush1.msra.mxu0 0.0
    %1396 = vmatprep.subr.mxu0 0.0
    %1397 = vmatpush1.msra.mxu0 0.0
    %1398 = vmatprep.subr.mxu0 0.0
    %1399 = vmatpush1.msra.mxu0 0.0
    %1400 = vmatprep.subr.mxu0 0.0
    %1401 = vmatpush1.msra.mxu0 0.0
    %1402 = vmatprep.mubr.f32.mxu0 0.0
    %1403 = vmatmul.mubr.f32.gmra.mrb[0].mxu0 %v1336
    %v1404 = vpop.f32.mrb[0].mxu0
    %v1405 = vadd.f32 0.0, %v1404
    %v1406 = vpop.f32.mrb[0].mxu0
    %v1407 = vadd.f32 0.0, %v1406
    %1408 = vdwg.mxu0
    %1409 = vmatprep.subr.mxu0 %v1329
    %1410 = vmatpush1.msra.mxu0 %v1328
    %1411 = vmatprep.subr.mxu0 %v1333
    %1412 = vmatpush1.msra.mxu0 %v1332
    %1413 = vmatprep.subr.mxu0 0.0
    %1414 = vmatpush1.msra.mxu0 0.0
    %1415 = vmatprep.subr.mxu0 0.0
    %1416 = vmatpush1.msra.mxu0 0.0
    %1417 = vmatprep.subr.mxu0 0.0
    %1418 = vmatpush1.msra.mxu0 0.0
    %1419 = vmatprep.subr.mxu0 0.0
    %1420 = vmatpush1.msra.mxu0 0.0
    %1421 = vmatprep.subr.mxu0 0.0
    %1422 = vmatpush1.msra.mxu0 0.0
    %1423 = vmatprep.subr.mxu0 0.0
    %1424 = vmatpush1.msra.mxu0 0.0
    %1425 = vmatprep.subr.mxu0 0.0
    %1426 = vmatpush1.msra.mxu0 0.0
    %1427 = vmatprep.subr.mxu0 0.0
    %1428 = vmatpush1.msra.mxu0 0.0
    %1429 = vmatprep.subr.mxu0 0.0
    %1430 = vmatpush1.msra.mxu0 0.0
    %1431 = vmatprep.subr.mxu0 0.0
    %1432 = vmatpush1.msra.mxu0 0.0
    %1433 = vmatprep.subr.mxu0 0.0
    %1434 = vmatpush1.msra.mxu0 0.0
    %1435 = vmatprep.subr.mxu0 0.0
    %1436 = vmatpush1.msra.mxu0 0.0
    %1437 = vmatprep.subr.mxu0 0.0
    %1438 = vmatpush1.msra.mxu0 0.0
    %1439 = vmatprep.subr.mxu0 0.0
    %1440 = vmatpush1.msra.mxu0 0.0
    %1441 = vmatprep.subr.mxu0 0.0
    %1442 = vmatpush1.msra.mxu0 0.0
    %1443 = vmatprep.subr.mxu0 0.0
    %1444 = vmatpush1.msra.mxu0 0.0
    %1445 = vmatprep.subr.mxu0 0.0
    %1446 = vmatpush1.msra.mxu0 0.0
    %1447 = vmatprep.subr.mxu0 0.0
    %1448 = vmatpush1.msra.mxu0 0.0
    %1449 = vmatprep.subr.mxu0 0.0
    %1450 = vmatpush1.msra.mxu0 0.0
    %1451 = vmatprep.subr.mxu0 0.0
    %1452 = vmatpush1.msra.mxu0 0.0
    %1453 = vmatprep.subr.mxu0 0.0
    %1454 = vmatpush1.msra.mxu0 0.0
    %1455 = vmatprep.subr.mxu0 0.0
    %1456 = vmatpush1.msra.mxu0 0.0
    %1457 = vmatprep.subr.mxu0 0.0
    %1458 = vmatpush1.msra.mxu0 0.0
    %1459 = vmatprep.subr.mxu0 0.0
    %1460 = vmatpush1.msra.mxu0 0.0
    %1461 = vmatprep.subr.mxu0 0.0
    %1462 = vmatpush1.msra.mxu0 0.0
    %1463 = vmatprep.subr.mxu0 0.0
    %1464 = vmatpush1.msra.mxu0 0.0
    %1465 = vmatprep.subr.mxu0 0.0
    %1466 = vmatpush1.msra.mxu0 0.0
    %1467 = vmatprep.subr.mxu0 0.0
    %1468 = vmatpush1.msra.mxu0 0.0
    %1469 = vmatprep.subr.mxu0 0.0
    %1470 = vmatpush1.msra.mxu0 0.0
    %1471 = vmatprep.subr.mxu0 0.0
    %1472 = vmatpush1.msra.mxu0 0.0
    %1473 = vmatprep.mubr.f32.mxu0 0.0
    %1474 = vmatmul.mubr.f32.gmra.mrb[0].mxu0 %v1336
    %v1475 = vpop.f32.mrb[0].mxu0
    %v1476 = vadd.f32 0.0, %v1475
    %v1477 = vpop.f32.mrb[0].mxu0
    %v1478 = vadd.f32 0.0, %v1477
    %1479 = vdwg.mxu0
    %v1480 = vlaneseq
    %v1481 = vshrl.u32 %v1480, 7
    %v1482 = vsub.s32 0, %v1481
    %v1483 = vrot.slane %v1405, %v1482
    %v1484 = vlaneseq
    %v1485 = vshrl.u32 %v1484, 7
    %v1486 = vsub.s32 0, %v1485
    %v1487 = vrot.slane %v1407, %v1486
    %v1488 = vlaneseq
    %v1489 = vshrl.u32 %v1488, 7
    %v1490 = vsub.s32 0, %v1489
    %v1491 = vrot.slane %v1476, %v1490
    %v1492 = vlaneseq
    %v1493 = vshrl.u32 %v1492, 7
    %v1494 = vsub.s32 0, %v1493
    %v1495 = vrot.slane %v1478, %v1494
    %v1496 = vsub.f32 %v961, %v1483
    %v1497 = vsub.f32 %v963, %v1487
    %v1498 = vsub.f32 %v1067, %v1491
    %v1499 = vsub.f32 %v1069, %v1495
    %v1500 = vsub.f32 %v965, %v1483
    %v1501 = vsub.f32 %v967, %v1487
    %v1502 = vsub.f32 %v1071, %v1491
    %v1503 = vsub.f32 %v1073, %v1495
    %v1504 = vsub.f32 %v971, %v1483
    %v1505 = vsub.f32 %v973, %v1487
    %v1506 = vsub.f32 %v1077, %v1491
    %v1507 = vsub.f32 %v1079, %v1495
    %v1508 = vsub.f32 %v975, %v1483
    %v1509 = vsub.f32 %v977, %v1487
    %v1510 = vsub.f32 %v1081, %v1491
    %v1511 = vsub.f32 %v1083, %v1495
    %v1512 = vmul.f32 %v1496, %v1496
    %v1513 = vmul.f32 %v1497, %v1497
    %v1514 = vmul.f32 %v1498, %v1498
    %v1515 = vmul.f32 %v1499, %v1499
    %v1516 = vmul.f32 %v1500, %v1500
    %v1517 = vmul.f32 %v1501, %v1501
    %v1518 = vmul.f32 %v1502, %v1502
    %v1519 = vmul.f32 %v1503, %v1503
    %v1520 = vmul.f32 %v1504, %v1504
    %v1521 = vmul.f32 %v1505, %v1505
    %v1522 = vmul.f32 %v1506, %v1506
    %v1523 = vmul.f32 %v1507, %v1507
    %v1524 = vmul.f32 %v1508, %v1508
    %v1525 = vmul.f32 %v1509, %v1509
    %v1526 = vmul.f32 %v1510, %v1510
    %v1527 = vmul.f32 %v1511, %v1511
    %v1528 = vadd.f32 %v1512, %v1516
    %v1529 = vadd.f32 %v1528, %v1520
    %v1530 = vadd.f32 %v1529, %v1524
    %v1531 = vrot.slane %v1530, 4
    %v1532 = vadd.f32 %v1530, %v1531
    %v1533 = vrot.slane %v1532, 2
    %v1534 = vadd.f32 %v1532, %v1533
    %v1535 = vrot.slane %v1534, 1
    %v1536 = vadd.f32 %v1534, %v1535
    %v1537 = vadd.f32 %v1513, %v1517
    %v1538 = vadd.f32 %v1537, %v1521
    %v1539 = vadd.f32 %v1538, %v1525
    %v1540 = vrot.slane %v1539, 4
    %v1541 = vadd.f32 %v1539, %v1540
    %v1542 = vrot.slane %v1541, 2
    %v1543 = vadd.f32 %v1541, %v1542
    %v1544 = vrot.slane %v1543, 1
    %v1545 = vadd.f32 %v1543, %v1544
    %v1546 = vadd.f32 %v1514, %v1518
    %v1547 = vadd.f32 %v1546, %v1522
    %v1548 = vadd.f32 %v1547, %v1526
    %v1549 = vrot.slane %v1548, 4
    %v1550 = vadd.f32 %v1548, %v1549
    %v1551 = vrot.slane %v1550, 2
    %v1552 = vadd.f32 %v1550, %v1551
    %v1553 = vrot.slane %v1552, 1
    %v1554 = vadd.f32 %v1552, %v1553
    %v1555 = vadd.f32 %v1515, %v1519
    %v1556 = vadd.f32 %v1555, %v1523
    %v1557 = vadd.f32 %v1556, %v1527
    %v1558 = vrot.slane %v1557, 4
    %v1559 = vadd.f32 %v1557, %v1558
    %v1560 = vrot.slane %v1559, 2
    %v1561 = vadd.f32 %v1559, %v1560
    %v1562 = vrot.slane %v1561, 1
    %v1563 = vadd.f32 %v1561, %v1562
    %1564 = vmatprep.subr.mxu0 0.0
    %1565 = vmatpush1.msra.mxu0 %v1121
    %1566 = vmatprep.subr.mxu0 0.0
    %1567 = vmatpush1.msra.mxu0 %v1122
    %1568 = vmatprep.subr.mxu0 0.0
    %1569 = vmatpush1.msra.mxu0 %v1123
    %1570 = vmatprep.subr.mxu0 0.0
    %1571 = vmatpush1.msra.mxu0 %v1124
    %1572 = vmatprep.subr.mxu0 0.0
    %1573 = vmatpush1.msra.mxu0 %v1125
    %1574 = vmatprep.subr.mxu0 0.0
    %1575 = vmatpush1.msra.mxu0 %v1126
    %1576 = vmatprep.subr.mxu0 0.0
    %1577 = vmatpush1.msra.mxu0 %v1127
    %1578 = vmatprep.subr.mxu0 0.0
    %1579 = vmatpush1.msra.mxu0 %v1128
    %1580 = vmatprep.subr.mxu0 0.0
    %1581 = vmatpush1.msra.mxu0 %v1129
    %1582 = vmatprep.subr.mxu0 0.0
    %1583 = vmatpush1.msra.mxu0 %v1130
    %1584 = vmatprep.subr.mxu0 0.0
    %1585 = vmatpush1.msra.mxu0 %v1131
    %1586 = vmatprep.subr.mxu0 0.0
    %1587 = vmatpush1.msra.mxu0 %v1132
    %1588 = vmatprep.subr.mxu0 0.0
    %1589 = vmatpush1.msra.mxu0 %v1133
    %1590 = vmatprep.subr.mxu0 0.0
    %1591 = vmatpush1.msra.mxu0 %v1134
    %1592 = vmatprep.subr.mxu0 0.0
    %1593 = vmatpush1.msra.mxu0 %v1135
    %1594 = vmatprep.subr.mxu0 0.0
    %1595 = vmatpush1.msra.mxu0 %v1136
    %1596 = vmatprep.subr.mxu0 0.0
    %1597 = vmatpush1.msra.mxu0 %v1137
    %1598 = vmatprep.subr.mxu0 0.0
    %1599 = vmatpush1.msra.mxu0 %v1138
    %1600 = vmatprep.subr.mxu0 0.0
    %1601 = vmatpush1.msra.mxu0 %v1139
    %1602 = vmatprep.subr.mxu0 0.0
    %1603 = vmatpush1.msra.mxu0 %v1140
    %1604 = vmatprep.subr.mxu0 0.0
    %1605 = vmatpush1.msra.mxu0 %v1141
    %1606 = vmatprep.subr.mxu0 0.0
    %1607 = vmatpush1.msra.mxu0 %v1142
    %1608 = vmatprep.subr.mxu0 0.0
    %1609 = vmatpush1.msra.mxu0 %v1143
    %1610 = vmatprep.subr.mxu0 0.0
    %1611 = vmatpush1.msra.mxu0 %v1144
    %1612 = vmatprep.subr.mxu0 0.0
    %1613 = vmatpush1.msra.mxu0 %v1145
    %1614 = vmatprep.subr.mxu0 0.0
    %1615 = vmatpush1.msra.mxu0 %v1146
    %1616 = vmatprep.subr.mxu0 0.0
    %1617 = vmatpush1.msra.mxu0 %v1147
    %1618 = vmatprep.subr.mxu0 0.0
    %1619 = vmatpush1.msra.mxu0 %v1148
    %1620 = vmatprep.subr.mxu0 0.0
    %1621 = vmatpush1.msra.mxu0 %v1149
    %1622 = vmatprep.subr.mxu0 0.0
    %1623 = vmatpush1.msra.mxu0 %v1150
    %1624 = vmatprep.subr.mxu0 0.0
    %1625 = vmatpush1.msra.mxu0 %v1151
    %1626 = vmatprep.subr.mxu0 0.0
    %1627 = vmatpush1.msra.mxu0 %v1152
    %1628 = vmatprep.mubr.f32.mxu0 %v1545
    %1629 = vmatmul.mubr.f32.gmra.mrb[0].mxu0 %v1536
    %v1630 = vpop.f32.mrb[0].mxu0
    %v1631 = vadd.f32 0.0, %v1630
    %v1632 = vpop.f32.mrb[0].mxu0
    %1633 = vdwg.mxu0
    %1634 = vmatprep.subr.mxu0 0.0
    %1635 = vmatpush1.msra.mxu0 %v1153
    %1636 = vmatprep.subr.mxu0 0.0
    %1637 = vmatpush1.msra.mxu0 %v1154
    %1638 = vmatprep.subr.mxu0 0.0
    %1639 = vmatpush1.msra.mxu0 %v1155
    %1640 = vmatprep.subr.mxu0 0.0
    %1641 = vmatpush1.msra.mxu0 %v1156
    %1642 = vmatprep.subr.mxu0 0.0
    %1643 = vmatpush1.msra.mxu0 %v1157
    %1644 = vmatprep.subr.mxu0 0.0
    %1645 = vmatpush1.msra.mxu0 %v1158
    %1646 = vmatprep.subr.mxu0 0.0
    %1647 = vmatpush1.msra.mxu0 %v1159
    %1648 = vmatprep.subr.mxu0 0.0
    %1649 = vmatpush1.msra.mxu0 %v1160
    %1650 = vmatprep.subr.mxu0 0.0
    %1651 = vmatpush1.msra.mxu0 %v1161
    %1652 = vmatprep.subr.mxu0 0.0
    %1653 = vmatpush1.msra.mxu0 %v1162
    %1654 = vmatprep.subr.mxu0 0.0
    %1655 = vmatpush1.msra.mxu0 %v1163
    %1656 = vmatprep.subr.mxu0 0.0
    %1657 = vmatpush1.msra.mxu0 %v1164
    %1658 = vmatprep.subr.mxu0 0.0
    %1659 = vmatpush1.msra.mxu0 %v1165
    %1660 = vmatprep.subr.mxu0 0.0
    %1661 = vmatpush1.msra.mxu0 %v1166
    %1662 = vmatprep.subr.mxu0 0.0
    %1663 = vmatpush1.msra.mxu0 %v1167
    %1664 = vmatprep.subr.mxu0 0.0
    %1665 = vmatpush1.msra.mxu0 %v1168
    %1666 = vmatprep.subr.mxu0 0.0
    %1667 = vmatpush1.msra.mxu0 %v1169
    %1668 = vmatprep.subr.mxu0 0.0
    %1669 = vmatpush1.msra.mxu0 %v1170
    %1670 = vmatprep.subr.mxu0 0.0
    %1671 = vmatpush1.msra.mxu0 %v1171
    %1672 = vmatprep.subr.mxu0 0.0
    %1673 = vmatpush1.msra.mxu0 %v1172
    %1674 = vmatprep.subr.mxu0 0.0
    %1675 = vmatpush1.msra.mxu0 %v1173
    %1676 = vmatprep.subr.mxu0 0.0
    %1677 = vmatpush1.msra.mxu0 %v1174
    %1678 = vmatprep.subr.mxu0 0.0
    %1679 = vmatpush1.msra.mxu0 %v1175
    %1680 = vmatprep.subr.mxu0 0.0
    %1681 = vmatpush1.msra.mxu0 %v1176
    %1682 = vmatprep.subr.mxu0 0.0
    %1683 = vmatpush1.msra.mxu0 %v1177
    %1684 = vmatprep.subr.mxu0 0.0
    %1685 = vmatpush1.msra.mxu0 %v1178
    %1686 = vmatprep.subr.mxu0 0.0
    %1687 = vmatpush1.msra.mxu0 %v1179
    %1688 = vmatprep.subr.mxu0 0.0
    %1689 = vmatpush1.msra.mxu0 %v1180
    %1690 = vmatprep.subr.mxu0 0.0
    %1691 = vmatpush1.msra.mxu0 %v1181
    %1692 = vmatprep.subr.mxu0 0.0
    %1693 = vmatpush1.msra.mxu0 %v1182
    %1694 = vmatprep.subr.mxu0 0.0
    %1695 = vmatpush1.msra.mxu0 %v1183
    %1696 = vmatprep.subr.mxu0 0.0
    %1697 = vmatpush1.msra.mxu0 %v1184
    %1698 = vmatprep.mubr.f32.mxu0 %v1563
    %1699 = vmatmul.mubr.f32.gmra.mrb[0].mxu0 %v1554
    %v1700 = vpop.f32.mrb[0].mxu0
    %v1701 = vadd.f32 %v1631, %v1700
    %v1702 = vpop.f32.mrb[0].mxu0
    %1703 = vdwg.mxu0
    %v1704 = vmul.f32 %v1701, 0.0009765625
    %v1705 = vadd.f32 %v1704, 1e-05
    %v1706 = vrsqrt.pop %v1705
    %v1708 = vsel %vm1334, %v1706, 0
    %1710 = vmatprep.subr.mxu0 %v1327
    %1711 = vmatpush1.msra.mxu0 %v1326
    %1712 = vmatprep.subr.mxu0 %v1331
    %1713 = vmatpush1.msra.mxu0 %v1330
    %1714 = vmatprep.subr.mxu0 0.0
    %1715 = vmatpush1.msra.mxu0 0.0
    %1716 = vmatprep.subr.mxu0 0.0
    %1717 = vmatpush1.msra.mxu0 0.0
    %1718 = vmatprep.subr.mxu0 0.0
    %1719 = vmatpush1.msra.mxu0 0.0
    %1720 = vmatprep.subr.mxu0 0.0
    %1721 = vmatpush1.msra.mxu0 0.0
    %1722 = vmatprep.subr.mxu0 0.0
    %1723 = vmatpush1.msra.mxu0 0.0
    %1724 = vmatprep.subr.mxu0 0.0
    %1725 = vmatpush1.msra.mxu0 0.0
    %1726 = vmatprep.subr.mxu0 0.0
    %1727 = vmatpush1.msra.mxu0 0.0
    %1728 = vmatprep.subr.mxu0 0.0
    %1729 = vmatpush1.msra.mxu0 0.0
    %1730 = vmatprep.subr.mxu0 0.0
    %1731 = vmatpush1.msra.mxu0 0.0
    %1732 = vmatprep.subr.mxu0 0.0
    %1733 = vmatpush1.msra.mxu0 0.0
    %1734 = vmatprep.subr.mxu0 0.0
    %1735 = vmatpush1.msra.mxu0 0.0
    %1736 = vmatprep.subr.mxu0 0.0
    %1737 = vmatpush1.msra.mxu0 0.0
    %1738 = vmatprep.subr.mxu0 0.0
    %1739 = vmatpush1.msra.mxu0 0.0
    %1740 = vmatprep.subr.mxu0 0.0
    %1741 = vmatpush1.msra.mxu0 0.0
    %1742 = vmatprep.subr.mxu0 0.0
    %1743 = vmatpush1.msra.mxu0 0.0
    %1744 = vmatprep.subr.mxu0 0.0
    %1745 = vmatpush1.msra.mxu0 0.0
    %1746 = vmatprep.subr.mxu0 0.0
    %1747 = vmatpush1.msra.mxu0 0.0
    %1748 = vmatprep.subr.mxu0 0.0
    %1749 = vmatpush1.msra.mxu0 0.0
    %1750 = vmatprep.subr.mxu0 0.0
    %1751 = vmatpush1.msra.mxu0 0.0
    %1752 = vmatprep.subr.mxu0 0.0
    %1753 = vmatpush1.msra.mxu0 0.0
    %1754 = vmatprep.subr.mxu0 0.0
    %1755 = vmatpush1.msra.mxu0 0.0
    %1756 = vmatprep.subr.mxu0 0.0
    %1757 = vmatpush1.msra.mxu0 0.0
    %1758 = vmatprep.subr.mxu0 0.0
    %1759 = vmatpush1.msra.mxu0 0.0
    %1760 = vmatprep.subr.mxu0 0.0
    %1761 = vmatpush1.msra.mxu0 0.0
    %1762 = vmatprep.subr.mxu0 0.0
    %1763 = vmatpush1.msra.mxu0 0.0
    %1764 = vmatprep.subr.mxu0 0.0
    %1765 = vmatpush1.msra.mxu0 0.0
    %1766 = vmatprep.subr.mxu0 0.0
    %1767 = vmatpush1.msra.mxu0 0.0
    %1768 = vmatprep.subr.mxu0 0.0
    %1769 = vmatpush1.msra.mxu0 0.0
    %1770 = vmatprep.subr.mxu0 0.0
    %1771 = vmatpush1.msra.mxu0 0.0
    %1772 = vmatprep.subr.mxu0 0.0
    %1773 = vmatpush1.msra.mxu0 0.0
    %1774 = vmatprep.mubr.f32.mxu0 0.0
    %1775 = vmatmul.mubr.f32.gmra.mrb[0].mxu0 %v1708
    %v1776 = vpop.f32.mrb[0].mxu0
    %v1777 = vadd.f32 0.0, %v1776
    %v1778 = vpop.f32.mrb[0].mxu0
    %v1779 = vadd.f32 0.0, %v1778
    %1780 = vdwg.mxu0
    %1781 = vmatprep.subr.mxu0 %v1329
    %1782 = vmatpush1.msra.mxu0 %v1328
    %1783 = vmatprep.subr.mxu0 %v1333
    %1784 = vmatpush1.msra.mxu0 %v1332
    %1785 = vmatprep.subr.mxu0 0.0
    %1786 = vmatpush1.msra.mxu0 0.0
    %1787 = vmatprep.subr.mxu0 0.0
    %1788 = vmatpush1.msra.mxu0 0.0
    %1789 = vmatprep.subr.mxu0 0.0
    %1790 = vmatpush1.msra.mxu0 0.0
    %1791 = vmatprep.subr.mxu0 0.0
    %1792 = vmatpush1.msra.mxu0 0.0
    %1793 = vmatprep.subr.mxu0 0.0
    %1794 = vmatpush1.msra.mxu0 0.0
    %1795 = vmatprep.subr.mxu0 0.0
    %1796 = vmatpush1.msra.mxu0 0.0
    %1797 = vmatprep.subr.mxu0 0.0
    %1798 = vmatpush1.msra.mxu0 0.0
    %1799 = vmatprep.subr.mxu0 0.0
    %1800 = vmatpush1.msra.mxu0 0.0
    %1801 = vmatprep.subr.mxu0 0.0
    %1802 = vmatpush1.msra.mxu0 0.0
    %1803 = vmatprep.subr.mxu0 0.0
    %1804 = vmatpush1.msra.mxu0 0.0
    %1805 = vmatprep.subr.mxu0 0.0
    %1806 = vmatpush1.msra.mxu0 0.0
    %1807 = vmatprep.subr.mxu0 0.0
    %1808 = vmatpush1.msra.mxu0 0.0
    %1809 = vmatprep.subr.mxu0 0.0
    %1810 = vmatpush1.msra.mxu0 0.0
    %1811 = vmatprep.subr.mxu0 0.0
    %1812 = vmatpush1.msra.mxu0 0.0
    %1813 = vmatprep.subr.mxu0 0.0
    %1814 = vmatpush1.msra.mxu0 0.0
    %1815 = vmatprep.subr.mxu0 0.0
    %1816 = vmatpush1.msra.mxu0 0.0
    %1817 = vmatprep.subr.mxu0 0.0
    %1818 = vmatpush1.msra.mxu0 0.0
    %1819 = vmatprep.subr.mxu0 0.0
    %1820 = vmatpush1.msra.mxu0 0.0
    %1821 = vmatprep.subr.mxu0 0.0
    %1822 = vmatpush1.msra.mxu0 0.0
    %1823 = vmatprep.subr.mxu0 0.0
    %1824 = vmatpush1.msra.mxu0 0.0
    %1825 = vmatprep.subr.mxu0 0.0
    %1826 = vmatpush1.msra.mxu0 0.0
    %1827 = vmatprep.subr.mxu0 0.0
    %1828 = vmatpush1.msra.mxu0 0.0
    %1829 = vmatprep.subr.mxu0 0.0
    %1830 = vmatpush1.msra.mxu0 0.0
    %1831 = vmatprep.subr.mxu0 0.0
    %1832 = vmatpush1.msra.mxu0 0.0
    %1833 = vmatprep.subr.mxu0 0.0
    %1834 = vmatpush1.msra.mxu0 0.0
    %1835 = vmatprep.subr.mxu0 0.0
    %1836 = vmatpush1.msra.mxu0 0.0
    %1837 = vmatprep.subr.mxu0 0.0
    %1838 = vmatpush1.msra.mxu0 0.0
    %1839 = vmatprep.subr.mxu0 0.0
    %1840 = vmatpush1.msra.mxu0 0.0
    %1841 = vmatprep.subr.mxu0 0.0
    %1842 = vmatpush1.msra.mxu0 0.0
    %1843 = vmatprep.subr.mxu0 0.0
    %1844 = vmatpush1.msra.mxu0 0.0
    %1845 = vmatprep.mubr.f32.mxu0 0.0
    %1846 = vmatmul.mubr.f32.gmra.mrb[0].mxu0 %v1708
    %v1847 = vpop.f32.mrb[0].mxu0
    %v1848 = vadd.f32 0.0, %v1847
    %v1849 = vpop.f32.mrb[0].mxu0
    %v1850 = vadd.f32 0.0, %v1849
    %1851 = vdwg.mxu0
    %v1852 = vld [vmem:[%s5] sm:$0xf]
    %v1857 = vcombine.low %v1777, %v1779
    %v1858 = vcombine.low %v1848, %v1850
    %v1860 = vunpack.c.l.s4 1966171168
    %v1861 = vunpack.c.0.s8 %v1860
    %v1862 = vlaneseq
    %v1863 = vshrl.u32 %v1862, 7
    %v1864 = vsub.s32 %v1861, %v1863
    %v1865 = vrot.slane %v1857, %v1864
    %v1867 = vunpack.c.l.s4 1966171168
    %v1868 = vunpack.c.0.s8 %v1867
    %v1869 = vlaneseq
    %v1870 = vshrl.u32 %v1869, 7
    %v1871 = vsub.s32 %v1868, %v1870
    %v1872 = vrot.slane %v1858, %v1871
    %v1873 = vcombine.low %v1865, %v1872
    %v1875 = vunpack.c.l.s4 1966171168
    %v1876 = vunpack.c.0.s8 %v1875
    %v1877 = vlaneseq
    %v1878 = vshrl.u32 %v1877, 7
    %v1879 = vsub.s32 %v1876, %v1878
    %v1880 = vrot.slane %v1873, %v1879
    %v1882 = vmul.f32 %v1852, %v1880
    %v1884 = vlaneseq
    %v1885 = vshrl.u32 %v1884, 7
    %v1886 = vsub.s32 0, %v1885
    %v1887 = vrot.slane %v1882, %v1886
    %v1888 = vlaneseq
    %v1889 = vshrl.u32 %v1888, 7
    %v1890 = vsub.s32 1, %v1889
    %v1891 = vrot.slane %v1882, %v1890
    %v1892 = vlaneseq
    %v1893 = vshrl.u32 %v1892, 7
    %v1894 = vsub.s32 2, %v1893
    %v1895 = vrot.slane %v1882, %v1894
    %v1896 = vlaneseq
    %v1897 = vshrl.u32 %v1896, 7
    %v1898 = vsub.s32 3, %v1897
    %v1899 = vrot.slane %v1882, %v1898
    %v1904 = vmul.f32 %v1496, %v1887
    %v1905 = vmul.f32 %v1497, %v1891
    %v1906 = vmul.f32 %v1498, %v1895
    %v1907 = vmul.f32 %v1499, %v1899
    %v1908 = vmul.f32 %v1500, %v1887
    %v1909 = vmul.f32 %v1501, %v1891
    %v1910 = vmul.f32 %v1502, %v1895
    %v1911 = vmul.f32 %v1503, %v1899
    %v1912 = vmul.f32 %v1504, %v1887
    %v1913 = vmul.f32 %v1505, %v1891
    %v1914 = vmul.f32 %v1506, %v1895
    %v1915 = vmul.f32 %v1507, %v1899
    %v1916 = vmul.f32 %v1508, %v1887
    %v1917 = vmul.f32 %v1509, %v1891
    %v1918 = vmul.f32 %v1510, %v1895
    %v1919 = vmul.f32 %v1511, %v1899
    %v1920 = vld [vmem:[%s6] sm:$0xf]
    %v1922 = vlaneseq
    %v1923 = vshrl.u32 %v1922, 7
    %v1924 = vsub.s32 0, %v1923
    %v1925 = vrot.slane %v1920, %v1924
    %v1926 = vlaneseq
    %v1927 = vshrl.u32 %v1926, 7
    %v1928 = vsub.s32 1, %v1927
    %v1929 = vrot.slane %v1920, %v1928
    %v1930 = vlaneseq
    %v1931 = vshrl.u32 %v1930, 7
    %v1932 = vsub.s32 2, %v1931
    %v1933 = vrot.slane %v1920, %v1932
    %v1934 = vlaneseq
    %v1935 = vshrl.u32 %v1934, 7
    %v1936 = vsub.s32 3, %v1935
    %v1937 = vrot.slane %v1920, %v1936
    %v1942 = vadd.f32 %v1904, %v1925
    %v1943 = vadd.f32 %v1905, %v1929
    %v1944 = vadd.f32 %v1906, %v1933
    %v1945 = vadd.f32 %v1907, %v1937
    %v1946 = vadd.f32 %v1908, %v1925
    %v1947 = vadd.f32 %v1909, %v1929
    %v1948 = vadd.f32 %v1910, %v1933
    %v1949 = vadd.f32 %v1911, %v1937
    %v1950 = vadd.f32 %v1912, %v1925
    %v1951 = vadd.f32 %v1913, %v1929
    %v1952 = vadd.f32 %v1914, %v1933
    %v1953 = vadd.f32 %v1915, %v1937
    %v1954 = vadd.f32 %v1916, %v1925
    %v1955 = vadd.f32 %v1917, %v1929
    %v1956 = vadd.f32 %v1918, %v1933
    %v1957 = vadd.f32 %v1919, %v1937
    %v1958 = vmul.f32 %v1942, 0.2
    %v1959 = vmul.f32 %v1943, 0.2
    %v1960 = vmul.f32 %v1944, 0.2
    %v1961 = vmul.f32 %v1945, 0.2
    %v1962 = vmul.f32 %v1946, 0.2
    %v1963 = vmul.f32 %v1947, 0.2
    %v1964 = vmul.f32 %v1948, 0.2
    %v1965 = vmul.f32 %v1949, 0.2
    %v1966 = vmul.f32 %v1950, 0.2
    %v1967 = vmul.f32 %v1951, 0.2
    %v1968 = vmul.f32 %v1952, 0.2
    %v1969 = vmul.f32 %v1953, 0.2
    %v1970 = vmul.f32 %v1954, 0.2
    %v1971 = vmul.f32 %v1955, 0.2
    %v1972 = vmul.f32 %v1956, 0.2
    %v1973 = vmul.f32 %v1957, 0.2
    %v1974 = vmax.f32 %v1942, %v1958
    %v1975 = vmax.f32 %v1943, %v1959
    %v1976 = vmax.f32 %v1944, %v1960
    %v1977 = vmax.f32 %v1945, %v1961
    %v1978 = vmax.f32 %v1946, %v1962
    %v1979 = vmax.f32 %v1947, %v1963
    %v1980 = vmax.f32 %v1948, %v1964
    %v1981 = vmax.f32 %v1949, %v1965
    %v1982 = vmax.f32 %v1950, %v1966
    %v1983 = vmax.f32 %v1951, %v1967
    %v1984 = vmax.f32 %v1952, %v1968
    %v1985 = vmax.f32 %v1953, %v1969
    %v1986 = vmax.f32 %v1954, %v1970
    %v1987 = vmax.f32 %v1955, %v1971
    %v1988 = vmax.f32 %v1956, %v1972
    %v1989 = vmax.f32 %v1957, %v1973
    %v1990 = vld [vmem:[%s7] sm:$0xff]
    %v1991 = vld [vmem:[%s7 + $0x8] sm:$0xff]
    %v1992 = vld [vmem:[%s7 + $0x10] sm:$0xff]
    %v1993 = vld [vmem:[%s7 + $0x18] sm:$0xff]
    %v1994 = vld [vmem:[%s7 + $0x20] sm:$0xff]
    %v1995 = vld [vmem:[%s7 + $0x28] sm:$0xff]
    %v1996 = vld [vmem:[%s7 + $0x30] sm:$0xff]
    %v1997 = vld [vmem:[%s7 + $0x38] sm:$0xff]
    %v1998 = vld [vmem:[%s7 + $0x40] sm:$0xff]
    %v1999 = vld [vmem:[%s7 + $0x48] sm:$0xff]
    %v2000 = vld [vmem:[%s7 + $0x50] sm:$0xff]
    %v2001 = vld [vmem:[%s7 + $0x58] sm:$0xff]
    %v2002 = vld [vmem:[%s7 + $0x60] sm:$0xff]
    %v2003 = vld [vmem:[%s7 + $0x68] sm:$0xff]
    %v2004 = vld [vmem:[%s7 + $0x70] sm:$0xff]
    %v2005 = vld [vmem:[%s7 + $0x78] sm:$0xff]
    %v2006 = vld [vmem:[%s7 + $0x80] sm:$0xff]
    %v2007 = vld [vmem:[%s7 + $0x88] sm:$0xff]
    %v2008 = vld [vmem:[%s7 + $0x90] sm:$0xff]
    %v2009 = vld [vmem:[%s7 + $0x98] sm:$0xff]
    %v2010 = vld [vmem:[%s7 + $0xa0] sm:$0xff]
    %v2011 = vld [vmem:[%s7 + $0xa8] sm:$0xff]
    %v2012 = vld [vmem:[%s7 + $0xb0] sm:$0xff]
    %v2013 = vld [vmem:[%s7 + $0xb8] sm:$0xff]
    %v2014 = vld [vmem:[%s7 + $0xc0] sm:$0xff]
    %v2015 = vld [vmem:[%s7 + $0xc8] sm:$0xff]
    %v2016 = vld [vmem:[%s7 + $0xd0] sm:$0xff]
    %v2017 = vld [vmem:[%s7 + $0xd8] sm:$0xff]
    %v2018 = vld [vmem:[%s7 + $0xe0] sm:$0xff]
    %v2019 = vld [vmem:[%s7 + $0xe8] sm:$0xff]
    %v2020 = vld [vmem:[%s7 + $0xf0] sm:$0xff]
    %v2021 = vld [vmem:[%s7 + $0xf8] sm:$0xff]
    %v2022 = vld [vmem:[%s7 + $0x100] sm:$0xff]
    %v2023 = vld [vmem:[%s7 + $0x108] sm:$0xff]
    %v2024 = vld [vmem:[%s7 + $0x110] sm:$0xff]
    %v2025 = vld [vmem:[%s7 + $0x118] sm:$0xff]
    %v2026 = vld [vmem:[%s7 + $0x120] sm:$0xff]
    %v2027 = vld [vmem:[%s7 + $0x128] sm:$0xff]
    %v2028 = vld [vmem:[%s7 + $0x130] sm:$0xff]
    %v2029 = vld [vmem:[%s7 + $0x138] sm:$0xff]
    %v2030 = vld [vmem:[%s7 + $0x140] sm:$0xff]
    %v2031 = vld [vmem:[%s7 + $0x148] sm:$0xff]
    %v2032 = vld [vmem:[%s7 + $0x150] sm:$0xff]
    %v2033 = vld [vmem:[%s7 + $0x158] sm:$0xff]
    %v2034 = vld [vmem:[%s7 + $0x160] sm:$0xff]
    %v2035 = vld [vmem:[%s7 + $0x168] sm:$0xff]
    %v2036 = vld [vmem:[%s7 + $0x170] sm:$0xff]
    %v2037 = vld [vmem:[%s7 + $0x178] sm:$0xff]
    %v2038 = vld [vmem:[%s7 + $0x180] sm:$0xff]
    %v2039 = vld [vmem:[%s7 + $0x188] sm:$0xff]
    %v2040 = vld [vmem:[%s7 + $0x190] sm:$0xff]
    %v2041 = vld [vmem:[%s7 + $0x198] sm:$0xff]
    %v2042 = vld [vmem:[%s7 + $0x1a0] sm:$0xff]
    %v2043 = vld [vmem:[%s7 + $0x1a8] sm:$0xff]
    %v2044 = vld [vmem:[%s7 + $0x1b0] sm:$0xff]
    %v2045 = vld [vmem:[%s7 + $0x1b8] sm:$0xff]
    %v2046 = vld [vmem:[%s7 + $0x1c0] sm:$0xff]
    %v2047 = vld [vmem:[%s7 + $0x1c8] sm:$0xff]
    %v2048 = vld [vmem:[%s7 + $0x1d0] sm:$0xff]
    %v2049 = vld [vmem:[%s7 + $0x1d8] sm:$0xff]
    %v2050 = vld [vmem:[%s7 + $0x1e0] sm:$0xff]
    %v2051 = vld [vmem:[%s7 + $0x1e8] sm:$0xff]
    %v2052 = vld [vmem:[%s7 + $0x1f0] sm:$0xff]
    %v2053 = vld [vmem:[%s7 + $0x1f8] sm:$0xff]
    %v2054 = vpack.c.bf16 %v1978, %v1974
    %v2055 = vpack.c.bf16 %v1979, %v1975
    %v2056 = vpack.c.bf16 %v1980, %v1976
    %v2057 = vpack.c.bf16 %v1981, %v1977
    %v2058 = vpack.c.bf16 %v1986, %v1982
    %v2059 = vpack.c.bf16 %v1987, %v1983
    %v2060 = vpack.c.bf16 %v1988, %v1984
    %v2061 = vpack.c.bf16 %v1989, %v1985
    %v2126 = vunpack.c.l.b16 %v1990
    %v2127 = vunpack.c.h.b16 %v1990
    %v2128 = vunpack.c.l.b16 %v1991
    %v2129 = vunpack.c.h.b16 %v1991
    %v2130 = vunpack.c.l.b16 %v1992
    %v2131 = vunpack.c.h.b16 %v1992
    %v2132 = vunpack.c.l.b16 %v1993
    %v2133 = vunpack.c.h.b16 %v1993
    %v2134 = vunpack.c.l.b16 %v1994
    %v2135 = vunpack.c.h.b16 %v1994
    %v2136 = vunpack.c.l.b16 %v1995
    %v2137 = vunpack.c.h.b16 %v1995
    %v2138 = vunpack.c.l.b16 %v1996
    %v2139 = vunpack.c.h.b16 %v1996
    %v2140 = vunpack.c.l.b16 %v1997
    %v2141 = vunpack.c.h.b16 %v1997
    %v2142 = vunpack.c.l.b16 %v1998
    %v2143 = vunpack.c.h.b16 %v1998
    %v2144 = vunpack.c.l.b16 %v1999
    %v2145 = vunpack.c.h.b16 %v1999
    %v2146 = vunpack.c.l.b16 %v2000
    %v2147 = vunpack.c.h.b16 %v2000
    %v2148 = vunpack.c.l.b16 %v2001
    %v2149 = vunpack.c.h.b16 %v2001
    %v2150 = vunpack.c.l.b16 %v2002
    %v2151 = vunpack.c.h.b16 %v2002
    %v2152 = vunpack.c.l.b16 %v2003
    %v2153 = vunpack.c.h.b16 %v2003
    %v2154 = vunpack.c.l.b16 %v2004
    %v2155 = vunpack.c.h.b16 %v2004
    %v2156 = vunpack.c.l.b16 %v2005
    %v2157 = vunpack.c.h.b16 %v2005
    %v2158 = vunpack.c.l.b16 %v2006
    %v2159 = vunpack.c.h.b16 %v2006
    %v2160 = vunpack.c.l.b16 %v2007
    %v2161 = vunpack.c.h.b16 %v2007
    %v2162 = vunpack.c.l.b16 %v2008
    %v2163 = vunpack.c.h.b16 %v2008
    %v2164 = vunpack.c.l.b16 %v2009
    %v2165 = vunpack.c.h.b16 %v2009
    %v2166 = vunpack.c.l.b16 %v2010
    %v2167 = vunpack.c.h.b16 %v2010
    %v2168 = vunpack.c.l.b16 %v2011
    %v2169 = vunpack.c.h.b16 %v2011
    %v2170 = vunpack.c.l.b16 %v2012
    %v2171 = vunpack.c.h.b16 %v2012
    %v2172 = vunpack.c.l.b16 %v2013
    %v2173 = vunpack.c.h.b16 %v2013
    %v2174 = vunpack.c.l.b16 %v2014
    %v2175 = vunpack.c.h.b16 %v2014
    %v2176 = vunpack.c.l.b16 %v2015
    %v2177 = vunpack.c.h.b16 %v2015
    %v2178 = vunpack.c.l.b16 %v2016
    %v2179 = vunpack.c.h.b16 %v2016
    %v2180 = vunpack.c.l.b16 %v2017
    %v2181 = vunpack.c.h.b16 %v2017
    %v2182 = vunpack.c.l.b16 %v2018
    %v2183 = vunpack.c.h.b16 %v2018
    %v2184 = vunpack.c.l.b16 %v2019
    %v2185 = vunpack.c.h.b16 %v2019
    %v2186 = vunpack.c.l.b16 %v2020
    %v2187 = vunpack.c.h.b16 %v2020
    %v2188 = vunpack.c.l.b16 %v2021
    %v2189 = vunpack.c.h.b16 %v2021
    %v2190 = vunpack.c.l.b16 %v2022
    %v2191 = vunpack.c.h.b16 %v2022
    %v2192 = vunpack.c.l.b16 %v2023
    %v2193 = vunpack.c.h.b16 %v2023
    %v2194 = vunpack.c.l.b16 %v2024
    %v2195 = vunpack.c.h.b16 %v2024
    %v2196 = vunpack.c.l.b16 %v2025
    %v2197 = vunpack.c.h.b16 %v2025
    %v2198 = vunpack.c.l.b16 %v2026
    %v2199 = vunpack.c.h.b16 %v2026
    %v2200 = vunpack.c.l.b16 %v2027
    %v2201 = vunpack.c.h.b16 %v2027
    %v2202 = vunpack.c.l.b16 %v2028
    %v2203 = vunpack.c.h.b16 %v2028
    %v2204 = vunpack.c.l.b16 %v2029
    %v2205 = vunpack.c.h.b16 %v2029
    %v2206 = vunpack.c.l.b16 %v2030
    %v2207 = vunpack.c.h.b16 %v2030
    %v2208 = vunpack.c.l.b16 %v2031
    %v2209 = vunpack.c.h.b16 %v2031
    %v2210 = vunpack.c.l.b16 %v2032
    %v2211 = vunpack.c.h.b16 %v2032
    %v2212 = vunpack.c.l.b16 %v2033
    %v2213 = vunpack.c.h.b16 %v2033
    %v2214 = vunpack.c.l.b16 %v2034
    %v2215 = vunpack.c.h.b16 %v2034
    %v2216 = vunpack.c.l.b16 %v2035
    %v2217 = vunpack.c.h.b16 %v2035
    %v2218 = vunpack.c.l.b16 %v2036
    %v2219 = vunpack.c.h.b16 %v2036
    %v2220 = vunpack.c.l.b16 %v2037
    %v2221 = vunpack.c.h.b16 %v2037
    %v2222 = vunpack.c.l.b16 %v2038
    %v2223 = vunpack.c.h.b16 %v2038
    %v2224 = vunpack.c.l.b16 %v2039
    %v2225 = vunpack.c.h.b16 %v2039
    %v2226 = vunpack.c.l.b16 %v2040
    %v2227 = vunpack.c.h.b16 %v2040
    %v2228 = vunpack.c.l.b16 %v2041
    %v2229 = vunpack.c.h.b16 %v2041
    %v2230 = vunpack.c.l.b16 %v2042
    %v2231 = vunpack.c.h.b16 %v2042
    %v2232 = vunpack.c.l.b16 %v2043
    %v2233 = vunpack.c.h.b16 %v2043
    %v2234 = vunpack.c.l.b16 %v2044
    %v2235 = vunpack.c.h.b16 %v2044
    %v2236 = vunpack.c.l.b16 %v2045
    %v2237 = vunpack.c.h.b16 %v2045
    %v2238 = vunpack.c.l.b16 %v2046
    %v2239 = vunpack.c.h.b16 %v2046
    %v2240 = vunpack.c.l.b16 %v2047
    %v2241 = vunpack.c.h.b16 %v2047
    %v2242 = vunpack.c.l.b16 %v2048
    %v2243 = vunpack.c.h.b16 %v2048
    %v2244 = vunpack.c.l.b16 %v2049
    %v2245 = vunpack.c.h.b16 %v2049
    %v2246 = vunpack.c.l.b16 %v2050
    %v2247 = vunpack.c.h.b16 %v2050
    %v2248 = vunpack.c.l.b16 %v2051
    %v2249 = vunpack.c.h.b16 %v2051
    %v2250 = vunpack.c.l.b16 %v2052
    %v2251 = vunpack.c.h.b16 %v2052
    %v2252 = vunpack.c.l.b16 %v2053
    %v2253 = vunpack.c.h.b16 %v2053
    %v2254 = vpack.c.b16 %v2128, %v2126
    %v2255 = vpack.c.b16 %v2129, %v2127
    %v2256 = vpack.c.b16 %v2132, %v2130
    %v2257 = vpack.c.b16 %v2133, %v2131
    %v2258 = vpack.c.b16 %v2136, %v2134
    %v2259 = vpack.c.b16 %v2137, %v2135
    %v2260 = vpack.c.b16 %v2140, %v2138
    %v2261 = vpack.c.b16 %v2141, %v2139
    %v2262 = vpack.c.b16 %v2144, %v2142
    %v2263 = vpack.c.b16 %v2145, %v2143
    %v2264 = vpack.c.b16 %v2148, %v2146
    %v2265 = vpack.c.b16 %v2149, %v2147
    %v2266 = vpack.c.b16 %v2152, %v2150
    %v2267 = vpack.c.b16 %v2153, %v2151
    %v2268 = vpack.c.b16 %v2156, %v2154
    %v2269 = vpack.c.b16 %v2157, %v2155
    %v2270 = vpack.c.b16 %v2160, %v2158
    %v2271 = vpack.c.b16 %v2161, %v2159
    %v2272 = vpack.c.b16 %v2164, %v2162
    %v2273 = vpack.c.b16 %v2165, %v2163
    %v2274 = vpack.c.b16 %v2168, %v2166
    %v2275 = vpack.c.b16 %v2169, %v2167
    %v2276 = vpack.c.b16 %v2172, %v2170
    %v2277 = vpack.c.b16 %v2173, %v2171
    %v2278 = vpack.c.b16 %v2176, %v2174
    %v2279 = vpack.c.b16 %v2177, %v2175
    %v2280 = vpack.c.b16 %v2180, %v2178
    %v2281 = vpack.c.b16 %v2181, %v2179
    %v2282 = vpack.c.b16 %v2184, %v2182
    %v2283 = vpack.c.b16 %v2185, %v2183
    %v2284 = vpack.c.b16 %v2188, %v2186
    %v2285 = vpack.c.b16 %v2189, %v2187
    %v2286 = vpack.c.b16 %v2192, %v2190
    %v2287 = vpack.c.b16 %v2193, %v2191
    %v2288 = vpack.c.b16 %v2196, %v2194
    %v2289 = vpack.c.b16 %v2197, %v2195
    %v2290 = vpack.c.b16 %v2200, %v2198
    %v2291 = vpack.c.b16 %v2201, %v2199
    %v2292 = vpack.c.b16 %v2204, %v2202
    %v2293 = vpack.c.b16 %v2205, %v2203
    %v2294 = vpack.c.b16 %v2208, %v2206
    %v2295 = vpack.c.b16 %v2209, %v2207
    %v2296 = vpack.c.b16 %v2212, %v2210
    %v2297 = vpack.c.b16 %v2213, %v2211
    %v2298 = vpack.c.b16 %v2216, %v2214
    %v2299 = vpack.c.b16 %v2217, %v2215
    %v2300 = vpack.c.b16 %v2220, %v2218
    %v2301 = vpack.c.b16 %v2221, %v2219
    %v2302 = vpack.c.b16 %v2224, %v2222
    %v2303 = vpack.c.b16 %v2225, %v2223
    %v2304 = vpack.c.b16 %v2228, %v2226
    %v2305 = vpack.c.b16 %v2229, %v2227
    %v2306 = vpack.c.b16 %v2232, %v2230
    %v2307 = vpack.c.b16 %v2233, %v2231
    %v2308 = vpack.c.b16 %v2236, %v2234
    %v2309 = vpack.c.b16 %v2237, %v2235
    %v2310 = vpack.c.b16 %v2240, %v2238
    %v2311 = vpack.c.b16 %v2241, %v2239
    %v2312 = vpack.c.b16 %v2244, %v2242
    %v2313 = vpack.c.b16 %v2245, %v2243
    %v2314 = vpack.c.b16 %v2248, %v2246
    %v2315 = vpack.c.b16 %v2249, %v2247
    %v2316 = vpack.c.b16 %v2252, %v2250
    %v2317 = vpack.c.b16 %v2253, %v2251
    %2382 = vmatprep.subr.bf16.mxu0 %v2255
    %2383 = vmatpush1.bf16.msra.mxu0 %v2254
    %2384 = vmatprep.subr.bf16.mxu0 %v2257
    %2385 = vmatpush1.bf16.msra.mxu0 %v2256
    %2386 = vmatprep.subr.bf16.mxu0 %v2259
    %2387 = vmatpush1.bf16.msra.mxu0 %v2258
    %2388 = vmatprep.subr.bf16.mxu0 %v2261
    %2389 = vmatpush1.bf16.msra.mxu0 %v2260
    %2390 = vmatprep.subr.bf16.mxu0 %v2263
    %2391 = vmatpush1.bf16.msra.mxu0 %v2262
    %2392 = vmatprep.subr.bf16.mxu0 %v2265
    %2393 = vmatpush1.bf16.msra.mxu0 %v2264
    %2394 = vmatprep.subr.bf16.mxu0 %v2267
    %2395 = vmatpush1.bf16.msra.mxu0 %v2266
    %2396 = vmatprep.subr.bf16.mxu0 %v2269
    %2397 = vmatpush1.bf16.msra.mxu0 %v2268
    %2398 = vmatprep.subr.bf16.mxu0 %v2271
    %2399 = vmatpush1.bf16.msra.mxu0 %v2270
    %2400 = vmatprep.subr.bf16.mxu0 %v2273
    %2401 = vmatpush1.bf16.msra.mxu0 %v2272
    %2402 = vmatprep.subr.bf16.mxu0 %v2275
    %2403 = vmatpush1.bf16.msra.mxu0 %v2274
    %2404 = vmatprep.subr.bf16.mxu0 %v2277
    %2405 = vmatpush1.bf16.msra.mxu0 %v2276
    %2406 = vmatprep.subr.bf16.mxu0 %v2279
    %2407 = vmatpush1.bf16.msra.mxu0 %v2278
    %2408 = vmatprep.subr.bf16.mxu0 %v2281
    %2409 = vmatpush1.bf16.msra.mxu0 %v2280
    %2410 = vmatprep.subr.bf16.mxu0 %v2283
    %2411 = vmatpush1.bf16.msra.mxu0 %v2282
    %2412 = vmatprep.subr.bf16.mxu0 %v2285
    %2413 = vmatpush1.bf16.msra.mxu0 %v2284
    %2414 = vmatprep.mubr.bf16.mxu0 %v2055
    %2415 = vmatmul.mubr.bf16.gmra.mrb[0].mxu0 %v2054
    %v2416 = vpop.f32.mrb[0].mxu0
    %v2417 = vadd.f32 0.0, %v2416
    %v2418 = vpop.f32.mrb[0].mxu0
    %v2419 = vadd.f32 0.0, %v2418
    %v2420 = vpop.f32.mrb[0].mxu0
    %v2421 = vadd.f32 0.0, %v2420
    %v2422 = vpop.f32.mrb[0].mxu0
    %v2423 = vadd.f32 0.0, %v2422
    %2424 = vmatprep.mubr.bf16.mxu0 %v2059
    %2425 = vmatmul.mubr.bf16.gmra.mrb[0].mxu0 %v2058
    %v2426 = vpop.f32.mrb[0].mxu0
    %v2427 = vadd.f32 0.0, %v2426
    %v2428 = vpop.f32.mrb[0].mxu0
    %v2429 = vadd.f32 0.0, %v2428
    %v2430 = vpop.f32.mrb[0].mxu0
    %v2431 = vadd.f32 0.0, %v2430
    %v2432 = vpop.f32.mrb[0].mxu0
    %v2433 = vadd.f32 0.0, %v2432
    %2434 = vdwg.mxu0
    %2435 = vmatprep.subr.bf16.mxu0 %v2287
    %2436 = vmatpush1.bf16.msra.mxu0 %v2286
    %2437 = vmatprep.subr.bf16.mxu0 %v2289
    %2438 = vmatpush1.bf16.msra.mxu0 %v2288
    %2439 = vmatprep.subr.bf16.mxu0 %v2291
    %2440 = vmatpush1.bf16.msra.mxu0 %v2290
    %2441 = vmatprep.subr.bf16.mxu0 %v2293
    %2442 = vmatpush1.bf16.msra.mxu0 %v2292
    %2443 = vmatprep.subr.bf16.mxu0 %v2295
    %2444 = vmatpush1.bf16.msra.mxu0 %v2294
    %2445 = vmatprep.subr.bf16.mxu0 %v2297
    %2446 = vmatpush1.bf16.msra.mxu0 %v2296
    %2447 = vmatprep.subr.bf16.mxu0 %v2299
    %2448 = vmatpush1.bf16.msra.mxu0 %v2298
    %2449 = vmatprep.subr.bf16.mxu0 %v2301
    %2450 = vmatpush1.bf16.msra.mxu0 %v2300
    %2451 = vmatprep.subr.bf16.mxu0 %v2303
    %2452 = vmatpush1.bf16.msra.mxu0 %v2302
    %2453 = vmatprep.subr.bf16.mxu0 %v2305
    %2454 = vmatpush1.bf16.msra.mxu0 %v2304
    %2455 = vmatprep.subr.bf16.mxu0 %v2307
    %2456 = vmatpush1.bf16.msra.mxu0 %v2306
    %2457 = vmatprep.subr.bf16.mxu0 %v2309
    %2458 = vmatpush1.bf16.msra.mxu0 %v2308
    %2459 = vmatprep.subr.bf16.mxu0 %v2311
    %2460 = vmatpush1.bf16.msra.mxu0 %v2310
    %2461 = vmatprep.subr.bf16.mxu0 %v2313
    %2462 = vmatpush1.bf16.msra.mxu0 %v2312
    %2463 = vmatprep.subr.bf16.mxu0 %v2315
    %2464 = vmatpush1.bf16.msra.mxu0 %v2314
    %2465 = vmatprep.subr.bf16.mxu0 %v2317
    %2466 = vmatpush1.bf16.msra.mxu0 %v2316
    %2467 = vmatprep.mubr.bf16.mxu0 %v2057
    %2468 = vmatmul.mubr.bf16.gmra.mrb[0].mxu0 %v2056
    %v2469 = vpop.f32.mrb[0].mxu0
    %v2470 = vadd.f32 %v2417, %v2469
    %v2471 = vpop.f32.mrb[0].mxu0
    %v2472 = vadd.f32 %v2419, %v2471
    %v2473 = vpop.f32.mrb[0].mxu0
    %v2474 = vadd.f32 %v2421, %v2473
    %v2475 = vpop.f32.mrb[0].mxu0
    %v2476 = vadd.f32 %v2423, %v2475
    %2477 = vmatprep.mubr.bf16.mxu0 %v2061
    %2478 = vmatmul.mubr.bf16.gmra.mrb[0].mxu0 %v2060
    %v2479 = vpop.f32.mrb[0].mxu0
    %v2480 = vadd.f32 %v2427, %v2479
    %v2481 = vpop.f32.mrb[0].mxu0
    %v2482 = vadd.f32 %v2429, %v2481
    %v2483 = vpop.f32.mrb[0].mxu0
    %v2484 = vadd.f32 %v2431, %v2483
    %v2485 = vpop.f32.mrb[0].mxu0
    %v2486 = vadd.f32 %v2433, %v2485
    %2487 = vdwg.mxu0
    %v2488 = vadd.f32 %v2470, %v2474
    %v2489 = vadd.f32 %v2488, %v2480
    %v2490 = vadd.f32 %v2489, %v2484
    %v2491 = vrot.slane %v2490, 4
    %v2492 = vadd.f32 %v2490, %v2491
    %v2493 = vrot.slane %v2492, 2
    %v2494 = vadd.f32 %v2492, %v2493
    %v2495 = vrot.slane %v2494, 1
    %v2496 = vadd.f32 %v2494, %v2495
    %v2497 = vadd.f32 %v2472, %v2476
    %v2498 = vadd.f32 %v2497, %v2482
    %v2499 = vadd.f32 %v2498, %v2486
    %v2500 = vrot.slane %v2499, 4
    %v2501 = vadd.f32 %v2499, %v2500
    %v2502 = vrot.slane %v2501, 2
    %v2503 = vadd.f32 %v2501, %v2502
    %v2504 = vrot.slane %v2503, 1
    %v2505 = vadd.f32 %v2503, %v2504
    %v2506 = vld [vmem:[%s8] sm:$0xff]
    %v2507 = vld [vmem:[%s8 + $0x8] sm:$0xff]
    %v2508 = vld [vmem:[%s8 + $0x10] sm:$0xff]
    %v2509 = vld [vmem:[%s8 + $0x18] sm:$0xff]
    %v2510 = vld [vmem:[%s8 + $0x20] sm:$0xff]
    %v2511 = vld [vmem:[%s8 + $0x28] sm:$0xff]
    %v2512 = vld [vmem:[%s8 + $0x30] sm:$0xff]
    %v2513 = vld [vmem:[%s8 + $0x38] sm:$0xff]
    %v2514 = vld [vmem:[%s8 + $0x40] sm:$0xff]
    %v2515 = vld [vmem:[%s8 + $0x48] sm:$0xff]
    %v2516 = vld [vmem:[%s8 + $0x50] sm:$0xff]
    %v2517 = vld [vmem:[%s8 + $0x58] sm:$0xff]
    %v2518 = vld [vmem:[%s8 + $0x60] sm:$0xff]
    %v2519 = vld [vmem:[%s8 + $0x68] sm:$0xff]
    %v2520 = vld [vmem:[%s8 + $0x70] sm:$0xff]
    %v2521 = vld [vmem:[%s8 + $0x78] sm:$0xff]
    %v2522 = vld [vmem:[%s8 + $0x80] sm:$0xff]
    %v2523 = vld [vmem:[%s8 + $0x88] sm:$0xff]
    %v2524 = vld [vmem:[%s8 + $0x90] sm:$0xff]
    %v2525 = vld [vmem:[%s8 + $0x98] sm:$0xff]
    %v2526 = vld [vmem:[%s8 + $0xa0] sm:$0xff]
    %v2527 = vld [vmem:[%s8 + $0xa8] sm:$0xff]
    %v2528 = vld [vmem:[%s8 + $0xb0] sm:$0xff]
    %v2529 = vld [vmem:[%s8 + $0xb8] sm:$0xff]
    %v2530 = vld [vmem:[%s8 + $0xc0] sm:$0xff]
    %v2531 = vld [vmem:[%s8 + $0xc8] sm:$0xff]
    %v2532 = vld [vmem:[%s8 + $0xd0] sm:$0xff]
    %v2533 = vld [vmem:[%s8 + $0xd8] sm:$0xff]
    %v2534 = vld [vmem:[%s8 + $0xe0] sm:$0xff]
    %v2535 = vld [vmem:[%s8 + $0xe8] sm:$0xff]
    %v2536 = vld [vmem:[%s8 + $0xf0] sm:$0xff]
    %v2537 = vld [vmem:[%s8 + $0xf8] sm:$0xff]
    %2538 = vmatprep.subr.mxu0 0.0
    %2539 = vmatpush1.msra.mxu0 %v2506
    %2540 = vmatprep.subr.mxu0 0.0
    %2541 = vmatpush1.msra.mxu0 %v2507
    %2542 = vmatprep.subr.mxu0 0.0
    %2543 = vmatpush1.msra.mxu0 %v2508
    %2544 = vmatprep.subr.mxu0 0.0
    %2545 = vmatpush1.msra.mxu0 %v2509
    %2546 = vmatprep.subr.mxu0 0.0
    %2547 = vmatpush1.msra.mxu0 %v2510
    %2548 = vmatprep.subr.mxu0 0.0
    %2549 = vmatpush1.msra.mxu0 %v2511
    %2550 = vmatprep.subr.mxu0 0.0
    %2551 = vmatpush1.msra.mxu0 %v2512
    %2552 = vmatprep.subr.mxu0 0.0
    %2553 = vmatpush1.msra.mxu0 %v2513
    %2554 = vmatprep.subr.mxu0 0.0
    %2555 = vmatpush1.msra.mxu0 %v2514
    %2556 = vmatprep.subr.mxu0 0.0
    %2557 = vmatpush1.msra.mxu0 %v2515
    %2558 = vmatprep.subr.mxu0 0.0
    %2559 = vmatpush1.msra.mxu0 %v2516
    %2560 = vmatprep.subr.mxu0 0.0
    %2561 = vmatpush1.msra.mxu0 %v2517
    %2562 = vmatprep.subr.mxu0 0.0
    %2563 = vmatpush1.msra.mxu0 %v2518
    %2564 = vmatprep.subr.mxu0 0.0
    %2565 = vmatpush1.msra.mxu0 %v2519
    %2566 = vmatprep.subr.mxu0 0.0
    %2567 = vmatpush1.msra.mxu0 %v2520
    %2568 = vmatprep.subr.mxu0 0.0
    %2569 = vmatpush1.msra.mxu0 %v2521
    %2570 = vmatprep.subr.mxu0 0.0
    %2571 = vmatpush1.msra.mxu0 %v2522
    %2572 = vmatprep.subr.mxu0 0.0
    %2573 = vmatpush1.msra.mxu0 %v2523
    %2574 = vmatprep.subr.mxu0 0.0
    %2575 = vmatpush1.msra.mxu0 %v2524
    %2576 = vmatprep.subr.mxu0 0.0
    %2577 = vmatpush1.msra.mxu0 %v2525
    %2578 = vmatprep.subr.mxu0 0.0
    %2579 = vmatpush1.msra.mxu0 %v2526
    %2580 = vmatprep.subr.mxu0 0.0
    %2581 = vmatpush1.msra.mxu0 %v2527
    %2582 = vmatprep.subr.mxu0 0.0
    %2583 = vmatpush1.msra.mxu0 %v2528
    %2584 = vmatprep.subr.mxu0 0.0
    %2585 = vmatpush1.msra.mxu0 %v2529
    %2586 = vmatprep.subr.mxu0 0.0
    %2587 = vmatpush1.msra.mxu0 %v2530
    %2588 = vmatprep.subr.mxu0 0.0
    %2589 = vmatpush1.msra.mxu0 %v2531
    %2590 = vmatprep.subr.mxu0 0.0
    %2591 = vmatpush1.msra.mxu0 %v2532
    %2592 = vmatprep.subr.mxu0 0.0
    %2593 = vmatpush1.msra.mxu0 %v2533
    %2594 = vmatprep.subr.mxu0 0.0
    %2595 = vmatpush1.msra.mxu0 %v2534
    %2596 = vmatprep.subr.mxu0 0.0
    %2597 = vmatpush1.msra.mxu0 %v2535
    %2598 = vmatprep.subr.mxu0 0.0
    %2599 = vmatpush1.msra.mxu0 %v2536
    %2600 = vmatprep.subr.mxu0 0.0
    %2601 = vmatpush1.msra.mxu0 %v2537
    %2602 = vmatprep.mubr.f32.mxu0 %v2505
    %2603 = vmatmul.mubr.f32.gmra.mrb[0].mxu0 %v2496
    %v2604 = vpop.f32.mrb[0].mxu0
    %v2605 = vadd.f32 0.0, %v2604
    %v2606 = vpop.f32.mrb[0].mxu0
    %2607 = vdwg.mxu0
    %v2608 = vmul.f32 %v2605, 0.0009765625
    %v2609 = vld [vmem:[%s9] sm:$0xff]
    %v2610 = vld [vmem:[%s9 + $0x8] sm:$0xff]
    %vm2611 = vcmask 64512
    %v2613 = vsel %vm2611, %v2608, 0
    %2615 = vmatprep.subr.mxu0 %v2610
    %2616 = vmatpush1.msra.mxu0 %v2609
    %2617 = vmatprep.subr.mxu0 0.0
    %2618 = vmatpush1.msra.mxu0 0.0
    %2619 = vmatprep.subr.mxu0 0.0
    %2620 = vmatpush1.msra.mxu0 0.0
    %2621 = vmatprep.subr.mxu0 0.0
    %2622 = vmatpush1.msra.mxu0 0.0
    %2623 = vmatprep.subr.mxu0 0.0
    %2624 = vmatpush1.msra.mxu0 0.0
    %2625 = vmatprep.subr.mxu0 0.0
    %2626 = vmatpush1.msra.mxu0 0.0
    %2627 = vmatprep.subr.mxu0 0.0
    %2628 = vmatpush1.msra.mxu0 0.0
    %2629 = vmatprep.subr.mxu0 0.0
    %2630 = vmatpush1.msra.mxu0 0.0
    %2631 = vmatprep.subr.mxu0 0.0
    %2632 = vmatpush1.msra.mxu0 0.0
    %2633 = vmatprep.subr.mxu0 0.0
    %2634 = vmatpush1.msra.mxu0 0.0
    %2635 = vmatprep.subr.mxu0 0.0
    %2636 = vmatpush1.msra.mxu0 0.0
    %2637 = vmatprep.subr.mxu0 0.0
    %2638 = vmatpush1.msra.mxu0 0.0
    %2639 = vmatprep.subr.mxu0 0.0
    %2640 = vmatpush1.msra.mxu0 0.0
    %2641 = vmatprep.subr.mxu0 0.0
    %2642 = vmatpush1.msra.mxu0 0.0
    %2643 = vmatprep.subr.mxu0 0.0
    %2644 = vmatpush1.msra.mxu0 0.0
    %2645 = vmatprep.subr.mxu0 0.0
    %2646 = vmatpush1.msra.mxu0 0.0
    %2647 = vmatprep.subr.mxu0 0.0
    %2648 = vmatpush1.msra.mxu0 0.0
    %2649 = vmatprep.subr.mxu0 0.0
    %2650 = vmatpush1.msra.mxu0 0.0
    %2651 = vmatprep.subr.mxu0 0.0
    %2652 = vmatpush1.msra.mxu0 0.0
    %2653 = vmatprep.subr.mxu0 0.0
    %2654 = vmatpush1.msra.mxu0 0.0
    %2655 = vmatprep.subr.mxu0 0.0
    %2656 = vmatpush1.msra.mxu0 0.0
    %2657 = vmatprep.subr.mxu0 0.0
    %2658 = vmatpush1.msra.mxu0 0.0
    %2659 = vmatprep.subr.mxu0 0.0
    %2660 = vmatpush1.msra.mxu0 0.0
    %2661 = vmatprep.subr.mxu0 0.0
    %2662 = vmatpush1.msra.mxu0 0.0
    %2663 = vmatprep.subr.mxu0 0.0
    %2664 = vmatpush1.msra.mxu0 0.0
    %2665 = vmatprep.subr.mxu0 0.0
    %2666 = vmatpush1.msra.mxu0 0.0
    %2667 = vmatprep.subr.mxu0 0.0
    %2668 = vmatpush1.msra.mxu0 0.0
    %2669 = vmatprep.subr.mxu0 0.0
    %2670 = vmatpush1.msra.mxu0 0.0
    %2671 = vmatprep.subr.mxu0 0.0
    %2672 = vmatpush1.msra.mxu0 0.0
    %2673 = vmatprep.subr.mxu0 0.0
    %2674 = vmatpush1.msra.mxu0 0.0
    %2675 = vmatprep.subr.mxu0 0.0
    %2676 = vmatpush1.msra.mxu0 0.0
    %2677 = vmatprep.subr.mxu0 0.0
    %2678 = vmatpush1.msra.mxu0 0.0
    %2679 = vmatprep.mubr.f32.mxu0 0.0
    %2680 = vmatmul.mubr.f32.gmra.mrb[0].mxu0 %v2613
    %v2681 = vpop.f32.mrb[0].mxu0
    %v2682 = vadd.f32 0.0, %v2681
    %v2683 = vpop.f32.mrb[0].mxu0
    %v2684 = vadd.f32 0.0, %v2683
    %2685 = vdwg.mxu0
    %v2686 = vlaneseq
    %v2687 = vshrl.u32 %v2686, 7
    %v2688 = vsub.s32 0, %v2687
    %v2689 = vrot.slane %v2682, %v2688
    %v2690 = vlaneseq
    %v2691 = vshrl.u32 %v2690, 7
    %v2692 = vsub.s32 0, %v2691
    %v2693 = vrot.slane %v2684, %v2692
    %v2694 = vsub.f32 %v2470, %v2689
    %v2695 = vsub.f32 %v2472, %v2693
    %v2696 = vsub.f32 %v2474, %v2689
    %v2697 = vsub.f32 %v2476, %v2693
    %v2698 = vsub.f32 %v2480, %v2689
    %v2699 = vsub.f32 %v2482, %v2693
    %v2700 = vsub.f32 %v2484, %v2689
    %v2701 = vsub.f32 %v2486, %v2693
    %v2702 = vmul.f32 %v2694, %v2694
    %v2703 = vmul.f32 %v2695, %v2695
    %v2704 = vmul.f32 %v2696, %v2696
    %v2705 = vmul.f32 %v2697, %v2697
    %v2706 = vmul.f32 %v2698, %v2698
    %v2707 = vmul.f32 %v2699, %v2699
    %v2708 = vmul.f32 %v2700, %v2700
    %v2709 = vmul.f32 %v2701, %v2701
    %v2710 = vadd.f32 %v2702, %v2704
    %v2711 = vadd.f32 %v2710, %v2706
    %v2712 = vadd.f32 %v2711, %v2708
    %v2713 = vrot.slane %v2712, 4
    %v2714 = vadd.f32 %v2712, %v2713
    %v2715 = vrot.slane %v2714, 2
    %v2716 = vadd.f32 %v2714, %v2715
    %v2717 = vrot.slane %v2716, 1
    %v2718 = vadd.f32 %v2716, %v2717
    %v2719 = vadd.f32 %v2703, %v2705
    %v2720 = vadd.f32 %v2719, %v2707
    %v2721 = vadd.f32 %v2720, %v2709
    %v2722 = vrot.slane %v2721, 4
    %v2723 = vadd.f32 %v2721, %v2722
    %v2724 = vrot.slane %v2723, 2
    %v2725 = vadd.f32 %v2723, %v2724
    %v2726 = vrot.slane %v2725, 1
    %v2727 = vadd.f32 %v2725, %v2726
    %2728 = vmatprep.subr.mxu0 0.0
    %2729 = vmatpush1.msra.mxu0 %v2506
    %2730 = vmatprep.subr.mxu0 0.0
    %2731 = vmatpush1.msra.mxu0 %v2507
    %2732 = vmatprep.subr.mxu0 0.0
    %2733 = vmatpush1.msra.mxu0 %v2508
    %2734 = vmatprep.subr.mxu0 0.0
    %2735 = vmatpush1.msra.mxu0 %v2509
    %2736 = vmatprep.subr.mxu0 0.0
    %2737 = vmatpush1.msra.mxu0 %v2510
    %2738 = vmatprep.subr.mxu0 0.0
    %2739 = vmatpush1.msra.mxu0 %v2511
    %2740 = vmatprep.subr.mxu0 0.0
    %2741 = vmatpush1.msra.mxu0 %v2512
    %2742 = vmatprep.subr.mxu0 0.0
    %2743 = vmatpush1.msra.mxu0 %v2513
    %2744 = vmatprep.subr.mxu0 0.0
    %2745 = vmatpush1.msra.mxu0 %v2514
    %2746 = vmatprep.subr.mxu0 0.0
    %2747 = vmatpush1.msra.mxu0 %v2515
    %2748 = vmatprep.subr.mxu0 0.0
    %2749 = vmatpush1.msra.mxu0 %v2516
    %2750 = vmatprep.subr.mxu0 0.0
    %2751 = vmatpush1.msra.mxu0 %v2517
    %2752 = vmatprep.subr.mxu0 0.0
    %2753 = vmatpush1.msra.mxu0 %v2518
    %2754 = vmatprep.subr.mxu0 0.0
    %2755 = vmatpush1.msra.mxu0 %v2519
    %2756 = vmatprep.subr.mxu0 0.0
    %2757 = vmatpush1.msra.mxu0 %v2520
    %2758 = vmatprep.subr.mxu0 0.0
    %2759 = vmatpush1.msra.mxu0 %v2521
    %2760 = vmatprep.subr.mxu0 0.0
    %2761 = vmatpush1.msra.mxu0 %v2522
    %2762 = vmatprep.subr.mxu0 0.0
    %2763 = vmatpush1.msra.mxu0 %v2523
    %2764 = vmatprep.subr.mxu0 0.0
    %2765 = vmatpush1.msra.mxu0 %v2524
    %2766 = vmatprep.subr.mxu0 0.0
    %2767 = vmatpush1.msra.mxu0 %v2525
    %2768 = vmatprep.subr.mxu0 0.0
    %2769 = vmatpush1.msra.mxu0 %v2526
    %2770 = vmatprep.subr.mxu0 0.0
    %2771 = vmatpush1.msra.mxu0 %v2527
    %2772 = vmatprep.subr.mxu0 0.0
    %2773 = vmatpush1.msra.mxu0 %v2528
    %2774 = vmatprep.subr.mxu0 0.0
    %2775 = vmatpush1.msra.mxu0 %v2529
    %2776 = vmatprep.subr.mxu0 0.0
    %2777 = vmatpush1.msra.mxu0 %v2530
    %2778 = vmatprep.subr.mxu0 0.0
    %2779 = vmatpush1.msra.mxu0 %v2531
    %2780 = vmatprep.subr.mxu0 0.0
    %2781 = vmatpush1.msra.mxu0 %v2532
    %2782 = vmatprep.subr.mxu0 0.0
    %2783 = vmatpush1.msra.mxu0 %v2533
    %2784 = vmatprep.subr.mxu0 0.0
    %2785 = vmatpush1.msra.mxu0 %v2534
    %2786 = vmatprep.subr.mxu0 0.0
    %2787 = vmatpush1.msra.mxu0 %v2535
    %2788 = vmatprep.subr.mxu0 0.0
    %2789 = vmatpush1.msra.mxu0 %v2536
    %2790 = vmatprep.subr.mxu0 0.0
    %2791 = vmatpush1.msra.mxu0 %v2537
    %2792 = vmatprep.mubr.f32.mxu0 %v2727
    %2793 = vmatmul.mubr.f32.gmra.mrb[0].mxu0 %v2718
    %v2794 = vpop.f32.mrb[0].mxu0
    %v2795 = vadd.f32 0.0, %v2794
    %v2796 = vpop.f32.mrb[0].mxu0
    %2797 = vdwg.mxu0
    %v2798 = vmul.f32 %v2795, 0.0009765625
    %v2799 = vadd.f32 %v2798, 1e-05
    %v2800 = vrsqrt.pop %v2799
    %v2802 = vsel %vm2611, %v2800, 0
    %2804 = vmatprep.subr.mxu0 %v2610
    %2805 = vmatpush1.msra.mxu0 %v2609
    %2806 = vmatprep.subr.mxu0 0.0
    %2807 = vmatpush1.msra.mxu0 0.0
    %2808 = vmatprep.subr.mxu0 0.0
    %2809 = vmatpush1.msra.mxu0 0.0
    %2810 = vmatprep.subr.mxu0 0.0
    %2811 = vmatpush1.msra.mxu0 0.0
    %2812 = vmatprep.subr.mxu0 0.0
    %2813 = vmatpush1.msra.mxu0 0.0
    %2814 = vmatprep.subr.mxu0 0.0
    %2815 = vmatpush1.msra.mxu0 0.0
    %2816 = vmatprep.subr.mxu0 0.0
    %2817 = vmatpush1.msra.mxu0 0.0
    %2818 = vmatprep.subr.mxu0 0.0
    %2819 = vmatpush1.msra.mxu0 0.0
    %2820 = vmatprep.subr.mxu0 0.0
    %2821 = vmatpush1.msra.mxu0 0.0
    %2822 = vmatprep.subr.mxu0 0.0
    %2823 = vmatpush1.msra.mxu0 0.0
    %2824 = vmatprep.subr.mxu0 0.0
    %2825 = vmatpush1.msra.mxu0 0.0
    %2826 = vmatprep.subr.mxu0 0.0
    %2827 = vmatpush1.msra.mxu0 0.0
    %2828 = vmatprep.subr.mxu0 0.0
    %2829 = vmatpush1.msra.mxu0 0.0
    %2830 = vmatprep.subr.mxu0 0.0
    %2831 = vmatpush1.msra.mxu0 0.0
    %2832 = vmatprep.subr.mxu0 0.0
    %2833 = vmatpush1.msra.mxu0 0.0
    %2834 = vmatprep.subr.mxu0 0.0
    %2835 = vmatpush1.msra.mxu0 0.0
    %2836 = vmatprep.subr.mxu0 0.0
    %2837 = vmatpush1.msra.mxu0 0.0
    %2838 = vmatprep.subr.mxu0 0.0
    %2839 = vmatpush1.msra.mxu0 0.0
    %2840 = vmatprep.subr.mxu0 0.0
    %2841 = vmatpush1.msra.mxu0 0.0
    %2842 = vmatprep.subr.mxu0 0.0
    %2843 = vmatpush1.msra.mxu0 0.0
    %2844 = vmatprep.subr.mxu0 0.0
    %2845 = vmatpush1.msra.mxu0 0.0
    %2846 = vmatprep.subr.mxu0 0.0
    %2847 = vmatpush1.msra.mxu0 0.0
    %2848 = vmatprep.subr.mxu0 0.0
    %2849 = vmatpush1.msra.mxu0 0.0
    %2850 = vmatprep.subr.mxu0 0.0
    %2851 = vmatpush1.msra.mxu0 0.0
    %2852 = vmatprep.subr.mxu0 0.0
    %2853 = vmatpush1.msra.mxu0 0.0
    %2854 = vmatprep.subr.mxu0 0.0
    %2855 = vmatpush1.msra.mxu0 0.0
    %2856 = vmatprep.subr.mxu0 0.0
    %2857 = vmatpush1.msra.mxu0 0.0
    %2858 = vmatprep.subr.mxu0 0.0
    %2859 = vmatpush1.msra.mxu0 0.0
    %2860 = vmatprep.subr.mxu0 0.0
    %2861 = vmatpush1.msra.mxu0 0.0
    %2862 = vmatprep.subr.mxu0 0.0
    %2863 = vmatpush1.msra.mxu0 0.0
    %2864 = vmatprep.subr.mxu0 0.0
    %2865 = vmatpush1.msra.mxu0 0.0
    %2866 = vmatprep.subr.mxu0 0.0
    %2867 = vmatpush1.msra.mxu0 0.0
    %2868 = vmatprep.mubr.f32.mxu0 0.0
    %2869 = vmatmul.mubr.f32.gmra.mrb[0].mxu0 %v2802
    %v2870 = vpop.f32.mrb[0].mxu0
    %v2871 = vadd.f32 0.0, %v2870
    %v2872 = vpop.f32.mrb[0].mxu0
    %v2873 = vadd.f32 0.0, %v2872
    %2874 = vdwg.mxu0
    %v2875 = vld [vmem:[%s10] sm:$0x3]
    %v2878 = vcombine.low %v2871, %v2873
    %v2880 = vunpack.c.l.s4 1966171168
    %v2881 = vunpack.c.0.s8 %v2880
    %v2882 = vlaneseq
    %v2883 = vshrl.u32 %v2882, 7
    %v2884 = vsub.s32 %v2881, %v2883
    %v2885 = vrot.slane %v2878, %v2884
    %v2887 = vunpack.c.l.s4 1966171168
    %v2888 = vunpack.c.0.s8 %v2887
    %v2889 = vlaneseq
    %v2890 = vshrl.u32 %v2889, 7
    %v2891 = vsub.s32 %v2888, %v2890
    %v2892 = vrot.slane %v2885, %v2891
    %v2894 = vmul.f32 %v2875, %v2892
    %v2896 = vlaneseq
    %v2897 = vshrl.u32 %v2896, 7
    %v2898 = vsub.s32 0, %v2897
    %v2899 = vrot.slane %v2894, %v2898
    %v2900 = vlaneseq
    %v2901 = vshrl.u32 %v2900, 7
    %v2902 = vsub.s32 1, %v2901
    %v2903 = vrot.slane %v2894, %v2902
    %v2906 = vmul.f32 %v2694, %v2899
    %v2907 = vmul.f32 %v2695, %v2903
    %v2908 = vmul.f32 %v2696, %v2899
    %v2909 = vmul.f32 %v2697, %v2903
    %v2910 = vmul.f32 %v2698, %v2899
    %v2911 = vmul.f32 %v2699, %v2903
    %v2912 = vmul.f32 %v2700, %v2899
    %v2913 = vmul.f32 %v2701, %v2903
    %v2914 = vld [vmem:[%s11] sm:$0x3]
    %v2916 = vlaneseq
    %v2917 = vshrl.u32 %v2916, 7
    %v2918 = vsub.s32 0, %v2917
    %v2919 = vrot.slane %v2914, %v2918
    %v2920 = vlaneseq
    %v2921 = vshrl.u32 %v2920, 7
    %v2922 = vsub.s32 1, %v2921
    %v2923 = vrot.slane %v2914, %v2922
    %v2926 = vadd.f32 %v2906, %v2919
    %v2927 = vadd.f32 %v2907, %v2923
    %v2928 = vadd.f32 %v2908, %v2919
    %v2929 = vadd.f32 %v2909, %v2923
    %v2930 = vadd.f32 %v2910, %v2919
    %v2931 = vadd.f32 %v2911, %v2923
    %v2932 = vadd.f32 %v2912, %v2919
    %v2933 = vadd.f32 %v2913, %v2923
    %v2934 = vmul.f32 %v2926, 0.2
    %v2935 = vmul.f32 %v2927, 0.2
    %v2936 = vmul.f32 %v2928, 0.2
    %v2937 = vmul.f32 %v2929, 0.2
    %v2938 = vmul.f32 %v2930, 0.2
    %v2939 = vmul.f32 %v2931, 0.2
    %v2940 = vmul.f32 %v2932, 0.2
    %v2941 = vmul.f32 %v2933, 0.2
    %v2942 = vmax.f32 %v2926, %v2934
    %v2943 = vmax.f32 %v2927, %v2935
    %v2944 = vmax.f32 %v2928, %v2936
    %v2945 = vmax.f32 %v2929, %v2937
    %v2946 = vmax.f32 %v2930, %v2938
    %v2947 = vmax.f32 %v2931, %v2939
    %v2948 = vmax.f32 %v2932, %v2940
    %v2949 = vmax.f32 %v2933, %v2941
    %v2950 = vld [vmem:[%s12] sm:$0xf]
    %v2951 = vld [vmem:[%s12 + $0x4] sm:$0xf]
    %v2952 = vld [vmem:[%s12 + $0x8] sm:$0xf]
    %v2953 = vld [vmem:[%s12 + $0xc] sm:$0xf]
    %v2954 = vld [vmem:[%s12 + $0x10] sm:$0xf]
    %v2955 = vld [vmem:[%s12 + $0x14] sm:$0xf]
    %v2956 = vld [vmem:[%s12 + $0x18] sm:$0xf]
    %v2957 = vld [vmem:[%s12 + $0x1c] sm:$0xf]
    %v2958 = vld [vmem:[%s12 + $0x20] sm:$0xf]
    %v2959 = vld [vmem:[%s12 + $0x24] sm:$0xf]
    %v2960 = vld [vmem:[%s12 + $0x28] sm:$0xf]
    %v2961 = vld [vmem:[%s12 + $0x2c] sm:$0xf]
    %v2962 = vld [vmem:[%s12 + $0x30] sm:$0xf]
    %v2963 = vld [vmem:[%s12 + $0x34] sm:$0xf]
    %v2964 = vld [vmem:[%s12 + $0x38] sm:$0xf]
    %v2965 = vld [vmem:[%s12 + $0x3c] sm:$0xf]
    %v2966 = vld [vmem:[%s12 + $0x40] sm:$0xf]
    %v2967 = vld [vmem:[%s12 + $0x44] sm:$0xf]
    %v2968 = vld [vmem:[%s12 + $0x48] sm:$0xf]
    %v2969 = vld [vmem:[%s12 + $0x4c] sm:$0xf]
    %v2970 = vld [vmem:[%s12 + $0x50] sm:$0xf]
    %v2971 = vld [vmem:[%s12 + $0x54] sm:$0xf]
    %v2972 = vld [vmem:[%s12 + $0x58] sm:$0xf]
    %v2973 = vld [vmem:[%s12 + $0x5c] sm:$0xf]
    %v2974 = vld [vmem:[%s12 + $0x60] sm:$0xf]
    %v2975 = vld [vmem:[%s12 + $0x64] sm:$0xf]
    %v2976 = vld [vmem:[%s12 + $0x68] sm:$0xf]
    %v2977 = vld [vmem:[%s12 + $0x6c] sm:$0xf]
    %v2978 = vld [vmem:[%s12 + $0x70] sm:$0xf]
    %v2979 = vld [vmem:[%s12 + $0x74] sm:$0xf]
    %v2980 = vld [vmem:[%s12 + $0x78] sm:$0xf]
    %v2981 = vld [vmem:[%s12 + $0x7c] sm:$0xf]
    %v2982 = vpack.c.bf16 %v2944, %v2942
    %v2983 = vpack.c.bf16 %v2945, %v2943
    %v2984 = vpack.c.bf16 %v2948, %v2946
    %v2985 = vpack.c.bf16 %v2949, %v2947
    %v2986 = vld [vmem:[%s13] sm:$0x1]
    %v2988 = vlaneseq
    %v2989 = vshrl.u32 %v2988, 7
    %v2990 = vsub.s32 0, %v2989
    %v2991 = vrot.slane %v2986, %v2990
    %v3025 = vunpack.c.l.b16 %v2950
    %v3026 = vunpack.c.l.b16 %v2951
    %v3027 = vunpack.c.l.b16 %v2952
    %v3028 = vunpack.c.l.b16 %v2953
    %v3029 = vunpack.c.l.b16 %v2954
    %v3030 = vunpack.c.l.b16 %v2955
    %v3031 = vunpack.c.l.b16 %v2956
    %v3032 = vunpack.c.l.b16 %v2957
    %v3033 = vunpack.c.l.b16 %v2958
    %v3034 = vunpack.c.l.b16 %v2959
    %v3035 = vunpack.c.l.b16 %v2960
    %v3036 = vunpack.c.l.b16 %v2961
    %v3037 = vunpack.c.l.b16 %v2962
    %v3038 = vunpack.c.l.b16 %v2963
    %v3039 = vunpack.c.l.b16 %v2964
    %v3040 = vunpack.c.l.b16 %v2965
    %v3041 = vunpack.c.l.b16 %v2966
    %v3042 = vunpack.c.l.b16 %v2967
    %v3043 = vunpack.c.l.b16 %v2968
    %v3044 = vunpack.c.l.b16 %v2969
    %v3045 = vunpack.c.l.b16 %v2970
    %v3046 = vunpack.c.l.b16 %v2971
    %v3047 = vunpack.c.l.b16 %v2972
    %v3048 = vunpack.c.l.b16 %v2973
    %v3049 = vunpack.c.l.b16 %v2974
    %v3050 = vunpack.c.l.b16 %v2975
    %v3051 = vunpack.c.l.b16 %v2976
    %v3052 = vunpack.c.l.b16 %v2977
    %v3053 = vunpack.c.l.b16 %v2978
    %v3054 = vunpack.c.l.b16 %v2979
    %v3055 = vunpack.c.l.b16 %v2980
    %v3056 = vunpack.c.l.b16 %v2981
    %v3057 = vpack.c.b16 %v3026, %v3025
    %v3058 = vpack.c.b16 %v3028, %v3027
    %v3059 = vpack.c.b16 %v3030, %v3029
    %v3060 = vpack.c.b16 %v3032, %v3031
    %v3061 = vpack.c.b16 %v3034, %v3033
    %v3062 = vpack.c.b16 %v3036, %v3035
    %v3063 = vpack.c.b16 %v3038, %v3037
    %v3064 = vpack.c.b16 %v3040, %v3039
    %v3065 = vpack.c.b16 %v3042, %v3041
    %v3066 = vpack.c.b16 %v3044, %v3043
    %v3067 = vpack.c.b16 %v3046, %v3045
    %v3068 = vpack.c.b16 %v3048, %v3047
    %v3069 = vpack.c.b16 %v3050, %v3049
    %v3070 = vpack.c.b16 %v3052, %v3051
    %v3071 = vpack.c.b16 %v3054, %v3053
    %v3072 = vpack.c.b16 %v3056, %v3055
    %3089 = vmatprep.subr.bf16.mxu0 0
    %3090 = vmatpush1.bf16.msra.mxu0 %v3057
    %3091 = vmatprep.subr.bf16.mxu0 0
    %3092 = vmatpush1.bf16.msra.mxu0 %v3058
    %3093 = vmatprep.subr.bf16.mxu0 0
    %3094 = vmatpush1.bf16.msra.mxu0 %v3059
    %3095 = vmatprep.subr.bf16.mxu0 0
    %3096 = vmatpush1.bf16.msra.mxu0 %v3060
    %3097 = vmatprep.subr.bf16.mxu0 0
    %3098 = vmatpush1.bf16.msra.mxu0 %v3061
    %3099 = vmatprep.subr.bf16.mxu0 0
    %3100 = vmatpush1.bf16.msra.mxu0 %v3062
    %3101 = vmatprep.subr.bf16.mxu0 0
    %3102 = vmatpush1.bf16.msra.mxu0 %v3063
    %3103 = vmatprep.subr.bf16.mxu0 0
    %3104 = vmatpush1.bf16.msra.mxu0 %v3064
    %3105 = vmatprep.subr.bf16.mxu0 0
    %3106 = vmatpush1.bf16.msra.mxu0 %v3065
    %3107 = vmatprep.subr.bf16.mxu0 0
    %3108 = vmatpush1.bf16.msra.mxu0 %v3066
    %3109 = vmatprep.subr.bf16.mxu0 0
    %3110 = vmatpush1.bf16.msra.mxu0 %v3067
    %3111 = vmatprep.subr.bf16.mxu0 0
    %3112 = vmatpush1.bf16.msra.mxu0 %v3068
    %3113 = vmatprep.subr.bf16.mxu0 0
    %3114 = vmatpush1.bf16.msra.mxu0 %v3069
    %3115 = vmatprep.subr.bf16.mxu0 0
    %3116 = vmatpush1.bf16.msra.mxu0 %v3070
    %3117 = vmatprep.subr.bf16.mxu0 0
    %3118 = vmatpush1.bf16.msra.mxu0 %v3071
    %3119 = vmatprep.subr.bf16.mxu0 0
    %3120 = vmatpush1.bf16.msra.mxu0 %v3072
    %3121 = vmatprep.mubr.bf16.mxu0 %v2983
    %3122 = vmatmul.mubr.bf16.gmra.mrb[0].mxu0 %v2982
    %v3123 = vpop.f32.mrb[0].mxu0
    %v3124 = vadd.f32 %v2991, %v3123
    %v3125 = vpop.f32.mrb[0].mxu0
    %v3126 = vpop.f32.mrb[0].mxu0
    %v3127 = vadd.f32 %v2991, %v3126
    %v3128 = vpop.f32.mrb[0].mxu0
    %3129 = vmatprep.mubr.bf16.mxu0 %v2985
    %3130 = vmatmul.mubr.bf16.gmra.mrb[0].mxu0 %v2984
    %v3131 = vpop.f32.mrb[0].mxu0
    %v3132 = vadd.f32 %v2991, %v3131
    %v3133 = vpop.f32.mrb[0].mxu0
    %v3134 = vpop.f32.mrb[0].mxu0
    %v3135 = vadd.f32 %v2991, %v3134
    %v3136 = vpop.f32.mrb[0].mxu0
    %3137 = vdwg.mxu0
    %v3138 = vadd.f32 %v3124, %v3127
    %v3139 = vadd.f32 %v3138, %v3132
    %v3140 = vadd.f32 %v3139, %v3135
    %v3141 = vrot.slane %v3140, 4
    %v3142 = vadd.f32 %v3140, %v3141
    %v3143 = vrot.slane %v3142, 2
    %v3144 = vadd.f32 %v3142, %v3143
    %v3145 = vrot.slane %v3144, 1
    %v3146 = vadd.f32 %v3144, %v3145
    %v3147 = vld [vmem:[%s14] sm:$0xff]
    %v3148 = vld [vmem:[%s14 + $0x8] sm:$0xff]
    %v3149 = vld [vmem:[%s14 + $0x10] sm:$0xff]
    %v3150 = vld [vmem:[%s14 + $0x18] sm:$0xff]
    %v3151 = vld [vmem:[%s14 + $0x20] sm:$0xff]
    %v3152 = vld [vmem:[%s14 + $0x28] sm:$0xff]
    %v3153 = vld [vmem:[%s14 + $0x30] sm:$0xff]
    %v3154 = vld [vmem:[%s14 + $0x38] sm:$0xff]
    %v3155 = vld [vmem:[%s14 + $0x40] sm:$0xff]
    %v3156 = vld [vmem:[%s14 + $0x48] sm:$0xff]
    %v3157 = vld [vmem:[%s14 + $0x50] sm:$0xff]
    %v3158 = vld [vmem:[%s14 + $0x58] sm:$0xff]
    %v3159 = vld [vmem:[%s14 + $0x60] sm:$0xff]
    %v3160 = vld [vmem:[%s14 + $0x68] sm:$0xff]
    %v3161 = vld [vmem:[%s14 + $0x70] sm:$0xff]
    %v3162 = vld [vmem:[%s14 + $0x78] sm:$0xff]
    %3163 = vmatprep.subr.mxu0 0.0
    %3164 = vmatpush1.msra.mxu0 %v3147
    %3165 = vmatprep.subr.mxu0 0.0
    %3166 = vmatpush1.msra.mxu0 %v3148
    %3167 = vmatprep.subr.mxu0 0.0
    %3168 = vmatpush1.msra.mxu0 %v3149
    %3169 = vmatprep.subr.mxu0 0.0
    %3170 = vmatpush1.msra.mxu0 %v3150
    %3171 = vmatprep.subr.mxu0 0.0
    %3172 = vmatpush1.msra.mxu0 %v3151
    %3173 = vmatprep.subr.mxu0 0.0
    %3174 = vmatpush1.msra.mxu0 %v3152
    %3175 = vmatprep.subr.mxu0 0.0
    %3176 = vmatpush1.msra.mxu0 %v3153
    %3177 = vmatprep.subr.mxu0 0.0
    %3178 = vmatpush1.msra.mxu0 %v3154
    %3179 = vmatprep.subr.mxu0 0.0
    %3180 = vmatpush1.msra.mxu0 %v3155
    %3181 = vmatprep.subr.mxu0 0.0
    %3182 = vmatpush1.msra.mxu0 %v3156
    %3183 = vmatprep.subr.mxu0 0.0
    %3184 = vmatpush1.msra.mxu0 %v3157
    %3185 = vmatprep.subr.mxu0 0.0
    %3186 = vmatpush1.msra.mxu0 %v3158
    %3187 = vmatprep.subr.mxu0 0.0
    %3188 = vmatpush1.msra.mxu0 %v3159
    %3189 = vmatprep.subr.mxu0 0.0
    %3190 = vmatpush1.msra.mxu0 %v3160
    %3191 = vmatprep.subr.mxu0 0.0
    %3192 = vmatpush1.msra.mxu0 %v3161
    %3193 = vmatprep.subr.mxu0 0.0
    %3194 = vmatpush1.msra.mxu0 %v3162
    %3195 = vmatprep.subr.mxu0 0.0
    %3196 = vmatpush1.msra.mxu0 0.0
    %3197 = vmatprep.subr.mxu0 0.0
    %3198 = vmatpush1.msra.mxu0 0.0
    %3199 = vmatprep.subr.mxu0 0.0
    %3200 = vmatpush1.msra.mxu0 0.0
    %3201 = vmatprep.subr.mxu0 0.0
    %3202 = vmatpush1.msra.mxu0 0.0
    %3203 = vmatprep.subr.mxu0 0.0
    %3204 = vmatpush1.msra.mxu0 0.0
    %3205 = vmatprep.subr.mxu0 0.0
    %3206 = vmatpush1.msra.mxu0 0.0
    %3207 = vmatprep.subr.mxu0 0.0
    %3208 = vmatpush1.msra.mxu0 0.0
    %3209 = vmatprep.subr.mxu0 0.0
    %3210 = vmatpush1.msra.mxu0 0.0
    %3211 = vmatprep.subr.mxu0 0.0
    %3212 = vmatpush1.msra.mxu0 0.0
    %3213 = vmatprep.subr.mxu0 0.0
    %3214 = vmatpush1.msra.mxu0 0.0
    %3215 = vmatprep.subr.mxu0 0.0
    %3216 = vmatpush1.msra.mxu0 0.0
    %3217 = vmatprep.subr.mxu0 0.0
    %3218 = vmatpush1.msra.mxu0 0.0
    %3219 = vmatprep.subr.mxu0 0.0
    %3220 = vmatpush1.msra.mxu0 0.0
    %3221 = vmatprep.subr.mxu0 0.0
    %3222 = vmatpush1.msra.mxu0 0.0
    %3223 = vmatprep.subr.mxu0 0.0
    %3224 = vmatpush1.msra.mxu0 0.0
    %3225 = vmatprep.subr.mxu0 0.0
    %3226 = vmatpush1.msra.mxu0 0.0
    %3227 = vmatprep.mubr.f32.mxu0 0.0
    %3228 = vmatmul.mubr.f32.gmra.mrb[0].mxu0 %v3146
    %v3229 = vpop.f32.mrb[0].mxu0
    %v3230 = vadd.f32 0.0, %v3229
    %v3231 = vpop.f32.mrb[0].mxu0
    %3232 = vdwg.mxu0
    %v3233 = vmul.f32 %v3230, 0.001953125
    %v3234 = vld [vmem:[%s15] sm:$0xff]
    %v3236 = vsel %vm2611, %v3233, 0
    %3238 = vmatprep.subr.mxu0 0.0
    %3239 = vmatpush1.msra.mxu0 %v3234
    %3240 = vmatprep.subr.mxu0 0.0
    %3241 = vmatpush1.msra.mxu0 0.0
    %3242 = vmatprep.subr.mxu0 0.0
    %3243 = vmatpush1.msra.mxu0 0.0
    %3244 = vmatprep.subr.mxu0 0.0
    %3245 = vmatpush1.msra.mxu0 0.0
    %3246 = vmatprep.subr.mxu0 0.0
    %3247 = vmatpush1.msra.mxu0 0.0
    %3248 = vmatprep.subr.mxu0 0.0
    %3249 = vmatpush1.msra.mxu0 0.0
    %3250 = vmatprep.subr.mxu0 0.0
    %3251 = vmatpush1.msra.mxu0 0.0
    %3252 = vmatprep.subr.mxu0 0.0
    %3253 = vmatpush1.msra.mxu0 0.0
    %3254 = vmatprep.subr.mxu0 0.0
    %3255 = vmatpush1.msra.mxu0 0.0
    %3256 = vmatprep.subr.mxu0 0.0
    %3257 = vmatpush1.msra.mxu0 0.0
    %3258 = vmatprep.subr.mxu0 0.0
    %3259 = vmatpush1.msra.mxu0 0.0
    %3260 = vmatprep.subr.mxu0 0.0
    %3261 = vmatpush1.msra.mxu0 0.0
    %3262 = vmatprep.subr.mxu0 0.0
    %3263 = vmatpush1.msra.mxu0 0.0
    %3264 = vmatprep.subr.mxu0 0.0
    %3265 = vmatpush1.msra.mxu0 0.0
    %3266 = vmatprep.subr.mxu0 0.0
    %3267 = vmatpush1.msra.mxu0 0.0
    %3268 = vmatprep.subr.mxu0 0.0
    %3269 = vmatpush1.msra.mxu0 0.0
    %3270 = vmatprep.subr.mxu0 0.0
    %3271 = vmatpush1.msra.mxu0 0.0
    %3272 = vmatprep.subr.mxu0 0.0
    %3273 = vmatpush1.msra.mxu0 0.0
    %3274 = vmatprep.subr.mxu0 0.0
    %3275 = vmatpush1.msra.mxu0 0.0
    %3276 = vmatprep.subr.mxu0 0.0
    %3277 = vmatpush1.msra.mxu0 0.0
    %3278 = vmatprep.subr.mxu0 0.0
    %3279 = vmatpush1.msra.mxu0 0.0
    %3280 = vmatprep.subr.mxu0 0.0
    %3281 = vmatpush1.msra.mxu0 0.0
    %3282 = vmatprep.subr.mxu0 0.0
    %3283 = vmatpush1.msra.mxu0 0.0
    %3284 = vmatprep.subr.mxu0 0.0
    %3285 = vmatpush1.msra.mxu0 0.0
    %3286 = vmatprep.subr.mxu0 0.0
    %3287 = vmatpush1.msra.mxu0 0.0
    %3288 = vmatprep.subr.mxu0 0.0
    %3289 = vmatpush1.msra.mxu0 0.0
    %3290 = vmatprep.subr.mxu0 0.0
    %3291 = vmatpush1.msra.mxu0 0.0
    %3292 = vmatprep.subr.mxu0 0.0
    %3293 = vmatpush1.msra.mxu0 0.0
    %3294 = vmatprep.subr.mxu0 0.0
    %3295 = vmatpush1.msra.mxu0 0.0
    %3296 = vmatprep.subr.mxu0 0.0
    %3297 = vmatpush1.msra.mxu0 0.0
    %3298 = vmatprep.subr.mxu0 0.0
    %3299 = vmatpush1.msra.mxu0 0.0
    %3300 = vmatprep.subr.mxu0 0.0
    %3301 = vmatpush1.msra.mxu0 0.0
    %3302 = vmatprep.mubr.f32.mxu0 0.0
    %3303 = vmatmul.mubr.f32.gmra.mrb[0].mxu0 %v3236
    %v3304 = vpop.f32.mrb[0].mxu0
    %v3305 = vadd.f32 0.0, %v3304
    %v3306 = vpop.f32.mrb[0].mxu0
    %3307 = vdwg.mxu0
    %v3308 = vlaneseq
    %v3309 = vshrl.u32 %v3308, 7
    %v3310 = vsub.s32 0, %v3309
    %v3311 = vrot.slane %v3305, %v3310
    %v3312 = vsub.f32 %v3124, %v3311
    %v3313 = vsub.f32 %v3127, %v3311
    %v3314 = vsub.f32 %v3132, %v3311
    %v3315 = vsub.f32 %v3135, %v3311
    %v3316 = vmul.f32 %v3312, %v3312
    %v3317 = vmul.f32 %v3313, %v3313
    %v3318 = vmul.f32 %v3314, %v3314
    %v3319 = vmul.f32 %v3315, %v3315
    %v3320 = vadd.f32 %v3316, %v3317
    %v3321 = vadd.f32 %v3320, %v3318
    %v3322 = vadd.f32 %v3321, %v3319
    %v3323 = vrot.slane %v3322, 4
    %v3324 = vadd.f32 %v3322, %v3323
    %v3325 = vrot.slane %v3324, 2
    %v3326 = vadd.f32 %v3324, %v3325
    %v3327 = vrot.slane %v3326, 1
    %v3328 = vadd.f32 %v3326, %v3327
    %3329 = vmatprep.subr.mxu0 0.0
    %3330 = vmatpush1.msra.mxu0 %v3147
    %3331 = vmatprep.subr.mxu0 0.0
    %3332 = vmatpush1.msra.mxu0 %v3148
    %3333 = vmatprep.subr.mxu0 0.0
    %3334 = vmatpush1.msra.mxu0 %v3149
    %3335 = vmatprep.subr.mxu0 0.0
    %3336 = vmatpush1.msra.mxu0 %v3150
    %3337 = vmatprep.subr.mxu0 0.0
    %3338 = vmatpush1.msra.mxu0 %v3151
    %3339 = vmatprep.subr.mxu0 0.0
    %3340 = vmatpush1.msra.mxu0 %v3152
    %3341 = vmatprep.subr.mxu0 0.0
    %3342 = vmatpush1.msra.mxu0 %v3153
    %3343 = vmatprep.subr.mxu0 0.0
    %3344 = vmatpush1.msra.mxu0 %v3154
    %3345 = vmatprep.subr.mxu0 0.0
    %3346 = vmatpush1.msra.mxu0 %v3155
    %3347 = vmatprep.subr.mxu0 0.0
    %3348 = vmatpush1.msra.mxu0 %v3156
    %3349 = vmatprep.subr.mxu0 0.0
    %3350 = vmatpush1.msra.mxu0 %v3157
    %3351 = vmatprep.subr.mxu0 0.0
    %3352 = vmatpush1.msra.mxu0 %v3158
    %3353 = vmatprep.subr.mxu0 0.0
    %3354 = vmatpush1.msra.mxu0 %v3159
    %3355 = vmatprep.subr.mxu0 0.0
    %3356 = vmatpush1.msra.mxu0 %v3160
    %3357 = vmatprep.subr.mxu0 0.0
    %3358 = vmatpush1.msra.mxu0 %v3161
    %3359 = vmatprep.subr.mxu0 0.0
    %3360 = vmatpush1.msra.mxu0 %v3162
    %3361 = vmatprep.subr.mxu0 0.0
    %3362 = vmatpush1.msra.mxu0 0.0
    %3363 = vmatprep.subr.mxu0 0.0
    %3364 = vmatpush1.msra.mxu0 0.0
    %3365 = vmatprep.subr.mxu0 0.0
    %3366 = vmatpush1.msra.mxu0 0.0
    %3367 = vmatprep.subr.mxu0 0.0
    %3368 = vmatpush1.msra.mxu0 0.0
    %3369 = vmatprep.subr.mxu0 0.0
    %3370 = vmatpush1.msra.mxu0 0.0
    %3371 = vmatprep.subr.mxu0 0.0
    %3372 = vmatpush1.msra.mxu0 0.0
    %3373 = vmatprep.subr.mxu0 0.0
    %3374 = vmatpush1.msra.mxu0 0.0
    %3375 = vmatprep.subr.mxu0 0.0
    %3376 = vmatpush1.msra.mxu0 0.0
    %3377 = vmatprep.subr.mxu0 0.0
    %3378 = vmatpush1.msra.mxu0 0.0
    %3379 = vmatprep.subr.mxu0 0.0
    %3380 = vmatpush1.msra.mxu0 0.0
    %3381 = vmatprep.subr.mxu0 0.0
    %3382 = vmatpush1.msra.mxu0 0.0
    %3383 = vmatprep.subr.mxu0 0.0
    %3384 = vmatpush1.msra.mxu0 0.0
    %3385 = vmatprep.subr.mxu0 0.0
    %3386 = vmatpush1.msra.mxu0 0.0
    %3387 = vmatprep.subr.mxu0 0.0
    %3388 = vmatpush1.msra.mxu0 0.0
    %3389 = vmatprep.subr.mxu0 0.0
    %3390 = vmatpush1.msra.mxu0 0.0
    %3391 = vmatprep.subr.mxu0 0.0
    %3392 = vmatpush1.msra.mxu0 0.0
    %3393 = vmatprep.mubr.f32.mxu0 0.0
    %3394 = vmatmul.mubr.f32.gmra.mrb[0].mxu0 %v3328
    %v3395 = vpop.f32.mrb[0].mxu0
    %v3396 = vadd.f32 0.0, %v3395
    %v3397 = vpop.f32.mrb[0].mxu0
    %3398 = vdwg.mxu0
    %v3399 = vmul.f32 %v3396, 0.001953125
    %v3400 = vadd.f32 %v3399, 1e-05
    %v3401 = vrsqrt.pop %v3400
    %v3403 = vsel %vm2611, %v3401, 0
    %3405 = vmatprep.subr.mxu0 0.0
    %3406 = vmatpush1.msra.mxu0 %v3234
    %3407 = vmatprep.subr.mxu0 0.0
    %3408 = vmatpush1.msra.mxu0 0.0
    %3409 = vmatprep.subr.mxu0 0.0
    %3410 = vmatpush1.msra.mxu0 0.0
    %3411 = vmatprep.subr.mxu0 0.0
    %3412 = vmatpush1.msra.mxu0 0.0
    %3413 = vmatprep.subr.mxu0 0.0
    %3414 = vmatpush1.msra.mxu0 0.0
    %3415 = vmatprep.subr.mxu0 0.0
    %3416 = vmatpush1.msra.mxu0 0.0
    %3417 = vmatprep.subr.mxu0 0.0
    %3418 = vmatpush1.msra.mxu0 0.0
    %3419 = vmatprep.subr.mxu0 0.0
    %3420 = vmatpush1.msra.mxu0 0.0
    %3421 = vmatprep.subr.mxu0 0.0
    %3422 = vmatpush1.msra.mxu0 0.0
    %3423 = vmatprep.subr.mxu0 0.0
    %3424 = vmatpush1.msra.mxu0 0.0
    %3425 = vmatprep.subr.mxu0 0.0
    %3426 = vmatpush1.msra.mxu0 0.0
    %3427 = vmatprep.subr.mxu0 0.0
    %3428 = vmatpush1.msra.mxu0 0.0
    %3429 = vmatprep.subr.mxu0 0.0
    %3430 = vmatpush1.msra.mxu0 0.0
    %3431 = vmatprep.subr.mxu0 0.0
    %3432 = vmatpush1.msra.mxu0 0.0
    %3433 = vmatprep.subr.mxu0 0.0
    %3434 = vmatpush1.msra.mxu0 0.0
    %3435 = vmatprep.subr.mxu0 0.0
    %3436 = vmatpush1.msra.mxu0 0.0
    %3437 = vmatprep.subr.mxu0 0.0
    %3438 = vmatpush1.msra.mxu0 0.0
    %3439 = vmatprep.subr.mxu0 0.0
    %3440 = vmatpush1.msra.mxu0 0.0
    %3441 = vmatprep.subr.mxu0 0.0
    %3442 = vmatpush1.msra.mxu0 0.0
    %3443 = vmatprep.subr.mxu0 0.0
    %3444 = vmatpush1.msra.mxu0 0.0
    %3445 = vmatprep.subr.mxu0 0.0
    %3446 = vmatpush1.msra.mxu0 0.0
    %3447 = vmatprep.subr.mxu0 0.0
    %3448 = vmatpush1.msra.mxu0 0.0
    %3449 = vmatprep.subr.mxu0 0.0
    %3450 = vmatpush1.msra.mxu0 0.0
    %3451 = vmatprep.subr.mxu0 0.0
    %3452 = vmatpush1.msra.mxu0 0.0
    %3453 = vmatprep.subr.mxu0 0.0
    %3454 = vmatpush1.msra.mxu0 0.0
    %3455 = vmatprep.subr.mxu0 0.0
    %3456 = vmatpush1.msra.mxu0 0.0
    %3457 = vmatprep.subr.mxu0 0.0
    %3458 = vmatpush1.msra.mxu0 0.0
    %3459 = vmatprep.subr.mxu0 0.0
    %3460 = vmatpush1.msra.mxu0 0.0
    %3461 = vmatprep.subr.mxu0 0.0
    %3462 = vmatpush1.msra.mxu0 0.0
    %3463 = vmatprep.subr.mxu0 0.0
    %3464 = vmatpush1.msra.mxu0 0.0
    %3465 = vmatprep.subr.mxu0 0.0
    %3466 = vmatpush1.msra.mxu0 0.0
    %3467 = vmatprep.subr.mxu0 0.0
    %3468 = vmatpush1.msra.mxu0 0.0
    %3469 = vmatprep.mubr.f32.mxu0 0.0
    %3470 = vmatmul.mubr.f32.gmra.mrb[0].mxu0 %v3403
    %v3471 = vpop.f32.mrb[0].mxu0
    %v3472 = vadd.f32 0.0, %v3471
    %v3473 = vpop.f32.mrb[0].mxu0
    %3474 = vdwg.mxu0
    %v3475 = vld [vmem:[%s16] sm:$0x1]
    %v3476 = vmul.f32 %v3475, %v3472
    %v3478 = vlaneseq
    %v3479 = vshrl.u32 %v3478, 7
    %v3480 = vsub.s32 0, %v3479
    %v3481 = vrot.slane %v3476, %v3480
    %v3483 = vmul.f32 %v3312, %v3481
    %v3484 = vmul.f32 %v3313, %v3481
    %v3485 = vmul.f32 %v3314, %v3481
    %v3486 = vmul.f32 %v3315, %v3481
    %v3487 = vld [vmem:[%s17] sm:$0x1]
    %v3489 = vlaneseq
    %v3490 = vshrl.u32 %v3489, 7
    %v3491 = vsub.s32 0, %v3490
    %v3492 = vrot.slane %v3487, %v3491
    %v3494 = vadd.f32 %v3483, %v3492
    %v3495 = vadd.f32 %v3484, %v3492
    %v3496 = vadd.f32 %v3485, %v3492
    %v3497 = vadd.f32 %v3486, %v3492
    %v3498 = vmul.f32 %v3494, 0.2
    %v3499 = vmul.f32 %v3495, 0.2
    %v3500 = vmul.f32 %v3496, 0.2
    %v3501 = vmul.f32 %v3497, 0.2
    %v3502 = vmax.f32 %v3494, %v3498
    %v3503 = vmax.f32 %v3495, %v3499
    %v3504 = vmax.f32 %v3496, %v3500
    %v3505 = vmax.f32 %v3497, %v3501
    %v3506 = vld [vmem:[%s1] sm:$0xff]
    %v3507 = vld [vmem:[%s1 + $0x8] sm:$0xff]
    %v3508 = vld [vmem:[%s1 + $0x10] sm:$0xff]
    %v3509 = vld [vmem:[%s1 + $0x18] sm:$0xff]
    %vm3510 = vcmask 261120
    %v3512 = vsel %vm3510, %v3506, 0
    %v3515 = vsel %vm3510, %v3507, 0
    %v3518 = vsel %vm3510, %v3508, 0
    %v3521 = vsel %vm3510, %v3509, 0
    %3523 = vmatprep.subr.mxu0 0.0
    %3524 = vmatpush1.msra.mxu0 %v3502
    %3525 = vmatprep.subr.mxu0 0.0
    %3526 = vmatpush1.msra.mxu0 %v3503
    %3527 = vmatprep.subr.mxu0 0.0
    %3528 = vmatpush1.msra.mxu0 %v3504
    %3529 = vmatprep.subr.mxu0 0.0
    %3530 = vmatpush1.msra.mxu0 %v3505
    %3531 = vmatprep.subr.mxu0 0.0
    %3532 = vmatpush1.msra.mxu0 0.0
    %3533 = vmatprep.subr.mxu0 0.0
    %3534 = vmatpush1.msra.mxu0 0.0
    %3535 = vmatprep.subr.mxu0 0.0
    %3536 = vmatpush1.msra.mxu0 0.0
    %3537 = vmatprep.subr.mxu0 0.0
    %3538 = vmatpush1.msra.mxu0 0.0
    %3539 = vmatprep.subr.mxu0 0.0
    %3540 = vmatpush1.msra.mxu0 0.0
    %3541 = vmatprep.subr.mxu0 0.0
    %3542 = vmatpush1.msra.mxu0 0.0
    %3543 = vmatprep.subr.mxu0 0.0
    %3544 = vmatpush1.msra.mxu0 0.0
    %3545 = vmatprep.subr.mxu0 0.0
    %3546 = vmatpush1.msra.mxu0 0.0
    %3547 = vmatprep.subr.mxu0 0.0
    %3548 = vmatpush1.msra.mxu0 0.0
    %3549 = vmatprep.subr.mxu0 0.0
    %3550 = vmatpush1.msra.mxu0 0.0
    %3551 = vmatprep.subr.mxu0 0.0
    %3552 = vmatpush1.msra.mxu0 0.0
    %3553 = vmatprep.subr.mxu0 0.0
    %3554 = vmatpush1.msra.mxu0 0.0
    %3555 = vmatprep.subr.mxu0 0.0
    %3556 = vmatpush1.msra.mxu0 0.0
    %3557 = vmatprep.subr.mxu0 0.0
    %3558 = vmatpush1.msra.mxu0 0.0
    %3559 = vmatprep.subr.mxu0 0.0
    %3560 = vmatpush1.msra.mxu0 0.0
    %3561 = vmatprep.subr.mxu0 0.0
    %3562 = vmatpush1.msra.mxu0 0.0
    %3563 = vmatprep.subr.mxu0 0.0
    %3564 = vmatpush1.msra.mxu0 0.0
    %3565 = vmatprep.subr.mxu0 0.0
    %3566 = vmatpush1.msra.mxu0 0.0
    %3567 = vmatprep.subr.mxu0 0.0
    %3568 = vmatpush1.msra.mxu0 0.0
    %3569 = vmatprep.subr.mxu0 0.0
    %3570 = vmatpush1.msra.mxu0 0.0
    %3571 = vmatprep.subr.mxu0 0.0
    %3572 = vmatpush1.msra.mxu0 0.0
    %3573 = vmatprep.subr.mxu0 0.0
    %3574 = vmatpush1.msra.mxu0 0.0
    %3575 = vmatprep.subr.mxu0 0.0
    %3576 = vmatpush1.msra.mxu0 0.0
    %3577 = vmatprep.subr.mxu0 0.0
    %3578 = vmatpush1.msra.mxu0 0.0
    %3579 = vmatprep.subr.mxu0 0.0
    %3580 = vmatpush1.msra.mxu0 0.0
    %3581 = vmatprep.subr.mxu0 0.0
    %3582 = vmatpush1.msra.mxu0 0.0
    %3583 = vmatprep.subr.mxu0 0.0
    %3584 = vmatpush1.msra.mxu0 0.0
    %3585 = vmatprep.subr.mxu0 0.0
    %3586 = vmatpush1.msra.mxu0 0.0
    %3587 = vmatprep.mubr.f32.mxu0 0.0
    %3588 = vmatmul.mubr.f32.gmra.mrb[0].mxu0 %v3512
    %v3589 = vpop.f32.mrb[0].mxu0
    %v3590 = vadd.f32 0.0, %v3589
    %v3591 = vpop.f32.mrb[0].mxu0
    %3592 = vmatprep.mubr.f32.mxu0 0.0
    %3593 = vmatmul.mubr.f32.gmra.mrb[0].mxu0 %v3515
    %v3594 = vpop.f32.mrb[0].mxu0
    %v3595 = vadd.f32 0.0, %v3594
    %v3596 = vpop.f32.mrb[0].mxu0
    %3597 = vmatprep.mubr.f32.mxu0 0.0
    %3598 = vmatmul.mubr.f32.gmra.mrb[0].mxu0 %v3518
    %v3599 = vpop.f32.mrb[0].mxu0
    %v3600 = vadd.f32 0.0, %v3599
    %v3601 = vpop.f32.mrb[0].mxu0
    %3602 = vmatprep.mubr.f32.mxu0 0.0
    %3603 = vmatmul.mubr.f32.gmra.mrb[0].mxu0 %v3521
    %v3604 = vpop.f32.mrb[0].mxu0
    %v3605 = vadd.f32 0.0, %v3604
    %v3606 = vpop.f32.mrb[0].mxu0
    %3607 = vdwg.mxu0
    %v3608 = vld [vmem:[%s18] sm:$0xff]
    %v3609 = vld [vmem:[%s18 + $0x8] sm:$0xf]
    %v3610 = vld [vmem:[%s18 + $0xc] sm:$0xff]
    %v3611 = vld [vmem:[%s18 + $0x14] sm:$0xf]
    %v3612 = vld [vmem:[%s18 + $0x18] sm:$0xff]
    %v3613 = vld [vmem:[%s18 + $0x20] sm:$0xf]
    %v3614 = vld [vmem:[%s18 + $0x24] sm:$0xff]
    %v3615 = vld [vmem:[%s18 + $0x2c] sm:$0xf]
    %v3616 = vld [vmem:[%s18 + $0x30] sm:$0xff]
    %v3617 = vld [vmem:[%s18 + $0x38] sm:$0xf]
    %v3618 = vld [vmem:[%s18 + $0x3c] sm:$0xff]
    %v3619 = vld [vmem:[%s18 + $0x44] sm:$0xf]
    %v3620 = vld [vmem:[%s18 + $0x48] sm:$0xff]
    %v3621 = vld [vmem:[%s18 + $0x50] sm:$0xf]
    %v3622 = vld [vmem:[%s18 + $0x54] sm:$0xff]
    %v3623 = vld [vmem:[%s18 + $0x5c] sm:$0xf]
    %v3624 = vld [vmem:[%s18 + $0x60] sm:$0xff]
    %v3625 = vld [vmem:[%s18 + $0x68] sm:$0xf]
    %v3626 = vld [vmem:[%s18 + $0x6c] sm:$0xff]
    %v3627 = vld [vmem:[%s18 + $0x74] sm:$0xf]
    %v3628 = vld [vmem:[%s18 + $0x78] sm:$0xff]
    %v3629 = vld [vmem:[%s18 + $0x80] sm:$0xf]
    %v3630 = vld [vmem:[%s18 + $0x84] sm:$0xff]
    %v3631 = vld [vmem:[%s18 + $0x8c] sm:$0xf]
    %v3632 = vld [vmem:[%s18 + $0x90] sm:$0xff]
    %v3633 = vld [vmem:[%s18 + $0x98] sm:$0xf]
    %v3634 = vld [vmem:[%s18 + $0x9c] sm:$0xff]
    %v3635 = vld [vmem:[%s18 + $0xa4] sm:$0xf]
    %v3636 = vld [vmem:[%s18 + $0xa8] sm:$0xff]
    %v3637 = vld [vmem:[%s18 + $0xb0] sm:$0xf]
    %v3638 = vld [vmem:[%s18 + $0xb4] sm:$0xff]
    %v3639 = vld [vmem:[%s18 + $0xbc] sm:$0xf]
    %v3640 = vpack.c.bf16 %v3595, %v3590
    %v3641 = vpack.c.bf16 %v3605, %v3600
    %v3642 = vld [vmem:[%s19] sm:$0x7]
    %v3644 = vlaneseq
    %v3645 = vshrl.u32 %v3644, 7
    %v3646 = vsub.s32 0, %v3645
    %v3647 = vrot.slane %v3642, %v3646
    %v3648 = vlaneseq
    %v3649 = vshrl.u32 %v3648, 7
    %v3650 = vsub.s32 1, %v3649
    %v3651 = vrot.slane %v3642, %v3650
    %v3652 = vlaneseq
    %v3653 = vshrl.u32 %v3652, 7
    %v3654 = vsub.s32 2, %v3653
    %v3655 = vrot.slane %v3642, %v3654
    %v3691 = vunpack.c.l.b16 %v3608
    %v3692 = vunpack.c.h.b16 %v3608
    %v3693 = vunpack.c.l.b16 %v3609
    %v3694 = vunpack.c.l.b16 %v3610
    %v3695 = vunpack.c.h.b16 %v3610
    %v3696 = vunpack.c.l.b16 %v3611
    %v3697 = vunpack.c.l.b16 %v3612
    %v3698 = vunpack.c.h.b16 %v3612
    %v3699 = vunpack.c.l.b16 %v3613
    %v3700 = vunpack.c.l.b16 %v3614
    %v3701 = vunpack.c.h.b16 %v3614
    %v3702 = vunpack.c.l.b16 %v3615
    %v3703 = vunpack.c.l.b16 %v3616
    %v3704 = vunpack.c.h.b16 %v3616
    %v3705 = vunpack.c.l.b16 %v3617
    %v3706 = vunpack.c.l.b16 %v3618
    %v3707 = vunpack.c.h.b16 %v3618
    %v3708 = vunpack.c.l.b16 %v3619
    %v3709 = vunpack.c.l.b16 %v3620
    %v3710 = vunpack.c.h.b16 %v3620
    %v3711 = vunpack.c.l.b16 %v3621
    %v3712 = vunpack.c.l.b16 %v3622
    %v3713 = vunpack.c.h.b16 %v3622
    %v3714 = vunpack.c.l.b16 %v3623
    %v3715 = vunpack.c.l.b16 %v3624
    %v3716 = vunpack.c.h.b16 %v3624
    %v3717 = vunpack.c.l.b16 %v3625
    %v3718 = vunpack.c.l.b16 %v3626
    %v3719 = vunpack.c.h.b16 %v3626
    %v3720 = vunpack.c.l.b16 %v3627
    %v3721 = vunpack.c.l.b16 %v3628
    %v3722 = vunpack.c.h.b16 %v3628
    %v3723 = vunpack.c.l.b16 %v3629
    %v3724 = vunpack.c.l.b16 %v3630
    %v3725 = vunpack.c.h.b16 %v3630
    %v3726 = vunpack.c.l.b16 %v3631
    %v3727 = vunpack.c.l.b16 %v3632
    %v3728 = vunpack.c.h.b16 %v3632
    %v3729 = vunpack.c.l.b16 %v3633
    %v3730 = vunpack.c.l.b16 %v3634
    %v3731 = vunpack.c.h.b16 %v3634
    %v3732 = vunpack.c.l.b16 %v3635
    %v3733 = vunpack.c.l.b16 %v3636
    %v3734 = vunpack.c.h.b16 %v3636
    %v3735 = vunpack.c.l.b16 %v3637
    %v3736 = vunpack.c.l.b16 %v3638
    %v3737 = vunpack.c.h.b16 %v3638
    %v3738 = vunpack.c.l.b16 %v3639
    %v3739 = vpack.c.b16 %v3694, %v3691
    %v3740 = vpack.c.b16 %v3695, %v3692
    %v3741 = vpack.c.b16 %v3696, %v3693
    %v3742 = vpack.c.b16 %v3700, %v3697
    %v3743 = vpack.c.b16 %v3701, %v3698
    %v3744 = vpack.c.b16 %v3702, %v3699
    %v3745 = vpack.c.b16 %v3706, %v3703
    %v3746 = vpack.c.b16 %v3707, %v3704
    %v3747 = vpack.c.b16 %v3708, %v3705
    %v3748 = vpack.c.b16 %v3712, %v3709
    %v3749 = vpack.c.b16 %v3713, %v3710
    %v3750 = vpack.c.b16 %v3714, %v3711
    %v3751 = vpack.c.b16 %v3718, %v3715
    %v3752 = vpack.c.b16 %v3719, %v3716
    %v3753 = vpack.c.b16 %v3720, %v3717
    %v3754 = vpack.c.b16 %v3724, %v3721
    %v3755 = vpack.c.b16 %v3725, %v3722
    %v3756 = vpack.c.b16 %v3726, %v3723
    %v3757 = vpack.c.b16 %v3730, %v3727
    %v3758 = vpack.c.b16 %v3731, %v3728
    %v3759 = vpack.c.b16 %v3732, %v3729
    %v3760 = vpack.c.b16 %v3736, %v3733
    %v3761 = vpack.c.b16 %v3737, %v3734
    %v3762 = vpack.c.b16 %v3738, %v3735
    %3787 = vmatprep.subr.bf16.mxu0 %v3740
    %3788 = vmatpush1.bf16.msra.mxu0 %v3739
    %3789 = vmatprep.subr.bf16.mxu0 %v3743
    %3790 = vmatpush1.bf16.msra.mxu0 %v3742
    %3791 = vmatprep.subr.bf16.mxu0 %v3746
    %3792 = vmatpush1.bf16.msra.mxu0 %v3745
    %3793 = vmatprep.subr.bf16.mxu0 %v3749
    %3794 = vmatpush1.bf16.msra.mxu0 %v3748
    %3795 = vmatprep.subr.bf16.mxu0 %v3752
    %3796 = vmatpush1.bf16.msra.mxu0 %v3751
    %3797 = vmatprep.subr.bf16.mxu0 %v3755
    %3798 = vmatpush1.bf16.msra.mxu0 %v3754
    %3799 = vmatprep.subr.bf16.mxu0 %v3758
    %3800 = vmatpush1.bf16.msra.mxu0 %v3757
    %3801 = vmatprep.subr.bf16.mxu0 %v3761
    %3802 = vmatpush1.bf16.msra.mxu0 %v3760
    %3803 = vmatprep.subr.bf16.mxu0 0
    %3804 = vmatpush1.bf16.msra.mxu0 0
    %3805 = vmatprep.subr.bf16.mxu0 0
    %3806 = vmatpush1.bf16.msra.mxu0 0
    %3807 = vmatprep.subr.bf16.mxu0 0
    %3808 = vmatpush1.bf16.msra.mxu0 0
    %3809 = vmatprep.subr.bf16.mxu0 0
    %3810 = vmatpush1.bf16.msra.mxu0 0
    %3811 = vmatprep.subr.bf16.mxu0 0
    %3812 = vmatpush1.bf16.msra.mxu0 0
    %3813 = vmatprep.subr.bf16.mxu0 0
    %3814 = vmatpush1.bf16.msra.mxu0 0
    %3815 = vmatprep.subr.bf16.mxu0 0
    %3816 = vmatpush1.bf16.msra.mxu0 0
    %3817 = vmatprep.subr.bf16.mxu0 0
    %3818 = vmatpush1.bf16.msra.mxu0 0
    %3819 = vmatprep.mubr.bf16.mxu0 0
    %3820 = vmatmul.mubr.bf16.gmra.mrb[0].mxu0 %v3640
    %v3821 = vpop.f32.mrb[0].mxu0
    %v3822 = vadd.f32 %v3647, %v3821
    %v3823 = vpop.f32.mrb[0].mxu0
    %v3824 = vadd.f32 %v3651, %v3823
    %v3825 = vpop.f32.mrb[0].mxu0
    %v3826 = vadd.f32 %v3647, %v3825
    %v3827 = vpop.f32.mrb[0].mxu0
    %v3828 = vadd.f32 %v3651, %v3827
    %3829 = vmatprep.mubr.bf16.mxu0 0
    %3830 = vmatmul.mubr.bf16.gmra.mrb[0].mxu0 %v3641
    %v3831 = vpop.f32.mrb[0].mxu0
    %v3832 = vadd.f32 %v3647, %v3831
    %v3833 = vpop.f32.mrb[0].mxu0
    %v3834 = vadd.f32 %v3651, %v3833
    %v3835 = vpop.f32.mrb[0].mxu0
    %v3836 = vadd.f32 %v3647, %v3835
    %v3837 = vpop.f32.mrb[0].mxu0
    %v3838 = vadd.f32 %v3651, %v3837
    %3839 = vdwg.mxu0
    %3840 = vmatprep.subr.bf16.mxu0 0
    %3841 = vmatpush1.bf16.msra.mxu0 %v3741
    %3842 = vmatprep.subr.bf16.mxu0 0
    %3843 = vmatpush1.bf16.msra.mxu0 %v3744
    %3844 = vmatprep.subr.bf16.mxu0 0
    %3845 = vmatpush1.bf16.msra.mxu0 %v3747
    %3846 = vmatprep.subr.bf16.mxu0 0
    %3847 = vmatpush1.bf16.msra.mxu0 %v3750
    %3848 = vmatprep.subr.bf16.mxu0 0
    %3849 = vmatpush1.bf16.msra.mxu0 %v3753
    %3850 = vmatprep.subr.bf16.mxu0 0
    %3851 = vmatpush1.bf16.msra.mxu0 %v3756
    %3852 = vmatprep.subr.bf16.mxu0 0
    %3853 = vmatpush1.bf16.msra.mxu0 %v3759
    %3854 = vmatprep.subr.bf16.mxu0 0
    %3855 = vmatpush1.bf16.msra.mxu0 %v3762
    %3856 = vmatprep.subr.bf16.mxu0 0
    %3857 = vmatpush1.bf16.msra.mxu0 0
    %3858 = vmatprep.subr.bf16.mxu0 0
    %3859 = vmatpush1.bf16.msra.mxu0 0
    %3860 = vmatprep.subr.bf16.mxu0 0
    %3861 = vmatpush1.bf16.msra.mxu0 0
    %3862 = vmatprep.subr.bf16.mxu0 0
    %3863 = vmatpush1.bf16.msra.mxu0 0
    %3864 = vmatprep.subr.bf16.mxu0 0
    %3865 = vmatpush1.bf16.msra.mxu0 0
    %3866 = vmatprep.subr.bf16.mxu0 0
    %3867 = vmatpush1.bf16.msra.mxu0 0
    %3868 = vmatprep.subr.bf16.mxu0 0
    %3869 = vmatpush1.bf16.msra.mxu0 0
    %3870 = vmatprep.subr.bf16.mxu0 0
    %3871 = vmatpush1.bf16.msra.mxu0 0
    %3872 = vmatprep.mubr.bf16.mxu0 0
    %3873 = vmatmul.mubr.bf16.gmra.mrb[0].mxu0 %v3640
    %v3874 = vpop.f32.mrb[0].mxu0
    %v3875 = vadd.f32 %v3655, %v3874
    %v3876 = vpop.f32.mrb[0].mxu0
    %v3877 = vpop.f32.mrb[0].mxu0
    %v3878 = vadd.f32 %v3655, %v3877
    %v3879 = vpop.f32.mrb[0].mxu0
    %3880 = vmatprep.mubr.bf16.mxu0 0
    %3881 = vmatmul.mubr.bf16.gmra.mrb[0].mxu0 %v3641
    %v3882 = vpop.f32.mrb[0].mxu0
    %v3883 = vadd.f32 %v3655, %v3882
    %v3884 = vpop.f32.mrb[0].mxu0
    %v3885 = vpop.f32.mrb[0].mxu0
    %v3886 = vadd.f32 %v3655, %v3885
    %v3887 = vpop.f32.mrb[0].mxu0
    %3888 = vdwg.mxu0
    %v3889 = vld [vmem:[%s20] sm:$0xff]
    %v3890 = vld [vmem:[%s20 + $0x8] sm:$0xff]
    %v3891 = vld [vmem:[%s20 + $0x10] sm:$0xff]
    %v3892 = vld [vmem:[%s20 + $0x18] sm:$0xff]
    %v3893 = vld [vmem:[%s20 + $0x20] sm:$0xff]
    %v3894 = vld [vmem:[%s20 + $0x28] sm:$0xff]
    %v3895 = vld [vmem:[%s20 + $0x30] sm:$0xff]
    %v3896 = vld [vmem:[%s20 + $0x38] sm:$0xff]
    %v3897 = vld [vmem:[%s20 + $0x40] sm:$0xff]
    %v3898 = vld [vmem:[%s20 + $0x48] sm:$0xff]
    %v3899 = vld [vmem:[%s20 + $0x50] sm:$0xff]
    %v3900 = vld [vmem:[%s20 + $0x58] sm:$0xff]
    %v3901 = vld [vmem:[%s20 + $0x60] sm:$0xff]
    %v3902 = vld [vmem:[%s20 + $0x68] sm:$0xff]
    %v3903 = vld [vmem:[%s20 + $0x70] sm:$0xff]
    %v3904 = vld [vmem:[%s20 + $0x78] sm:$0xff]
    %v3905 = vld [vmem:[%s20 + $0x80] sm:$0xff]
    %v3906 = vld [vmem:[%s20 + $0x88] sm:$0xff]
    %v3907 = vld [vmem:[%s20 + $0x90] sm:$0xff]
    %v3908 = vld [vmem:[%s20 + $0x98] sm:$0xff]
    %v3909 = vld [vmem:[%s20 + $0xa0] sm:$0xff]
    %v3910 = vld [vmem:[%s20 + $0xa8] sm:$0xff]
    %v3911 = vld [vmem:[%s20 + $0xb0] sm:$0xff]
    %v3912 = vld [vmem:[%s20 + $0xb8] sm:$0xff]
    %v3913 = vld [vmem:[%s20 + $0xc0] sm:$0xff]
    %v3914 = vld [vmem:[%s20 + $0xc8] sm:$0xff]
    %v3915 = vld [vmem:[%s20 + $0xd0] sm:$0xff]
    %v3916 = vld [vmem:[%s20 + $0xd8] sm:$0xff]
    %v3917 = vld [vmem:[%s20 + $0xe0] sm:$0xff]
    %v3918 = vld [vmem:[%s20 + $0xe8] sm:$0xff]
    %v3919 = vld [vmem:[%s20 + $0xf0] sm:$0xff]
    %v3920 = vld [vmem:[%s20 + $0xf8] sm:$0xff]
    %v3921 = vld [vmem:[%s20 + $0x100] sm:$0xff]
    %v3922 = vld [vmem:[%s20 + $0x108] sm:$0xff]
    %v3923 = vld [vmem:[%s20 + $0x110] sm:$0xff]
    %v3924 = vld [vmem:[%s20 + $0x118] sm:$0xff]
    %v3925 = vld [vmem:[%s20 + $0x120] sm:$0xff]
    %v3926 = vld [vmem:[%s20 + $0x128] sm:$0xff]
    %v3927 = vld [vmem:[%s20 + $0x130] sm:$0xff]
    %v3928 = vld [vmem:[%s20 + $0x138] sm:$0xff]
    %v3929 = vld [vmem:[%s20 + $0x140] sm:$0xff]
    %v3930 = vld [vmem:[%s20 + $0x148] sm:$0xff]
    %v3931 = vld [vmem:[%s20 + $0x150] sm:$0xff]
    %v3932 = vld [vmem:[%s20 + $0x158] sm:$0xff]
    %v3933 = vld [vmem:[%s20 + $0x160] sm:$0xff]
    %v3934 = vld [vmem:[%s20 + $0x168] sm:$0xff]
    %v3935 = vld [vmem:[%s20 + $0x170] sm:$0xff]
    %v3936 = vld [vmem:[%s20 + $0x178] sm:$0xff]
    %v3937 = vld [vmem:[%s21] sm:$0x7]
    %v3939 = vlaneseq
    %v3940 = vshrl.u32 %v3939, 7
    %v3941 = vsub.s32 0, %v3940
    %v3942 = vrot.slane %v3937, %v3941
    %v3943 = vlaneseq
    %v3944 = vshrl.u32 %v3943, 7
    %v3945 = vsub.s32 1, %v3944
    %v3946 = vrot.slane %v3937, %v3945
    %v3947 = vlaneseq
    %v3948 = vshrl.u32 %v3947, 7
    %v3949 = vsub.s32 2, %v3948
    %v3950 = vrot.slane %v3937, %v3949
    %3954 = vmatprep.subr.mxu0 %v3890
    %3955 = vmatpush1.msra.mxu0 %v3889
    %3956 = vmatprep.subr.mxu0 %v3893
    %3957 = vmatpush1.msra.mxu0 %v3892
    %3958 = vmatprep.subr.mxu0 %v3896
    %3959 = vmatpush1.msra.mxu0 %v3895
    %3960 = vmatprep.subr.mxu0 %v3899
    %3961 = vmatpush1.msra.mxu0 %v3898
    %3962 = vmatprep.subr.mxu0 %v3902
    %3963 = vmatpush1.msra.mxu0 %v3901
    %3964 = vmatprep.subr.mxu0 %v3905
    %3965 = vmatpush1.msra.mxu0 %v3904
    %3966 = vmatprep.subr.mxu0 %v3908
    %3967 = vmatpush1.msra.mxu0 %v3907
    %3968 = vmatprep.subr.mxu0 %v3911
    %3969 = vmatpush1.msra.mxu0 %v3910
    %3970 = vmatprep.subr.mxu0 %v3914
    %3971 = vmatpush1.msra.mxu0 %v3913
    %3972 = vmatprep.subr.mxu0 %v3917
    %3973 = vmatpush1.msra.mxu0 %v3916
    %3974 = vmatprep.subr.mxu0 %v3920
    %3975 = vmatpush1.msra.mxu0 %v3919
    %3976 = vmatprep.subr.mxu0 %v3923
    %3977 = vmatpush1.msra.mxu0 %v3922
    %3978 = vmatprep.subr.mxu0 %v3926
    %3979 = vmatpush1.msra.mxu0 %v3925
    %3980 = vmatprep.subr.mxu0 %v3929
    %3981 = vmatpush1.msra.mxu0 %v3928
    %3982 = vmatprep.subr.mxu0 %v3932
    %3983 = vmatpush1.msra.mxu0 %v3931
    %3984 = vmatprep.subr.mxu0 %v3935
    %3985 = vmatpush1.msra.mxu0 %v3934
    %3986 = vmatprep.subr.mxu0 0.0
    %3987 = vmatpush1.msra.mxu0 0.0
    %3988 = vmatprep.subr.mxu0 0.0
    %3989 = vmatpush1.msra.mxu0 0.0
    %3990 = vmatprep.subr.mxu0 0.0
    %3991 = vmatpush1.msra.mxu0 0.0
    %3992 = vmatprep.subr.mxu0 0.0
    %3993 = vmatpush1.msra.mxu0 0.0
    %3994 = vmatprep.subr.mxu0 0.0
    %3995 = vmatpush1.msra.mxu0 0.0
    %3996 = vmatprep.subr.mxu0 0.0
    %3997 = vmatpush1.msra.mxu0 0.0
    %3998 = vmatprep.subr.mxu0 0.0
    %3999 = vmatpush1.msra.mxu0 0.0
    %4000 = vmatprep.subr.mxu0 0.0
    %4001 = vmatpush1.msra.mxu0 0.0
    %4002 = vmatprep.subr.mxu0 0.0
    %4003 = vmatpush1.msra.mxu0 0.0
    %4004 = vmatprep.subr.mxu0 0.0
    %4005 = vmatpush1.msra.mxu0 0.0
    %4006 = vmatprep.subr.mxu0 0.0
    %4007 = vmatpush1.msra.mxu0 0.0
    %4008 = vmatprep.subr.mxu0 0.0
    %4009 = vmatpush1.msra.mxu0 0.0
    %4010 = vmatprep.subr.mxu0 0.0
    %4011 = vmatpush1.msra.mxu0 0.0
    %4012 = vmatprep.subr.mxu0 0.0
    %4013 = vmatpush1.msra.mxu0 0.0
    %4014 = vmatprep.subr.mxu0 0.0
    %4015 = vmatpush1.msra.mxu0 0.0
    %4016 = vmatprep.subr.mxu0 0.0
    %4017 = vmatpush1.msra.mxu0 0.0
    %4018 = vmatprep.mubr.f32.mxu0 0.0
    %4019 = vmatmul.mubr.f32.gmra.mrb[0].mxu0 0.0
    %v4020 = vpop.f32.mrb[0].mxu0
    %v4021 = vadd.f32 %v3942, %v4020
    %v4022 = vpop.f32.mrb[0].mxu0
    %v4023 = vadd.f32 %v3946, %v4022
    %4024 = vdwg.mxu0
    %4025 = vmatprep.subr.mxu0 0.0
    %4026 = vmatpush1.msra.mxu0 %v3891
    %4027 = vmatprep.subr.mxu0 0.0
    %4028 = vmatpush1.msra.mxu0 %v3894
    %4029 = vmatprep.subr.mxu0 0.0
    %4030 = vmatpush1.msra.mxu0 %v3897
    %4031 = vmatprep.subr.mxu0 0.0
    %4032 = vmatpush1.msra.mxu0 %v3900
    %4033 = vmatprep.subr.mxu0 0.0
    %4034 = vmatpush1.msra.mxu0 %v3903
    %4035 = vmatprep.subr.mxu0 0.0
    %4036 = vmatpush1.msra.mxu0 %v3906
    %4037 = vmatprep.subr.mxu0 0.0
    %4038 = vmatpush1.msra.mxu0 %v3909
    %4039 = vmatprep.subr.mxu0 0.0
    %4040 = vmatpush1.msra.mxu0 %v3912
    %4041 = vmatprep.subr.mxu0 0.0
    %4042 = vmatpush1.msra.mxu0 %v3915
    %4043 = vmatprep.subr.mxu0 0.0
    %4044 = vmatpush1.msra.mxu0 %v3918
    %4045 = vmatprep.subr.mxu0 0.0
    %4046 = vmatpush1.msra.mxu0 %v3921
    %4047 = vmatprep.subr.mxu0 0.0
    %4048 = vmatpush1.msra.mxu0 %v3924
    %4049 = vmatprep.subr.mxu0 0.0
    %4050 = vmatpush1.msra.mxu0 %v3927
    %4051 = vmatprep.subr.mxu0 0.0
    %4052 = vmatpush1.msra.mxu0 %v3930
    %4053 = vmatprep.subr.mxu0 0.0
    %4054 = vmatpush1.msra.mxu0 %v3933
    %4055 = vmatprep.subr.mxu0 0.0
    %4056 = vmatpush1.msra.mxu0 %v3936
    %4057 = vmatprep.subr.mxu0 0.0
    %4058 = vmatpush1.msra.mxu0 0.0
    %4059 = vmatprep.subr.mxu0 0.0
    %4060 = vmatpush1.msra.mxu0 0.0
    %4061 = vmatprep.subr.mxu0 0.0
    %4062 = vmatpush1.msra.mxu0 0.0
    %4063 = vmatprep.subr.mxu0 0.0
    %4064 = vmatpush1.msra.mxu0 0.0
    %4065 = vmatprep.subr.mxu0 0.0
    %4066 = vmatpush1.msra.mxu0 0.0
    %4067 = vmatprep.subr.mxu0 0.0
    %4068 = vmatpush1.msra.mxu0 0.0
    %4069 = vmatprep.subr.mxu0 0.0
    %4070 = vmatpush1.msra.mxu0 0.0
    %4071 = vmatprep.subr.mxu0 0.0
    %4072 = vmatpush1.msra.mxu0 0.0
    %4073 = vmatprep.subr.mxu0 0.0
    %4074 = vmatpush1.msra.mxu0 0.0
    %4075 = vmatprep.subr.mxu0 0.0
    %4076 = vmatpush1.msra.mxu0 0.0
    %4077 = vmatprep.subr.mxu0 0.0
    %4078 = vmatpush1.msra.mxu0 0.0
    %4079 = vmatprep.subr.mxu0 0.0
    %4080 = vmatpush1.msra.mxu0 0.0
    %4081 = vmatprep.subr.mxu0 0.0
    %4082 = vmatpush1.msra.mxu0 0.0
    %4083 = vmatprep.subr.mxu0 0.0
    %4084 = vmatpush1.msra.mxu0 0.0
    %4085 = vmatprep.subr.mxu0 0.0
    %4086 = vmatpush1.msra.mxu0 0.0
    %4087 = vmatprep.subr.mxu0 0.0
    %4088 = vmatpush1.msra.mxu0 0.0
    %4089 = vmatprep.mubr.f32.mxu0 0.0
    %4090 = vmatmul.mubr.f32.gmra.mrb[0].mxu0 0.0
    %v4091 = vpop.f32.mrb[0].mxu0
    %v4092 = vadd.f32 %v3950, %v4091
    %v4093 = vpop.f32.mrb[0].mxu0
    %4094 = vdwg.mxu0
    %v4095 = vadd.f32 %v3822, %v4021
    %v4096 = vxor.u32 %v4095, 2147483648
    %v4097 = vmul.f32 %v4096, 1.442695
    %v4098 = vpow.pop %v4097
    %v4099 = vadd.f32 %v4098, 1.0
    %v4100 = vrcp.pop %v4099
    %v4101 = vmul.f32 1.0, %v4100
    %v4102 = vadd.f32 %v3824, %v4023
    %v4103 = vxor.u32 %v4102, 2147483648
    %v4104 = vmul.f32 %v4103, 1.442695
    %v4105 = vpow.pop %v4104
    %v4106 = vadd.f32 %v4105, 1.0
    %v4107 = vrcp.pop %v4106
    %v4108 = vmul.f32 1.0, %v4107
    %v4109 = vmul.f32 %v4101, %v4092
    %v4110 = vadd.f32 %v3875, %v4109
    %v4111 = vtanh.pop %v4110
    %v4112 = vsub.f32 1.0, %v4108
    %v4113 = vmul.f32 %v4112, %v4111
    %v4114 = vmul.f32 %v4108, 0.0
    %v4115 = vadd.f32 %v4113, %v4114
    %4116 = vmatprep.subr.mxu0 %v3890
    %4117 = vmatpush1.msra.mxu0 %v3889
    %4118 = vmatprep.subr.mxu0 %v3893
    %4119 = vmatpush1.msra.mxu0 %v3892
    %4120 = vmatprep.subr.mxu0 %v3896
    %4121 = vmatpush1.msra.mxu0 %v3895
    %4122 = vmatprep.subr.mxu0 %v3899
    %4123 = vmatpush1.msra.mxu0 %v3898
    %4124 = vmatprep.subr.mxu0 %v3902
    %4125 = vmatpush1.msra.mxu0 %v3901
    %4126 = vmatprep.subr.mxu0 %v3905
    %4127 = vmatpush1.msra.mxu0 %v3904
    %4128 = vmatprep.subr.mxu0 %v3908
    %4129 = vmatpush1.msra.mxu0 %v3907
    %4130 = vmatprep.subr.mxu0 %v3911
    %4131 = vmatpush1.msra.mxu0 %v3910
    %4132 = vmatprep.subr.mxu0 %v3914
    %4133 = vmatpush1.msra.mxu0 %v3913
    %4134 = vmatprep.subr.mxu0 %v3917
    %4135 = vmatpush1.msra.mxu0 %v3916
    %4136 = vmatprep.subr.mxu0 %v3920
    %4137 = vmatpush1.msra.mxu0 %v3919
    %4138 = vmatprep.subr.mxu0 %v3923
    %4139 = vmatpush1.msra.mxu0 %v3922
    %4140 = vmatprep.subr.mxu0 %v3926
    %4141 = vmatpush1.msra.mxu0 %v3925
    %4142 = vmatprep.subr.mxu0 %v3929
    %4143 = vmatpush1.msra.mxu0 %v3928
    %4144 = vmatprep.subr.mxu0 %v3932
    %4145 = vmatpush1.msra.mxu0 %v3931
    %4146 = vmatprep.subr.mxu0 %v3935
    %4147 = vmatpush1.msra.mxu0 %v3934
    %4148 = vmatprep.subr.mxu0 0.0
    %4149 = vmatpush1.msra.mxu0 0.0
    %4150 = vmatprep.subr.mxu0 0.0
    %4151 = vmatpush1.msra.mxu0 0.0
    %4152 = vmatprep.subr.mxu0 0.0
    %4153 = vmatpush1.msra.mxu0 0.0
    %4154 = vmatprep.subr.mxu0 0.0
    %4155 = vmatpush1.msra.mxu0 0.0
    %4156 = vmatprep.subr.mxu0 0.0
    %4157 = vmatpush1.msra.mxu0 0.0
    %4158 = vmatprep.subr.mxu0 0.0
    %4159 = vmatpush1.msra.mxu0 0.0
    %4160 = vmatprep.subr.mxu0 0.0
    %4161 = vmatpush1.msra.mxu0 0.0
    %4162 = vmatprep.subr.mxu0 0.0
    %4163 = vmatpush1.msra.mxu0 0.0
    %4164 = vmatprep.subr.mxu0 0.0
    %4165 = vmatpush1.msra.mxu0 0.0
    %4166 = vmatprep.subr.mxu0 0.0
    %4167 = vmatpush1.msra.mxu0 0.0
    %4168 = vmatprep.subr.mxu0 0.0
    %4169 = vmatpush1.msra.mxu0 0.0
    %4170 = vmatprep.subr.mxu0 0.0
    %4171 = vmatpush1.msra.mxu0 0.0
    %4172 = vmatprep.subr.mxu0 0.0
    %4173 = vmatpush1.msra.mxu0 0.0
    %4174 = vmatprep.subr.mxu0 0.0
    %4175 = vmatpush1.msra.mxu0 0.0
    %4176 = vmatprep.subr.mxu0 0.0
    %4177 = vmatpush1.msra.mxu0 0.0
    %4178 = vmatprep.subr.mxu0 0.0
    %4179 = vmatpush1.msra.mxu0 0.0
    %4180 = vmatprep.mubr.f32.mxu0 0.0
    %4181 = vmatmul.mubr.f32.gmra.mrb[0].mxu0 %v4115
    %v4182 = vpop.f32.mrb[0].mxu0
    %v4183 = vadd.f32 %v3942, %v4182
    %v4184 = vpop.f32.mrb[0].mxu0
    %v4185 = vadd.f32 %v3946, %v4184
    %4186 = vdwg.mxu0
    %4187 = vmatprep.subr.mxu0 0.0
    %4188 = vmatpush1.msra.mxu0 %v3891
    %4189 = vmatprep.subr.mxu0 0.0
    %4190 = vmatpush1.msra.mxu0 %v3894
    %4191 = vmatprep.subr.mxu0 0.0
    %4192 = vmatpush1.msra.mxu0 %v3897
    %4193 = vmatprep.subr.mxu0 0.0
    %4194 = vmatpush1.msra.mxu0 %v3900
    %4195 = vmatprep.subr.mxu0 0.0
    %4196 = vmatpush1.msra.mxu0 %v3903
    %4197 = vmatprep.subr.mxu0 0.0
    %4198 = vmatpush1.msra.mxu0 %v3906
    %4199 = vmatprep.subr.mxu0 0.0
    %4200 = vmatpush1.msra.mxu0 %v3909
    %4201 = vmatprep.subr.mxu0 0.0
    %4202 = vmatpush1.msra.mxu0 %v3912
    %4203 = vmatprep.subr.mxu0 0.0
    %4204 = vmatpush1.msra.mxu0 %v3915
    %4205 = vmatprep.subr.mxu0 0.0
    %4206 = vmatpush1.msra.mxu0 %v3918
    %4207 = vmatprep.subr.mxu0 0.0
    %4208 = vmatpush1.msra.mxu0 %v3921
    %4209 = vmatprep.subr.mxu0 0.0
    %4210 = vmatpush1.msra.mxu0 %v3924
    %4211 = vmatprep.subr.mxu0 0.0
    %4212 = vmatpush1.msra.mxu0 %v3927
    %4213 = vmatprep.subr.mxu0 0.0
    %4214 = vmatpush1.msra.mxu0 %v3930
    %4215 = vmatprep.subr.mxu0 0.0
    %4216 = vmatpush1.msra.mxu0 %v3933
    %4217 = vmatprep.subr.mxu0 0.0
    %4218 = vmatpush1.msra.mxu0 %v3936
    %4219 = vmatprep.subr.mxu0 0.0
    %4220 = vmatpush1.msra.mxu0 0.0
    %4221 = vmatprep.subr.mxu0 0.0
    %4222 = vmatpush1.msra.mxu0 0.0
    %4223 = vmatprep.subr.mxu0 0.0
    %4224 = vmatpush1.msra.mxu0 0.0
    %4225 = vmatprep.subr.mxu0 0.0
    %4226 = vmatpush1.msra.mxu0 0.0
    %4227 = vmatprep.subr.mxu0 0.0
    %4228 = vmatpush1.msra.mxu0 0.0
    %4229 = vmatprep.subr.mxu0 0.0
    %4230 = vmatpush1.msra.mxu0 0.0
    %4231 = vmatprep.subr.mxu0 0.0
    %4232 = vmatpush1.msra.mxu0 0.0
    %4233 = vmatprep.subr.mxu0 0.0
    %4234 = vmatpush1.msra.mxu0 0.0
    %4235 = vmatprep.subr.mxu0 0.0
    %4236 = vmatpush1.msra.mxu0 0.0
    %4237 = vmatprep.subr.mxu0 0.0
    %4238 = vmatpush1.msra.mxu0 0.0
    %4239 = vmatprep.subr.mxu0 0.0
    %4240 = vmatpush1.msra.mxu0 0.0
    %4241 = vmatprep.subr.mxu0 0.0
    %4242 = vmatpush1.msra.mxu0 0.0
    %4243 = vmatprep.subr.mxu0 0.0
    %4244 = vmatpush1.msra.mxu0 0.0
    %4245 = vmatprep.subr.mxu0 0.0
    %4246 = vmatpush1.msra.mxu0 0.0
    %4247 = vmatprep.subr.mxu0 0.0
    %4248 = vmatpush1.msra.mxu0 0.0
    %4249 = vmatprep.subr.mxu0 0.0
    %4250 = vmatpush1.msra.mxu0 0.0
    %4251 = vmatprep.mubr.f32.mxu0 0.0
    %4252 = vmatmul.mubr.f32.gmra.mrb[0].mxu0 %v4115
    %v4253 = vpop.f32.mrb[0].mxu0
    %v4254 = vadd.f32 %v3950, %v4253
    %v4255 = vpop.f32.mrb[0].mxu0
    %4256 = vdwg.mxu0
    %v4257 = vadd.f32 %v3826, %v4183
    %v4258 = vxor.u32 %v4257, 2147483648
    %v4259 = vmul.f32 %v4258, 1.442695
    %v4260 = vpow.pop %v4259
    %v4261 = vadd.f32 %v4260, 1.0
    %v4262 = vrcp.pop %v4261
    %v4263 = vmul.f32 1.0, %v4262
    %v4264 = vadd.f32 %v3828, %v4185
    %v4265 = vxor.u32 %v4264, 2147483648
    %v4266 = vmul.f32 %v4265, 1.442695
    %v4267 = vpow.pop %v4266
    %v4268 = vadd.f32 %v4267, 1.0
    %v4269 = vrcp.pop %v4268
    %v4270 = vmul.f32 1.0, %v4269
    %v4271 = vmul.f32 %v4263, %v4254
    %v4272 = vadd.f32 %v3878, %v4271
    %v4273 = vtanh.pop %v4272
    %v4274 = vsub.f32 1.0, %v4270
    %v4275 = vmul.f32 %v4274, %v4273
    %v4276 = vmul.f32 %v4270, %v4115
    %v4277 = vadd.f32 %v4275, %v4276
    %4278 = vmatprep.subr.mxu0 %v3890
    %4279 = vmatpush1.msra.mxu0 %v3889
    %4280 = vmatprep.subr.mxu0 %v3893
    %4281 = vmatpush1.msra.mxu0 %v3892
    %4282 = vmatprep.subr.mxu0 %v3896
    %4283 = vmatpush1.msra.mxu0 %v3895
    %4284 = vmatprep.subr.mxu0 %v3899
    %4285 = vmatpush1.msra.mxu0 %v3898
    %4286 = vmatprep.subr.mxu0 %v3902
    %4287 = vmatpush1.msra.mxu0 %v3901
    %4288 = vmatprep.subr.mxu0 %v3905
    %4289 = vmatpush1.msra.mxu0 %v3904
    %4290 = vmatprep.subr.mxu0 %v3908
    %4291 = vmatpush1.msra.mxu0 %v3907
    %4292 = vmatprep.subr.mxu0 %v3911
    %4293 = vmatpush1.msra.mxu0 %v3910
    %4294 = vmatprep.subr.mxu0 %v3914
    %4295 = vmatpush1.msra.mxu0 %v3913
    %4296 = vmatprep.subr.mxu0 %v3917
    %4297 = vmatpush1.msra.mxu0 %v3916
    %4298 = vmatprep.subr.mxu0 %v3920
    %4299 = vmatpush1.msra.mxu0 %v3919
    %4300 = vmatprep.subr.mxu0 %v3923
    %4301 = vmatpush1.msra.mxu0 %v3922
    %4302 = vmatprep.subr.mxu0 %v3926
    %4303 = vmatpush1.msra.mxu0 %v3925
    %4304 = vmatprep.subr.mxu0 %v3929
    %4305 = vmatpush1.msra.mxu0 %v3928
    %4306 = vmatprep.subr.mxu0 %v3932
    %4307 = vmatpush1.msra.mxu0 %v3931
    %4308 = vmatprep.subr.mxu0 %v3935
    %4309 = vmatpush1.msra.mxu0 %v3934
    %4310 = vmatprep.subr.mxu0 0.0
    %4311 = vmatpush1.msra.mxu0 0.0
    %4312 = vmatprep.subr.mxu0 0.0
    %4313 = vmatpush1.msra.mxu0 0.0
    %4314 = vmatprep.subr.mxu0 0.0
    %4315 = vmatpush1.msra.mxu0 0.0
    %4316 = vmatprep.subr.mxu0 0.0
    %4317 = vmatpush1.msra.mxu0 0.0
    %4318 = vmatprep.subr.mxu0 0.0
    %4319 = vmatpush1.msra.mxu0 0.0
    %4320 = vmatprep.subr.mxu0 0.0
    %4321 = vmatpush1.msra.mxu0 0.0
    %4322 = vmatprep.subr.mxu0 0.0
    %4323 = vmatpush1.msra.mxu0 0.0
    %4324 = vmatprep.subr.mxu0 0.0
    %4325 = vmatpush1.msra.mxu0 0.0
    %4326 = vmatprep.subr.mxu0 0.0
    %4327 = vmatpush1.msra.mxu0 0.0
    %4328 = vmatprep.subr.mxu0 0.0
    %4329 = vmatpush1.msra.mxu0 0.0
    %4330 = vmatprep.subr.mxu0 0.0
    %4331 = vmatpush1.msra.mxu0 0.0
    %4332 = vmatprep.subr.mxu0 0.0
    %4333 = vmatpush1.msra.mxu0 0.0
    %4334 = vmatprep.subr.mxu0 0.0
    %4335 = vmatpush1.msra.mxu0 0.0
    %4336 = vmatprep.subr.mxu0 0.0
    %4337 = vmatpush1.msra.mxu0 0.0
    %4338 = vmatprep.subr.mxu0 0.0
    %4339 = vmatpush1.msra.mxu0 0.0
    %4340 = vmatprep.subr.mxu0 0.0
    %4341 = vmatpush1.msra.mxu0 0.0
    %4342 = vmatprep.mubr.f32.mxu0 0.0
    %4343 = vmatmul.mubr.f32.gmra.mrb[0].mxu0 %v4277
    %v4344 = vpop.f32.mrb[0].mxu0
    %v4345 = vadd.f32 %v3942, %v4344
    %v4346 = vpop.f32.mrb[0].mxu0
    %v4347 = vadd.f32 %v3946, %v4346
    %4348 = vdwg.mxu0
    %4349 = vmatprep.subr.mxu0 0.0
    %4350 = vmatpush1.msra.mxu0 %v3891
    %4351 = vmatprep.subr.mxu0 0.0
    %4352 = vmatpush1.msra.mxu0 %v3894
    %4353 = vmatprep.subr.mxu0 0.0
    %4354 = vmatpush1.msra.mxu0 %v3897
    %4355 = vmatprep.subr.mxu0 0.0
    %4356 = vmatpush1.msra.mxu0 %v3900
    %4357 = vmatprep.subr.mxu0 0.0
    %4358 = vmatpush1.msra.mxu0 %v3903
    %4359 = vmatprep.subr.mxu0 0.0
    %4360 = vmatpush1.msra.mxu0 %v3906
    %4361 = vmatprep.subr.mxu0 0.0
    %4362 = vmatpush1.msra.mxu0 %v3909
    %4363 = vmatprep.subr.mxu0 0.0
    %4364 = vmatpush1.msra.mxu0 %v3912
    %4365 = vmatprep.subr.mxu0 0.0
    %4366 = vmatpush1.msra.mxu0 %v3915
    %4367 = vmatprep.subr.mxu0 0.0
    %4368 = vmatpush1.msra.mxu0 %v3918
    %4369 = vmatprep.subr.mxu0 0.0
    %4370 = vmatpush1.msra.mxu0 %v3921
    %4371 = vmatprep.subr.mxu0 0.0
    %4372 = vmatpush1.msra.mxu0 %v3924
    %4373 = vmatprep.subr.mxu0 0.0
    %4374 = vmatpush1.msra.mxu0 %v3927
    %4375 = vmatprep.subr.mxu0 0.0
    %4376 = vmatpush1.msra.mxu0 %v3930
    %4377 = vmatprep.subr.mxu0 0.0
    %4378 = vmatpush1.msra.mxu0 %v3933
    %4379 = vmatprep.subr.mxu0 0.0
    %4380 = vmatpush1.msra.mxu0 %v3936
    %4381 = vmatprep.subr.mxu0 0.0
    %4382 = vmatpush1.msra.mxu0 0.0
    %4383 = vmatprep.subr.mxu0 0.0
    %4384 = vmatpush1.msra.mxu0 0.0
    %4385 = vmatprep.subr.mxu0 0.0
    %4386 = vmatpush1.msra.mxu0 0.0
    %4387 = vmatprep.subr.mxu0 0.0
    %4388 = vmatpush1.msra.mxu0 0.0
    %4389 = vmatprep.subr.mxu0 0.0
    %4390 = vmatpush1.msra.mxu0 0.0
    %4391 = vmatprep.subr.mxu0 0.0
    %4392 = vmatpush1.msra.mxu0 0.0
    %4393 = vmatprep.subr.mxu0 0.0
    %4394 = vmatpush1.msra.mxu0 0.0
    %4395 = vmatprep.subr.mxu0 0.0
    %4396 = vmatpush1.msra.mxu0 0.0
    %4397 = vmatprep.subr.mxu0 0.0
    %4398 = vmatpush1.msra.mxu0 0.0
    %4399 = vmatprep.subr.mxu0 0.0
    %4400 = vmatpush1.msra.mxu0 0.0
    %4401 = vmatprep.subr.mxu0 0.0
    %4402 = vmatpush1.msra.mxu0 0.0
    %4403 = vmatprep.subr.mxu0 0.0
    %4404 = vmatpush1.msra.mxu0 0.0
    %4405 = vmatprep.subr.mxu0 0.0
    %4406 = vmatpush1.msra.mxu0 0.0
    %4407 = vmatprep.subr.mxu0 0.0
    %4408 = vmatpush1.msra.mxu0 0.0
    %4409 = vmatprep.subr.mxu0 0.0
    %4410 = vmatpush1.msra.mxu0 0.0
    %4411 = vmatprep.subr.mxu0 0.0
    %4412 = vmatpush1.msra.mxu0 0.0
    %4413 = vmatprep.mubr.f32.mxu0 0.0
    %4414 = vmatmul.mubr.f32.gmra.mrb[0].mxu0 %v4277
    %v4415 = vpop.f32.mrb[0].mxu0
    %v4416 = vadd.f32 %v3950, %v4415
    %v4417 = vpop.f32.mrb[0].mxu0
    %4418 = vdwg.mxu0
    %v4419 = vadd.f32 %v3832, %v4345
    %v4420 = vxor.u32 %v4419, 2147483648
    %v4421 = vmul.f32 %v4420, 1.442695
    %v4422 = vpow.pop %v4421
    %v4423 = vadd.f32 %v4422, 1.0
    %v4424 = vrcp.pop %v4423
    %v4425 = vmul.f32 1.0, %v4424
    %v4426 = vadd.f32 %v3834, %v4347
    %v4427 = vxor.u32 %v4426, 2147483648
    %v4428 = vmul.f32 %v4427, 1.442695
    %v4429 = vpow.pop %v4428
    %v4430 = vadd.f32 %v4429, 1.0
    %v4431 = vrcp.pop %v4430
    %v4432 = vmul.f32 1.0, %v4431
    %v4433 = vmul.f32 %v4425, %v4416
    %v4434 = vadd.f32 %v3883, %v4433
    %v4435 = vtanh.pop %v4434
    %v4436 = vsub.f32 1.0, %v4432
    %v4437 = vmul.f32 %v4436, %v4435
    %v4438 = vmul.f32 %v4432, %v4277
    %v4439 = vadd.f32 %v4437, %v4438
    %4440 = vmatprep.subr.mxu0 %v3890
    %4441 = vmatpush1.msra.mxu0 %v3889
    %4442 = vmatprep.subr.mxu0 %v3893
    %4443 = vmatpush1.msra.mxu0 %v3892
    %4444 = vmatprep.subr.mxu0 %v3896
    %4445 = vmatpush1.msra.mxu0 %v3895
    %4446 = vmatprep.subr.mxu0 %v3899
    %4447 = vmatpush1.msra.mxu0 %v3898
    %4448 = vmatprep.subr.mxu0 %v3902
    %4449 = vmatpush1.msra.mxu0 %v3901
    %4450 = vmatprep.subr.mxu0 %v3905
    %4451 = vmatpush1.msra.mxu0 %v3904
    %4452 = vmatprep.subr.mxu0 %v3908
    %4453 = vmatpush1.msra.mxu0 %v3907
    %4454 = vmatprep.subr.mxu0 %v3911
    %4455 = vmatpush1.msra.mxu0 %v3910
    %4456 = vmatprep.subr.mxu0 %v3914
    %4457 = vmatpush1.msra.mxu0 %v3913
    %4458 = vmatprep.subr.mxu0 %v3917
    %4459 = vmatpush1.msra.mxu0 %v3916
    %4460 = vmatprep.subr.mxu0 %v3920
    %4461 = vmatpush1.msra.mxu0 %v3919
    %4462 = vmatprep.subr.mxu0 %v3923
    %4463 = vmatpush1.msra.mxu0 %v3922
    %4464 = vmatprep.subr.mxu0 %v3926
    %4465 = vmatpush1.msra.mxu0 %v3925
    %4466 = vmatprep.subr.mxu0 %v3929
    %4467 = vmatpush1.msra.mxu0 %v3928
    %4468 = vmatprep.subr.mxu0 %v3932
    %4469 = vmatpush1.msra.mxu0 %v3931
    %4470 = vmatprep.subr.mxu0 %v3935
    %4471 = vmatpush1.msra.mxu0 %v3934
    %4472 = vmatprep.subr.mxu0 0.0
    %4473 = vmatpush1.msra.mxu0 0.0
    %4474 = vmatprep.subr.mxu0 0.0
    %4475 = vmatpush1.msra.mxu0 0.0
    %4476 = vmatprep.subr.mxu0 0.0
    %4477 = vmatpush1.msra.mxu0 0.0
    %4478 = vmatprep.subr.mxu0 0.0
    %4479 = vmatpush1.msra.mxu0 0.0
    %4480 = vmatprep.subr.mxu0 0.0
    %4481 = vmatpush1.msra.mxu0 0.0
    %4482 = vmatprep.subr.mxu0 0.0
    %4483 = vmatpush1.msra.mxu0 0.0
    %4484 = vmatprep.subr.mxu0 0.0
    %4485 = vmatpush1.msra.mxu0 0.0
    %4486 = vmatprep.subr.mxu0 0.0
    %4487 = vmatpush1.msra.mxu0 0.0
    %4488 = vmatprep.subr.mxu0 0.0
    %4489 = vmatpush1.msra.mxu0 0.0
    %4490 = vmatprep.subr.mxu0 0.0
    %4491 = vmatpush1.msra.mxu0 0.0
    %4492 = vmatprep.subr.mxu0 0.0
    %4493 = vmatpush1.msra.mxu0 0.0
    %4494 = vmatprep.subr.mxu0 0.0
    %4495 = vmatpush1.msra.mxu0 0.0
    %4496 = vmatprep.subr.mxu0 0.0
    %4497 = vmatpush1.msra.mxu0 0.0
    %4498 = vmatprep.subr.mxu0 0.0
    %4499 = vmatpush1.msra.mxu0 0.0
    %4500 = vmatprep.subr.mxu0 0.0
    %4501 = vmatpush1.msra.mxu0 0.0
    %4502 = vmatprep.subr.mxu0 0.0
    %4503 = vmatpush1.msra.mxu0 0.0
    %4504 = vmatprep.mubr.f32.mxu0 0.0
    %4505 = vmatmul.mubr.f32.gmra.mrb[0].mxu0 %v4439
    %v4506 = vpop.f32.mrb[0].mxu0
    %v4507 = vadd.f32 %v3942, %v4506
    %v4508 = vpop.f32.mrb[0].mxu0
    %v4509 = vadd.f32 %v3946, %v4508
    %4510 = vdwg.mxu0
    %4511 = vmatprep.subr.mxu0 0.0
    %4512 = vmatpush1.msra.mxu0 %v3891
    %4513 = vmatprep.subr.mxu0 0.0
    %4514 = vmatpush1.msra.mxu0 %v3894
    %4515 = vmatprep.subr.mxu0 0.0
    %4516 = vmatpush1.msra.mxu0 %v3897
    %4517 = vmatprep.subr.mxu0 0.0
    %4518 = vmatpush1.msra.mxu0 %v3900
    %4519 = vmatprep.subr.mxu0 0.0
    %4520 = vmatpush1.msra.mxu0 %v3903
    %4521 = vmatprep.subr.mxu0 0.0
    %4522 = vmatpush1.msra.mxu0 %v3906
    %4523 = vmatprep.subr.mxu0 0.0
    %4524 = vmatpush1.msra.mxu0 %v3909
    %4525 = vmatprep.subr.mxu0 0.0
    %4526 = vmatpush1.msra.mxu0 %v3912
    %4527 = vmatprep.subr.mxu0 0.0
    %4528 = vmatpush1.msra.mxu0 %v3915
    %4529 = vmatprep.subr.mxu0 0.0
    %4530 = vmatpush1.msra.mxu0 %v3918
    %4531 = vmatprep.subr.mxu0 0.0
    %4532 = vmatpush1.msra.mxu0 %v3921
    %4533 = vmatprep.subr.mxu0 0.0
    %4534 = vmatpush1.msra.mxu0 %v3924
    %4535 = vmatprep.subr.mxu0 0.0
    %4536 = vmatpush1.msra.mxu0 %v3927
    %4537 = vmatprep.subr.mxu0 0.0
    %4538 = vmatpush1.msra.mxu0 %v3930
    %4539 = vmatprep.subr.mxu0 0.0
    %4540 = vmatpush1.msra.mxu0 %v3933
    %4541 = vmatprep.subr.mxu0 0.0
    %4542 = vmatpush1.msra.mxu0 %v3936
    %4543 = vmatprep.subr.mxu0 0.0
    %4544 = vmatpush1.msra.mxu0 0.0
    %4545 = vmatprep.subr.mxu0 0.0
    %4546 = vmatpush1.msra.mxu0 0.0
    %4547 = vmatprep.subr.mxu0 0.0
    %4548 = vmatpush1.msra.mxu0 0.0
    %4549 = vmatprep.subr.mxu0 0.0
    %4550 = vmatpush1.msra.mxu0 0.0
    %4551 = vmatprep.subr.mxu0 0.0
    %4552 = vmatpush1.msra.mxu0 0.0
    %4553 = vmatprep.subr.mxu0 0.0
    %4554 = vmatpush1.msra.mxu0 0.0
    %4555 = vmatprep.subr.mxu0 0.0
    %4556 = vmatpush1.msra.mxu0 0.0
    %4557 = vmatprep.subr.mxu0 0.0
    %4558 = vmatpush1.msra.mxu0 0.0
    %4559 = vmatprep.subr.mxu0 0.0
    %4560 = vmatpush1.msra.mxu0 0.0
    %4561 = vmatprep.subr.mxu0 0.0
    %4562 = vmatpush1.msra.mxu0 0.0
    %4563 = vmatprep.subr.mxu0 0.0
    %4564 = vmatpush1.msra.mxu0 0.0
    %4565 = vmatprep.subr.mxu0 0.0
    %4566 = vmatpush1.msra.mxu0 0.0
    %4567 = vmatprep.subr.mxu0 0.0
    %4568 = vmatpush1.msra.mxu0 0.0
    %4569 = vmatprep.subr.mxu0 0.0
    %4570 = vmatpush1.msra.mxu0 0.0
    %4571 = vmatprep.subr.mxu0 0.0
    %4572 = vmatpush1.msra.mxu0 0.0
    %4573 = vmatprep.subr.mxu0 0.0
    %4574 = vmatpush1.msra.mxu0 0.0
    %4575 = vmatprep.mubr.f32.mxu0 0.0
    %4576 = vmatmul.mubr.f32.gmra.mrb[0].mxu0 %v4439
    %v4577 = vpop.f32.mrb[0].mxu0
    %v4578 = vadd.f32 %v3950, %v4577
    %v4579 = vpop.f32.mrb[0].mxu0
    %4580 = vdwg.mxu0
    %v4581 = vadd.f32 %v3836, %v4507
    %v4582 = vxor.u32 %v4581, 2147483648
    %v4583 = vmul.f32 %v4582, 1.442695
    %v4584 = vpow.pop %v4583
    %v4585 = vadd.f32 %v4584, 1.0
    %v4586 = vrcp.pop %v4585
    %v4587 = vmul.f32 1.0, %v4586
    %v4588 = vadd.f32 %v3838, %v4509
    %v4589 = vxor.u32 %v4588, 2147483648
    %v4590 = vmul.f32 %v4589, 1.442695
    %v4591 = vpow.pop %v4590
    %v4592 = vadd.f32 %v4591, 1.0
    %v4593 = vrcp.pop %v4592
    %v4594 = vmul.f32 1.0, %v4593
    %v4595 = vmul.f32 %v4587, %v4578
    %v4596 = vadd.f32 %v3886, %v4595
    %v4597 = vtanh.pop %v4596
    %v4598 = vsub.f32 1.0, %v4594
    %v4599 = vmul.f32 %v4598, %v4597
    %v4600 = vmul.f32 %v4594, %v4439
    %v4601 = vadd.f32 %v4599, %v4600
    %v4602 = vld [vmem:[%s22] sm:$0xff]
    %v4603 = vld [vmem:[%s22 + $0x8] sm:$0xff]
    %v4604 = vld [vmem:[%s22 + $0x10] sm:$0xff]
    %v4605 = vld [vmem:[%s22 + $0x18] sm:$0xff]
    %v4606 = vld [vmem:[%s22 + $0x20] sm:$0xff]
    %v4607 = vld [vmem:[%s22 + $0x28] sm:$0xff]
    %v4608 = vld [vmem:[%s22 + $0x30] sm:$0xff]
    %v4609 = vld [vmem:[%s22 + $0x38] sm:$0xff]
    %v4610 = vld [vmem:[%s22 + $0x40] sm:$0xff]
    %v4611 = vld [vmem:[%s22 + $0x48] sm:$0xff]
    %v4612 = vld [vmem:[%s22 + $0x50] sm:$0xff]
    %v4613 = vld [vmem:[%s22 + $0x58] sm:$0xff]
    %v4614 = vld [vmem:[%s22 + $0x60] sm:$0xff]
    %v4615 = vld [vmem:[%s22 + $0x68] sm:$0xff]
    %v4616 = vld [vmem:[%s22 + $0x70] sm:$0xff]
    %v4617 = vld [vmem:[%s22 + $0x78] sm:$0xff]
    %v4618 = vld [vmem:[%s23] sm:$0x1]
    %v4620 = vlaneseq
    %v4621 = vshrl.u32 %v4620, 7
    %v4622 = vsub.s32 0, %v4621
    %v4623 = vrot.slane %v4618, %v4622
    %4625 = vmatprep.subr.mxu0 0.0
    %4626 = vmatpush1.msra.mxu0 %v4602
    %4627 = vmatprep.subr.mxu0 0.0
    %4628 = vmatpush1.msra.mxu0 %v4603
    %4629 = vmatprep.subr.mxu0 0.0
    %4630 = vmatpush1.msra.mxu0 %v4604
    %4631 = vmatprep.subr.mxu0 0.0
    %4632 = vmatpush1.msra.mxu0 %v4605
    %4633 = vmatprep.subr.mxu0 0.0
    %4634 = vmatpush1.msra.mxu0 %v4606
    %4635 = vmatprep.subr.mxu0 0.0
    %4636 = vmatpush1.msra.mxu0 %v4607
    %4637 = vmatprep.subr.mxu0 0.0
    %4638 = vmatpush1.msra.mxu0 %v4608
    %4639 = vmatprep.subr.mxu0 0.0
    %4640 = vmatpush1.msra.mxu0 %v4609
    %4641 = vmatprep.subr.mxu0 0.0
    %4642 = vmatpush1.msra.mxu0 %v4610
    %4643 = vmatprep.subr.mxu0 0.0
    %4644 = vmatpush1.msra.mxu0 %v4611
    %4645 = vmatprep.subr.mxu0 0.0
    %4646 = vmatpush1.msra.mxu0 %v4612
    %4647 = vmatprep.subr.mxu0 0.0
    %4648 = vmatpush1.msra.mxu0 %v4613
    %4649 = vmatprep.subr.mxu0 0.0
    %4650 = vmatpush1.msra.mxu0 %v4614
    %4651 = vmatprep.subr.mxu0 0.0
    %4652 = vmatpush1.msra.mxu0 %v4615
    %4653 = vmatprep.subr.mxu0 0.0
    %4654 = vmatpush1.msra.mxu0 %v4616
    %4655 = vmatprep.subr.mxu0 0.0
    %4656 = vmatpush1.msra.mxu0 %v4617
    %4657 = vmatprep.subr.mxu0 0.0
    %4658 = vmatpush1.msra.mxu0 0.0
    %4659 = vmatprep.subr.mxu0 0.0
    %4660 = vmatpush1.msra.mxu0 0.0
    %4661 = vmatprep.subr.mxu0 0.0
    %4662 = vmatpush1.msra.mxu0 0.0
    %4663 = vmatprep.subr.mxu0 0.0
    %4664 = vmatpush1.msra.mxu0 0.0
    %4665 = vmatprep.subr.mxu0 0.0
    %4666 = vmatpush1.msra.mxu0 0.0
    %4667 = vmatprep.subr.mxu0 0.0
    %4668 = vmatpush1.msra.mxu0 0.0
    %4669 = vmatprep.subr.mxu0 0.0
    %4670 = vmatpush1.msra.mxu0 0.0
    %4671 = vmatprep.subr.mxu0 0.0
    %4672 = vmatpush1.msra.mxu0 0.0
    %4673 = vmatprep.subr.mxu0 0.0
    %4674 = vmatpush1.msra.mxu0 0.0
    %4675 = vmatprep.subr.mxu0 0.0
    %4676 = vmatpush1.msra.mxu0 0.0
    %4677 = vmatprep.subr.mxu0 0.0
    %4678 = vmatpush1.msra.mxu0 0.0
    %4679 = vmatprep.subr.mxu0 0.0
    %4680 = vmatpush1.msra.mxu0 0.0
    %4681 = vmatprep.subr.mxu0 0.0
    %4682 = vmatpush1.msra.mxu0 0.0
    %4683 = vmatprep.subr.mxu0 0.0
    %4684 = vmatpush1.msra.mxu0 0.0
    %4685 = vmatprep.subr.mxu0 0.0
    %4686 = vmatpush1.msra.mxu0 0.0
    %4687 = vmatprep.subr.mxu0 0.0
    %4688 = vmatpush1.msra.mxu0 0.0
    %4689 = vmatprep.mubr.f32.mxu0 0.0
    %4690 = vmatmul.mubr.f32.gmra.mrb[0].mxu0 %v4115
    %v4691 = vpop.f32.mrb[0].mxu0
    %v4692 = vadd.f32 %v4623, %v4691
    %v4693 = vpop.f32.mrb[0].mxu0
    %4694 = vmatprep.mubr.f32.mxu0 0.0
    %4695 = vmatmul.mubr.f32.gmra.mrb[0].mxu0 %v4277
    %v4696 = vpop.f32.mrb[0].mxu0
    %v4697 = vadd.f32 %v4623, %v4696
    %v4698 = vpop.f32.mrb[0].mxu0
    %4699 = vmatprep.mubr.f32.mxu0 0.0
    %4700 = vmatmul.mubr.f32.gmra.mrb[0].mxu0 %v4439
    %v4701 = vpop.f32.mrb[0].mxu0
    %v4702 = vadd.f32 %v4623, %v4701
    %v4703 = vpop.f32.mrb[0].mxu0
    %4704 = vmatprep.mubr.f32.mxu0 0.0
    %4705 = vmatmul.mubr.f32.gmra.mrb[0].mxu0 %v4601
    %v4706 = vpop.f32.mrb[0].mxu0
    %v4707 = vadd.f32 %v4623, %v4706
    %v4708 = vpop.f32.mrb[0].mxu0
    %4709 = vdwg.mxu0
    %4710 = vxpose.xlu0.b32.start [1/16] %v4692, 128
    %4711 = vxpose.xlu0.b32.cont [2/16] %v4697, 128
    %4712 = vxpose.xlu0.b32.cont [3/16] %v4702, 128
    %4713 = vxpose.xlu0.b32.cont [4/16] %v4707, 128
    %4714 = vxpose.xlu0.b32.cont [5/16] 0.0, 128
    %4715 = vxpose.xlu0.b32.cont [6/16] 0.0, 128
    %4716 = vxpose.xlu0.b32.cont [7/16] 0.0, 128
    %4717 = vxpose.xlu0.b32.cont [8/16] 0.0, 128
    %4718 = vxpose.xlu0.b32.cont [9/16] 0.0, 128
    %4719 = vxpose.xlu0.b32.cont [10/16] 0.0, 128
    %4720 = vxpose.xlu0.b32.cont [11/16] 0.0, 128
    %4721 = vxpose.xlu0.b32.cont [12/16] 0.0, 128
    %4722 = vxpose.xlu0.b32.cont [13/16] 0.0, 128
    %4723 = vxpose.xlu0.b32.cont [14/16] 0.0, 128
    %4724 = vxpose.xlu0.b32.cont [15/16] 0.0, 128
    %4725 = vxpose.xlu0.b32.end [16/16] 0.0, 128
    %v4726 = vpop.trf.xlu0
    %v4727 = vpop.trf.xlu0
    %v4728 = vpop.trf.xlu0
    %v4729 = vpop.trf.xlu0
    %v4730 = vpop.trf.xlu0
    %v4731 = vpop.trf.xlu0
    %v4732 = vpop.trf.xlu0
    %v4733 = vpop.trf.xlu0
    %v4734 = vpop.trf.xlu0
    %v4735 = vpop.trf.xlu0
    %v4736 = vpop.trf.xlu0
    %v4737 = vpop.trf.xlu0
    %v4738 = vpop.trf.xlu0
    %v4739 = vpop.trf.xlu0
    %v4740 = vpop.trf.xlu0
    %v4741 = vpop.trf.xlu0
    %4742 = vst.msk [vmem:[%s24] sm:$0xff] %vm2611, %v4726
    %vm4743 = vcmask 57344
    %4744 = vst.msk [vmem:[%s24 + $0x8] sm:$0x1] %vm4743, %v4727
    %4747 = vrot.lane.b32.xlu0 %v4726, 120
    %v4748 = vpop.permute.xlu0 %4747
    %4749 = vrot.lane.b32.xlu0 %v4727, 120
    %v4750 = vpop.permute.xlu0 %4749
    %s4753 = scalar_lea.vmem %s24, 16
    %4754 = vst.msk [vmem:[%s4753] sm:$0xff] %vm2611, %v4748
    %4755 = vst.msk [vmem:[%s4753 + $0x8] sm:$0x1] %vm4743, %v4750
    %4756 = vrot.lane.b32.xlu0 %v4726, 112
    %v4757 = vpop.permute.xlu0 %4756
    %4758 = vrot.lane.b32.xlu0 %v4727, 112
    %v4759 = vpop.permute.xlu0 %4758
    %s4762 = scalar_lea.vmem %s24, 32
    %4763 = vst.msk [vmem:[%s4762] sm:$0xff] %vm2611, %v4757
    %4764 = vst.msk [vmem:[%s4762 + $0x8] sm:$0x1] %vm4743, %v4759
    %4765 = vrot.lane.b32.xlu0 %v4726, 104
    %v4766 = vpop.permute.xlu0 %4765
    %4767 = vrot.lane.b32.xlu0 %v4727, 104
    %v4768 = vpop.permute.xlu0 %4767
    %s4771 = scalar_lea.vmem %s24, 48
    %4772 = vst.msk [vmem:[%s4771] sm:$0xff] %vm2611, %v4766
    %4773 = vst.msk [vmem:[%s4771 + $0x8] sm:$0x1] %vm4743, %v4768
    %4774 = vst [vmem:[#allocation2] sm:$0xff] %v4601
    // Predicated region
    $region98: #{eeg_model_3_forward.1} parent=1 // pred_check
      _
    $region99: #{eeg_model_3_forward.1} parent=1 // pred_check_branch
      %4776 = sbr.rel (0) target = $region101
    $region100: #{eeg_model_3_forward.1} parent=1 // pred_region
      _
    $region101: #{eeg_model_3_forward.1} parent=1 // pred_fallthru
      _
    // Predicated region
    $region102: #{eeg_model_3_forward.1} parent=1 // pred_check
      _
    $region103: #{eeg_model_3_forward.1} parent=1 // pred_check_branch
      %4778 = sbr.rel (0) target = $region105
    $region104: #{eeg_model_3_forward.1} parent=1 // pred_region
      %s4780 = ssub.s32 128, 128
      %4781 = vsyncadd [#allocation3], %s4780
      %s4783 = sshll.u32 [#allocation2], 4
      %s4784 = int_to_ptr.vmem [resolvable:$true] %s4783
      %4786 = dma.vmem_to_hbm [thread:$0]  %s4784, 128, %s25, [#allocation3]
    $region105: #{eeg_model_3_forward.1} parent=1 // pred_fallthru
      _
    // Predicated region
    $region106: #{eeg_model_3_forward.1} parent=1 // pred_check
      _
    $region107: #{eeg_model_3_forward.1} parent=1 // pred_check_branch
      %4788 = sbr.rel (0) target = $region109
    $region108: #{eeg_model_3_forward.1} parent=1 // pred_region
      _
    $region109: #{eeg_model_3_forward.1} parent=1 // pred_fallthru
      _
    // Predicated region
    $region110: #{eeg_model_3_forward.1} parent=1 // pred_check
      _
    $region111: #{eeg_model_3_forward.1} parent=1 // pred_check_branch
      %4790 = sbr.rel (0) target = $region113
    $region112: #{eeg_model_3_forward.1} parent=1 // pred_region
      %4791 = dma.done [#allocation3], 128
    $region113: #{eeg_model_3_forward.1} parent=1 // pred_fallthru
      _
    %4792 = vsyncpa [#allocation3], 1

</llo_original>
